<compile_context>
chip_gen: v7x
topology: tpu7x:2x2x1
jax: 0.10.0
libtpu: 0.0.40
codegen_flags: <defaults>
</compile_context>

<pallas_src>
import jax
import jax.numpy as jnp
from jax import lax
from jax.experimental import pallas as pl
from jax.experimental.pallas import tpu as pltpu

EPS = 1e-6
K = 7
PAD = 3
INV_SQRT2 = 0.7071067811865476


def convnext_block_kernel(xpad_ref, dww_ref, dwb_ref, lnw_ref, lnb_ref,
                          w1_ref, b1_ref, w2_ref, b2_ref, gamma_ref, o_ref):
    _, TH, W, C = o_ref.shape
    r = pl.program_id(1)
    row0 = pl.multiple_of(r * TH, TH)

    # Halo slab for this row tile: rows [r*TH, r*TH + TH + 6) of the padded image.
    # Only this (TH+6, Wp, C) slab is cast to f32, not the whole padded image.
    xslab = xpad_ref[0, pl.ds(row0, TH + 2 * PAD)].astype(jnp.float32)   # (TH+6, Wp, C)
    dww = dww_ref[...].astype(jnp.float32)                               # (K, K, C)

    # --- depthwise 7x7 conv (W/sublane slice hoisted out of the inner loop) ---
    acc = jnp.zeros((TH, W, C), jnp.float32)
    for j in range(K):
        xj = xslab[:, j:j + W, :]                    # 7 sublane shifts total
        for i in range(K):
            acc = acc + xj[i:i + TH] * dww[i, j]     # leading-dim slice: free offset
    acc = acc + dwb_ref[...].astype(jnp.float32)     # (1, C) broadcast

    x = acc.reshape(TH * W, C)

    # --- LayerNorm over channels (channels_last, biased variance) ---
    u = jnp.mean(x, axis=-1, keepdims=True)
    d = x - u
    var = jnp.mean(d * d, axis=-1, keepdims=True)
    xn = d * lax.rsqrt(var + EPS)
    xn = xn * lnw_ref[...] + lnb_ref[...]

    # --- pwconv1 -> exact GELU (erf, matches nn.GELU default) -> pwconv2 ---
    h = jnp.dot(xn, w1_ref[...], preferred_element_type=jnp.float32) + b1_ref[...]
    h = 0.5 * h * (1.0 + lax.erf(h * INV_SQRT2))
    y = jnp.dot(h, w2_ref[...], preferred_element_type=jnp.float32) + b2_ref[...]

    # --- layer scale + residual (residual comes from the resident padded block) ---
    y = y * gamma_ref[...]
    res = xslab[PAD:PAD + TH, PAD:PAD + W, :]
    o_ref[0] = (res + y.reshape(TH, W, C)).astype(o_ref.dtype)


def _pick_row_tile(H, W, max_rows=128):
    """Largest divisor of H such that the row-tile has at most `max_rows` pixels
    (128-row MLP chunks map 1:1 onto the v5e MXU and are fine on v6e/v7x)."""
    divisors = [d for d in range(1, H + 1) if H % d == 0]
    cands = [d for d in divisors if d * W <= max_rows]
    return max(cands) if cands else 1


def convnext_block(x_nchw, params, max_rows=128):
    B, C, H, W = x_nchw.shape
    C4 = 4 * C
    x = jnp.transpose(x_nchw, (0, 2, 3, 1))                      # NHWC
    # TODO(synk): keep activations NHWC across blocks so this transpose/pad is paid
    # once per network instead of once per block.
    xpad = jnp.pad(x, ((0, 0), (PAD, PAD), (PAD, PAD), (0, 0)))
    Hp, Wp = H + 2 * PAD, W + 2 * PAD

    TH = _pick_row_tile(H, W, max_rows)
    R = H // TH

    dw_w = params["dw_w"]                                        # (7, 7, C)
    dw_b = params["dw_b"].reshape(1, C)
    ln_w = params["ln_w"].reshape(1, C)
    ln_b = params["ln_b"].reshape(1, C)
    w1 = params["w1"]                                            # (C, 4C)
    b1 = params["b1"].reshape(1, C4)
    w2 = params["w2"]                                            # (4C, C)
    b2 = params["b2"].reshape(1, C)
    gamma = params["gamma"].reshape(1, C)

    def resident(shape):
        n = len(shape)
        return pl.BlockSpec(shape, lambda b, r, _n=n: (0,) * _n)

    itemsize = jnp.dtype(x.dtype).itemsize
    weight_bytes = sum(int(p.size) * jnp.dtype(p.dtype).itemsize
                       for p in (dw_w, dw_b, ln_w, ln_b, w1, b1, w2, b2, gamma))
    cost = pl.CostEstimate(
        flops=2 * B * H * W * C * K * K + 4 * B * H * W * C * C4,
        transcendentals=B * H * W * C4,
        bytes_accessed=(int(xpad.size) + B * H * W * C) * itemsize + weight_bytes,
    )

    out_nhwc = pl.pallas_call(
        convnext_block_kernel,
        out_shape=jax.ShapeDtypeStruct((B, H, W, C), x.dtype),
        grid_spec=pltpu.PrefetchScalarGridSpec(
            num_scalar_prefetch=0,
            grid=(B, R),
            in_specs=[
                # Padded input: constant block index along the row axis -> DMA'd once
                # per batch element, resident in VMEM (also provides the residual).
                pl.BlockSpec((1, Hp, Wp, C), lambda b, r: (b, 0, 0, 0)),
                resident((K, K, C)),     # dw weight
                resident((1, C)),        # dw bias
                resident((1, C)),        # ln weight
                resident((1, C)),        # ln bias
                resident((C, C4)),       # pwconv1 weight
                resident((1, C4)),       # pwconv1 bias
                resident((C4, C)),       # pwconv2 weight
                resident((1, C)),        # pwconv2 bias
                resident((1, C)),        # gamma (layer scale)
            ],
            out_specs=pl.BlockSpec((1, TH, W, C), lambda b, r: (b, r, 0, 0)),
        ),
        compiler_params=pltpu.CompilerParams(
            dimension_semantics=("parallel", "arbitrary"),
            vmem_limit_bytes=64 * 1024 * 1024,
        ),
        cost_estimate=cost,
    )(xpad, dw_w, dw_b, ln_w, ln_b, w1, b1, w2, b2, gamma)

    return jnp.transpose(out_nhwc, (0, 3, 1, 2))                 # back to NCHW


def ref_block(x_nchw, params):
    """Pure-JAX reference (matches PyTorch Block.forward with drop_path=0)."""
    B, C, H, W = x_nchw.shape
    x = jnp.transpose(x_nchw, (0, 2, 3, 1))
    kern = params["dw_w"][:, :, None, :]                         # HWIO, I=1 (depthwise)
    y = lax.conv_general_dilated(
        x, kern, window_strides=(1, 1), padding=[(PAD, PAD), (PAD, PAD)],
        dimension_numbers=("NHWC", "HWIO", "NHWC"), feature_group_count=C)
    y = y + params["dw_b"]
    u = jnp.mean(y, axis=-1, keepdims=True)
    d = y - u
    var = jnp.mean(d * d, axis=-1, keepdims=True)
    y = d / jnp.sqrt(var + EPS)
    y = y * params["ln_w"] + params["ln_b"]
    h = y @ params["w1"] + params["b1"]
    h = 0.5 * h * (1.0 + lax.erf(h * INV_SQRT2))
    y = h @ params["w2"] + params["b2"]
    y = y * params["gamma"]
    y = x + y
    return jnp.transpose(y, (0, 3, 1, 2))


if __name__ == "__main__":
    B, C, H, W = 2, 32, 16, 16
    key = jax.random.PRNGKey(0)
    ks = jax.random.split(key, 8)

    params = {
        "dw_w": 0.1 * jax.random.normal(ks[0], (K, K, C), jnp.float32),
        "dw_b": 0.1 * jax.random.normal(ks[1], (C,), jnp.float32),
        "ln_w": jnp.ones((C,), jnp.float32),
        "ln_b": jnp.zeros((C,), jnp.float32),
        "w1": 0.1 * jax.random.normal(ks[2], (C, 4 * C), jnp.float32),
        "b1": 0.1 * jax.random.normal(ks[3], (4 * C,), jnp.float32),
        "w2": 0.1 * jax.random.normal(ks[4], (4 * C, C), jnp.float32),
        "b2": 0.1 * jax.random.normal(ks[5], (C,), jnp.float32),
        "gamma": 1e-6 * jnp.ones((C,), jnp.float32),   # layer_scale_init_value
    }
    # TODO(synk): drop_path (stochastic depth) omitted — default drop_path=0.0 is Identity.

    x = jax.random.normal(ks[6], (B, C, H, W), jnp.float32)

    out = jax.block_until_ready(convnext_block(x, params))
    ref = jax.block_until_ready(ref_block(x, params))

    assert out.shape == (B, C, H, W)
    assert jnp.allclose(out, ref, atol=1e-4, rtol=1e-4), (
        f"max abs err {jnp.max(jnp.abs(out - ref))}")
    print("KERNEL_OK")
</pallas_src>

<mosaic_0001>
module attributes {stable_mosaic.version = 11 : i64} {
  func.func @convnext_block_kernel(%arg0: i32, %arg1: i32, %arg2: memref<1x22x22x32xf32, #tpu.memory_space<vmem>>, %arg3: memref<7x7x32xf32, #tpu.memory_space<vmem>>, %arg4: memref<1x32xf32, #tpu.memory_space<vmem>>, %arg5: memref<1x32xf32, #tpu.memory_space<vmem>>, %arg6: memref<1x32xf32, #tpu.memory_space<vmem>>, %arg7: memref<32x128xf32, #tpu.memory_space<vmem>>, %arg8: memref<1x128xf32, #tpu.memory_space<vmem>>, %arg9: memref<128x32xf32, #tpu.memory_space<vmem>>, %arg10: memref<1x32xf32, #tpu.memory_space<vmem>>, %arg11: memref<1x32xf32, #tpu.memory_space<vmem>>, %arg12: memref<1x8x16x32xf32, #tpu.memory_space<vmem>>) attributes {dimension_semantics = [#tpu.dimension_semantics<parallel>, #tpu.dimension_semantics<arbitrary>], iteration_bounds = array<i64: 2, 2>, scalar_prefetch = 0 : i64, scratch_operands = 0 : i64, tpu.core_type = #tpu.core_type<tc>, window_params = [{transform_indices = @transform_0, window_bounds = array<i64: 1, 22, 22, 32>}, {pipeline_mode = #tpu.pipeline_mode<synchronous>, transform_indices = @transform_1, window_bounds = array<i64: 7, 7, 32>}, {pipeline_mode = #tpu.pipeline_mode<synchronous>, transform_indices = @transform_2, window_bounds = array<i64: 1, 32>}, {pipeline_mode = #tpu.pipeline_mode<synchronous>, transform_indices = @transform_3, window_bounds = array<i64: 1, 32>}, {pipeline_mode = #tpu.pipeline_mode<synchronous>, transform_indices = @transform_4, window_bounds = array<i64: 1, 32>}, {pipeline_mode = #tpu.pipeline_mode<synchronous>, transform_indices = @transform_5, window_bounds = array<i64: 32, 128>}, {pipeline_mode = #tpu.pipeline_mode<synchronous>, transform_indices = @transform_6, window_bounds = array<i64: 1, 128>}, {pipeline_mode = #tpu.pipeline_mode<synchronous>, transform_indices = @transform_7, window_bounds = array<i64: 128, 32>}, {pipeline_mode = #tpu.pipeline_mode<synchronous>, transform_indices = @transform_8, window_bounds = array<i64: 1, 32>}, {pipeline_mode = #tpu.pipeline_mode<synchronous>, transform_indices = @transform_9, window_bounds = array<i64: 1, 32>}, {transform_indices = @transform_10, window_bounds = array<i64: 1, 8, 16, 32>}]} {
    %c8_i32 = arith.constant 8 : i32
    %0 = arith.muli %arg1, %c8_i32 : i32
    %1 = tpu.assume_multiple %0, 8 : i32
    %c0 = arith.constant 0 : index
    %2 = arith.index_cast %1 : i32 to index
    %c0_0 = arith.constant 0 : index
    %c0_1 = arith.constant 0 : index
    %3 = vector.load %arg2[%c0, %2, %c0_0, %c0_1] : memref<1x22x22x32xf32, #tpu.memory_space<vmem>>, vector<1x14x22x32xf32>
    %4 = vector.shape_cast %3 : vector<1x14x22x32xf32> to vector<14x22x32xf32>
    %c0_2 = arith.constant 0 : index
    %c0_3 = arith.constant 0 : index
    %c0_4 = arith.constant 0 : index
    %5 = vector.load %arg3[%c0_2, %c0_3, %c0_4] : memref<7x7x32xf32, #tpu.memory_space<vmem>>, vector<7x7x32xf32>
    %cst = arith.constant 0.000000e+00 : f32
    %6 = vector.broadcast %cst : f32 to vector<8x16x32xf32>
    %7 = vector.extract_strided_slice %4 {offsets = [0, 0, 0], sizes = [14, 16, 32], strides = [1, 1, 1]} : vector<14x22x32xf32> to vector<14x16x32xf32>
    %8 = vector.extract_strided_slice %7 {offsets = [0, 0, 0], sizes = [8, 16, 32], strides = [1, 1, 1]} : vector<14x16x32xf32> to vector<8x16x32xf32>
    %9 = vector.extract_strided_slice %5 {offsets = [0, 0, 0], sizes = [1, 1, 32], strides = [1, 1, 1]} : vector<7x7x32xf32> to vector<1x1x32xf32>
    %10 = vector.shape_cast %9 : vector<1x1x32xf32> to vector<32xf32>
    %11 = vector.shape_cast %10 : vector<32xf32> to vector<1x1x32xf32>
    %12 = vector.broadcast %11 : vector<1x1x32xf32> to vector<8x16x32xf32>
    %13 = arith.mulf %8, %12 : vector<8x16x32xf32>
    %14 = arith.addf %6, %13 : vector<8x16x32xf32>
    %15 = vector.extract_strided_slice %7 {offsets = [1, 0, 0], sizes = [8, 16, 32], strides = [1, 1, 1]} : vector<14x16x32xf32> to vector<8x16x32xf32>
    %16 = vector.extract_strided_slice %5 {offsets = [1, 0, 0], sizes = [1, 1, 32], strides = [1, 1, 1]} : vector<7x7x32xf32> to vector<1x1x32xf32>
    %17 = vector.shape_cast %16 : vector<1x1x32xf32> to vector<32xf32>
    %18 = vector.shape_cast %17 : vector<32xf32> to vector<1x1x32xf32>
    %19 = vector.broadcast %18 : vector<1x1x32xf32> to vector<8x16x32xf32>
    %20 = arith.mulf %15, %19 : vector<8x16x32xf32>
    %21 = arith.addf %14, %20 : vector<8x16x32xf32>
    %22 = vector.extract_strided_slice %7 {offsets = [2, 0, 0], sizes = [8, 16, 32], strides = [1, 1, 1]} : vector<14x16x32xf32> to vector<8x16x32xf32>
    %23 = vector.extract_strided_slice %5 {offsets = [2, 0, 0], sizes = [1, 1, 32], strides = [1, 1, 1]} : vector<7x7x32xf32> to vector<1x1x32xf32>
    %24 = vector.shape_cast %23 : vector<1x1x32xf32> to vector<32xf32>
    %25 = vector.shape_cast %24 : vector<32xf32> to vector<1x1x32xf32>
    %26 = vector.broadcast %25 : vector<1x1x32xf32> to vector<8x16x32xf32>
    %27 = arith.mulf %22, %26 : vector<8x16x32xf32>
    %28 = arith.addf %21, %27 : vector<8x16x32xf32>
    %29 = vector.extract_strided_slice %7 {offsets = [3, 0, 0], sizes = [8, 16, 32], strides = [1, 1, 1]} : vector<14x16x32xf32> to vector<8x16x32xf32>
    %30 = vector.extract_strided_slice %5 {offsets = [3, 0, 0], sizes = [1, 1, 32], strides = [1, 1, 1]} : vector<7x7x32xf32> to vector<1x1x32xf32>
    %31 = vector.shape_cast %30 : vector<1x1x32xf32> to vector<32xf32>
    %32 = vector.shape_cast %31 : vector<32xf32> to vector<1x1x32xf32>
    %33 = vector.broadcast %32 : vector<1x1x32xf32> to vector<8x16x32xf32>
    %34 = arith.mulf %29, %33 : vector<8x16x32xf32>
    %35 = arith.addf %28, %34 : vector<8x16x32xf32>
    %36 = vector.extract_strided_slice %7 {offsets = [4, 0, 0], sizes = [8, 16, 32], strides = [1, 1, 1]} : vector<14x16x32xf32> to vector<8x16x32xf32>
    %37 = vector.extract_strided_slice %5 {offsets = [4, 0, 0], sizes = [1, 1, 32], strides = [1, 1, 1]} : vector<7x7x32xf32> to vector<1x1x32xf32>
    %38 = vector.shape_cast %37 : vector<1x1x32xf32> to vector<32xf32>
    %39 = vector.shape_cast %38 : vector<32xf32> to vector<1x1x32xf32>
    %40 = vector.broadcast %39 : vector<1x1x32xf32> to vector<8x16x32xf32>
    %41 = arith.mulf %36, %40 : vector<8x16x32xf32>
    %42 = arith.addf %35, %41 : vector<8x16x32xf32>
    %43 = vector.extract_strided_slice %7 {offsets = [5, 0, 0], sizes = [8, 16, 32], strides = [1, 1, 1]} : vector<14x16x32xf32> to vector<8x16x32xf32>
    %44 = vector.extract_strided_slice %5 {offsets = [5, 0, 0], sizes = [1, 1, 32], strides = [1, 1, 1]} : vector<7x7x32xf32> to vector<1x1x32xf32>
    %45 = vector.shape_cast %44 : vector<1x1x32xf32> to vector<32xf32>
    %46 = vector.shape_cast %45 : vector<32xf32> to vector<1x1x32xf32>
    %47 = vector.broadcast %46 : vector<1x1x32xf32> to vector<8x16x32xf32>
    %48 = arith.mulf %43, %47 : vector<8x16x32xf32>
    %49 = arith.addf %42, %48 : vector<8x16x32xf32>
    %50 = vector.extract_strided_slice %7 {offsets = [6, 0, 0], sizes = [8, 16, 32], strides = [1, 1, 1]} : vector<14x16x32xf32> to vector<8x16x32xf32>
    %51 = vector.extract_strided_slice %5 {offsets = [6, 0, 0], sizes = [1, 1, 32], strides = [1, 1, 1]} : vector<7x7x32xf32> to vector<1x1x32xf32>
    %52 = vector.shape_cast %51 : vector<1x1x32xf32> to vector<32xf32>
    %53 = vector.shape_cast %52 : vector<32xf32> to vector<1x1x32xf32>
    %54 = vector.broadcast %53 : vector<1x1x32xf32> to vector<8x16x32xf32>
    %55 = arith.mulf %50, %54 : vector<8x16x32xf32>
    %56 = arith.addf %49, %55 : vector<8x16x32xf32>
    %57 = vector.extract_strided_slice %4 {offsets = [0, 1, 0], sizes = [14, 16, 32], strides = [1, 1, 1]} : vector<14x22x32xf32> to vector<14x16x32xf32>
    %58 = vector.extract_strided_slice %57 {offsets = [0, 0, 0], sizes = [8, 16, 32], strides = [1, 1, 1]} : vector<14x16x32xf32> to vector<8x16x32xf32>
    %59 = vector.extract_strided_slice %5 {offsets = [0, 1, 0], sizes = [1, 1, 32], strides = [1, 1, 1]} : vector<7x7x32xf32> to vector<1x1x32xf32>
    %60 = vector.shape_cast %59 : vector<1x1x32xf32> to vector<32xf32>
    %61 = vector.shape_cast %60 : vector<32xf32> to vector<1x1x32xf32>
    %62 = vector.broadcast %61 : vector<1x1x32xf32> to vector<8x16x32xf32>
    %63 = arith.mulf %58, %62 : vector<8x16x32xf32>
    %64 = arith.addf %56, %63 : vector<8x16x32xf32>
    %65 = vector.extract_strided_slice %57 {offsets = [1, 0, 0], sizes = [8, 16, 32], strides = [1, 1, 1]} : vector<14x16x32xf32> to vector<8x16x32xf32>
    %66 = vector.extract_strided_slice %5 {offsets = [1, 1, 0], sizes = [1, 1, 32], strides = [1, 1, 1]} : vector<7x7x32xf32> to vector<1x1x32xf32>
    %67 = vector.shape_cast %66 : vector<1x1x32xf32> to vector<32xf32>
    %68 = vector.shape_cast %67 : vector<32xf32> to vector<1x1x32xf32>
    %69 = vector.broadcast %68 : vector<1x1x32xf32> to vector<8x16x32xf32>
    %70 = arith.mulf %65, %69 : vector<8x16x32xf32>
    %71 = arith.addf %64, %70 : vector<8x16x32xf32>
    %72 = vector.extract_strided_slice %57 {offsets = [2, 0, 0], sizes = [8, 16, 32], strides = [1, 1, 1]} : vector<14x16x32xf32> to vector<8x16x32xf32>
    %73 = vector.extract_strided_slice %5 {offsets = [2, 1, 0], sizes = [1, 1, 32], strides = [1, 1, 1]} : vector<7x7x32xf32> to vector<1x1x32xf32>
    %74 = vector.shape_cast %73 : vector<1x1x32xf32> to vector<32xf32>
    %75 = vector.shape_cast %74 : vector<32xf32> to vector<1x1x32xf32>
    %76 = vector.broadcast %75 : vector<1x1x32xf32> to vector<8x16x32xf32>
    %77 = arith.mulf %72, %76 : vector<8x16x32xf32>
    %78 = arith.addf %71, %77 : vector<8x16x32xf32>
    %79 = vector.extract_strided_slice %57 {offsets = [3, 0, 0], sizes = [8, 16, 32], strides = [1, 1, 1]} : vector<14x16x32xf32> to vector<8x16x32xf32>
    %80 = vector.extract_strided_slice %5 {offsets = [3, 1, 0], sizes = [1, 1, 32], strides = [1, 1, 1]} : vector<7x7x32xf32> to vector<1x1x32xf32>
    %81 = vector.shape_cast %80 : vector<1x1x32xf32> to vector<32xf32>
    %82 = vector.shape_cast %81 : vector<32xf32> to vector<1x1x32xf32>
    %83 = vector.broadcast %82 : vector<1x1x32xf32> to vector<8x16x32xf32>
    %84 = arith.mulf %79, %83 : vector<8x16x32xf32>
    %85 = arith.addf %78, %84 : vector<8x16x32xf32>
    %86 = vector.extract_strided_slice %57 {offsets = [4, 0, 0], sizes = [8, 16, 32], strides = [1, 1, 1]} : vector<14x16x32xf32> to vector<8x16x32xf32>
    %87 = vector.extract_strided_slice %5 {offsets = [4, 1, 0], sizes = [1, 1, 32], strides = [1, 1, 1]} : vector<7x7x32xf32> to vector<1x1x32xf32>
    %88 = vector.shape_cast %87 : vector<1x1x32xf32> to vector<32xf32>
    %89 = vector.shape_cast %88 : vector<32xf32> to vector<1x1x32xf32>
    %90 = vector.broadcast %89 : vector<1x1x32xf32> to vector<8x16x32xf32>
    %91 = arith.mulf %86, %90 : vector<8x16x32xf32>
    %92 = arith.addf %85, %91 : vector<8x16x32xf32>
    %93 = vector.extract_strided_slice %57 {offsets = [5, 0, 0], sizes = [8, 16, 32], strides = [1, 1, 1]} : vector<14x16x32xf32> to vector<8x16x32xf32>
    %94 = vector.extract_strided_slice %5 {offsets = [5, 1, 0], sizes = [1, 1, 32], strides = [1, 1, 1]} : vector<7x7x32xf32> to vector<1x1x32xf32>
    %95 = vector.shape_cast %94 : vector<1x1x32xf32> to vector<32xf32>
    %96 = vector.shape_cast %95 : vector<32xf32> to vector<1x1x32xf32>
    %97 = vector.broadcast %96 : vector<1x1x32xf32> to vector<8x16x32xf32>
    %98 = arith.mulf %93, %97 : vector<8x16x32xf32>
    %99 = arith.addf %92, %98 : vector<8x16x32xf32>
    %100 = vector.extract_strided_slice %57 {offsets = [6, 0, 0], sizes = [8, 16, 32], strides = [1, 1, 1]} : vector<14x16x32xf32> to vector<8x16x32xf32>
    %101 = vector.extract_strided_slice %5 {offsets = [6, 1, 0], sizes = [1, 1, 32], strides = [1, 1, 1]} : vector<7x7x32xf32> to vector<1x1x32xf32>
    %102 = vector.shape_cast %101 : vector<1x1x32xf32> to vector<32xf32>
    %103 = vector.shape_cast %102 : vector<32xf32> to vector<1x1x32xf32>
    %104 = vector.broadcast %103 : vector<1x1x32xf32> to vector<8x16x32xf32>
    %105 = arith.mulf %100, %104 : vector<8x16x32xf32>
    %106 = arith.addf %99, %105 : vector<8x16x32xf32>
    %107 = vector.extract_strided_slice %4 {offsets = [0, 2, 0], sizes = [14, 16, 32], strides = [1, 1, 1]} : vector<14x22x32xf32> to vector<14x16x32xf32>
    %108 = vector.extract_strided_slice %107 {offsets = [0, 0, 0], sizes = [8, 16, 32], strides = [1, 1, 1]} : vector<14x16x32xf32> to vector<8x16x32xf32>
    %109 = vector.extract_strided_slice %5 {offsets = [0, 2, 0], sizes = [1, 1, 32], strides = [1, 1, 1]} : vector<7x7x32xf32> to vector<1x1x32xf32>
    %110 = vector.shape_cast %109 : vector<1x1x32xf32> to vector<32xf32>
    %111 = vector.shape_cast %110 : vector<32xf32> to vector<1x1x32xf32>
    %112 = vector.broadcast %111 : vector<1x1x32xf32> to vector<8x16x32xf32>
    %113 = arith.mulf %108, %112 : vector<8x16x32xf32>
    %114 = arith.addf %106, %113 : vector<8x16x32xf32>
    %115 = vector.extract_strided_slice %107 {offsets = [1, 0, 0], sizes = [8, 16, 32], strides = [1, 1, 1]} : vector<14x16x32xf32> to vector<8x16x32xf32>
    %116 = vector.extract_strided_slice %5 {offsets = [1, 2, 0], sizes = [1, 1, 32], strides = [1, 1, 1]} : vector<7x7x32xf32> to vector<1x1x32xf32>
    %117 = vector.shape_cast %116 : vector<1x1x32xf32> to vector<32xf32>
    %118 = vector.shape_cast %117 : vector<32xf32> to vector<1x1x32xf32>
    %119 = vector.broadcast %118 : vector<1x1x32xf32> to vector<8x16x32xf32>
    %120 = arith.mulf %115, %119 : vector<8x16x32xf32>
    %121 = arith.addf %114, %120 : vector<8x16x32xf32>
    %122 = vector.extract_strided_slice %107 {offsets = [2, 0, 0], sizes = [8, 16, 32], strides = [1, 1, 1]} : vector<14x16x32xf32> to vector<8x16x32xf32>
    %123 = vector.extract_strided_slice %5 {offsets = [2, 2, 0], sizes = [1, 1, 32], strides = [1, 1, 1]} : vector<7x7x32xf32> to vector<1x1x32xf32>
    %124 = vector.shape_cast %123 : vector<1x1x32xf32> to vector<32xf32>
    %125 = vector.shape_cast %124 : vector<32xf32> to vector<1x1x32xf32>
    %126 = vector.broadcast %125 : vector<1x1x32xf32> to vector<8x16x32xf32>
    %127 = arith.mulf %122, %126 : vector<8x16x32xf32>
    %128 = arith.addf %121, %127 : vector<8x16x32xf32>
    %129 = vector.extract_strided_slice %107 {offsets = [3, 0, 0], sizes = [8, 16, 32], strides = [1, 1, 1]} : vector<14x16x32xf32> to vector<8x16x32xf32>
    %130 = vector.extract_strided_slice %5 {offsets = [3, 2, 0], sizes = [1, 1, 32], strides = [1, 1, 1]} : vector<7x7x32xf32> to vector<1x1x32xf32>
    %131 = vector.shape_cast %130 : vector<1x1x32xf32> to vector<32xf32>
    %132 = vector.shape_cast %131 : vector<32xf32> to vector<1x1x32xf32>
    %133 = vector.broadcast %132 : vector<1x1x32xf32> to vector<8x16x32xf32>
    %134 = arith.mulf %129, %133 : vector<8x16x32xf32>
    %135 = arith.addf %128, %134 : vector<8x16x32xf32>
    %136 = vector.extract_strided_slice %107 {offsets = [4, 0, 0], sizes = [8, 16, 32], strides = [1, 1, 1]} : vector<14x16x32xf32> to vector<8x16x32xf32>
    %137 = vector.extract_strided_slice %5 {offsets = [4, 2, 0], sizes = [1, 1, 32], strides = [1, 1, 1]} : vector<7x7x32xf32> to vector<1x1x32xf32>
    %138 = vector.shape_cast %137 : vector<1x1x32xf32> to vector<32xf32>
    %139 = vector.shape_cast %138 : vector<32xf32> to vector<1x1x32xf32>
    %140 = vector.broadcast %139 : vector<1x1x32xf32> to vector<8x16x32xf32>
    %141 = arith.mulf %136, %140 : vector<8x16x32xf32>
    %142 = arith.addf %135, %141 : vector<8x16x32xf32>
    %143 = vector.extract_strided_slice %107 {offsets = [5, 0, 0], sizes = [8, 16, 32], strides = [1, 1, 1]} : vector<14x16x32xf32> to vector<8x16x32xf32>
    %144 = vector.extract_strided_slice %5 {offsets = [5, 2, 0], sizes = [1, 1, 32], strides = [1, 1, 1]} : vector<7x7x32xf32> to vector<1x1x32xf32>
    %145 = vector.shape_cast %144 : vector<1x1x32xf32> to vector<32xf32>
    %146 = vector.shape_cast %145 : vector<32xf32> to vector<1x1x32xf32>
    %147 = vector.broadcast %146 : vector<1x1x32xf32> to vector<8x16x32xf32>
    %148 = arith.mulf %143, %147 : vector<8x16x32xf32>
    %149 = arith.addf %142, %148 : vector<8x16x32xf32>
    %150 = vector.extract_strided_slice %107 {offsets = [6, 0, 0], sizes = [8, 16, 32], strides = [1, 1, 1]} : vector<14x16x32xf32> to vector<8x16x32xf32>
    %151 = vector.extract_strided_slice %5 {offsets = [6, 2, 0], sizes = [1, 1, 32], strides = [1, 1, 1]} : vector<7x7x32xf32> to vector<1x1x32xf32>
    %152 = vector.shape_cast %151 : vector<1x1x32xf32> to vector<32xf32>
    %153 = vector.shape_cast %152 : vector<32xf32> to vector<1x1x32xf32>
    %154 = vector.broadcast %153 : vector<1x1x32xf32> to vector<8x16x32xf32>
    %155 = arith.mulf %150, %154 : vector<8x16x32xf32>
    %156 = arith.addf %149, %155 : vector<8x16x32xf32>
    %157 = vector.extract_strided_slice %4 {offsets = [0, 3, 0], sizes = [14, 16, 32], strides = [1, 1, 1]} : vector<14x22x32xf32> to vector<14x16x32xf32>
    %158 = vector.extract_strided_slice %157 {offsets = [0, 0, 0], sizes = [8, 16, 32], strides = [1, 1, 1]} : vector<14x16x32xf32> to vector<8x16x32xf32>
    %159 = vector.extract_strided_slice %5 {offsets = [0, 3, 0], sizes = [1, 1, 32], strides = [1, 1, 1]} : vector<7x7x32xf32> to vector<1x1x32xf32>
    %160 = vector.shape_cast %159 : vector<1x1x32xf32> to vector<32xf32>
    %161 = vector.shape_cast %160 : vector<32xf32> to vector<1x1x32xf32>
    %162 = vector.broadcast %161 : vector<1x1x32xf32> to vector<8x16x32xf32>
    %163 = arith.mulf %158, %162 : vector<8x16x32xf32>
    %164 = arith.addf %156, %163 : vector<8x16x32xf32>
    %165 = vector.extract_strided_slice %157 {offsets = [1, 0, 0], sizes = [8, 16, 32], strides = [1, 1, 1]} : vector<14x16x32xf32> to vector<8x16x32xf32>
    %166 = vector.extract_strided_slice %5 {offsets = [1, 3, 0], sizes = [1, 1, 32], strides = [1, 1, 1]} : vector<7x7x32xf32> to vector<1x1x32xf32>
    %167 = vector.shape_cast %166 : vector<1x1x32xf32> to vector<32xf32>
    %168 = vector.shape_cast %167 : vector<32xf32> to vector<1x1x32xf32>
    %169 = vector.broadcast %168 : vector<1x1x32xf32> to vector<8x16x32xf32>
    %170 = arith.mulf %165, %169 : vector<8x16x32xf32>
    %171 = arith.addf %164, %170 : vector<8x16x32xf32>
    %172 = vector.extract_strided_slice %157 {offsets = [2, 0, 0], sizes = [8, 16, 32], strides = [1, 1, 1]} : vector<14x16x32xf32> to vector<8x16x32xf32>
    %173 = vector.extract_strided_slice %5 {offsets = [2, 3, 0], sizes = [1, 1, 32], strides = [1, 1, 1]} : vector<7x7x32xf32> to vector<1x1x32xf32>
    %174 = vector.shape_cast %173 : vector<1x1x32xf32> to vector<32xf32>
    %175 = vector.shape_cast %174 : vector<32xf32> to vector<1x1x32xf32>
    %176 = vector.broadcast %175 : vector<1x1x32xf32> to vector<8x16x32xf32>
    %177 = arith.mulf %172, %176 : vector<8x16x32xf32>
    %178 = arith.addf %171, %177 : vector<8x16x32xf32>
    %179 = vector.extract_strided_slice %157 {offsets = [3, 0, 0], sizes = [8, 16, 32], strides = [1, 1, 1]} : vector<14x16x32xf32> to vector<8x16x32xf32>
    %180 = vector.extract_strided_slice %5 {offsets = [3, 3, 0], sizes = [1, 1, 32], strides = [1, 1, 1]} : vector<7x7x32xf32> to vector<1x1x32xf32>
    %181 = vector.shape_cast %180 : vector<1x1x32xf32> to vector<32xf32>
    %182 = vector.shape_cast %181 : vector<32xf32> to vector<1x1x32xf32>
    %183 = vector.broadcast %182 : vector<1x1x32xf32> to vector<8x16x32xf32>
    %184 = arith.mulf %179, %183 : vector<8x16x32xf32>
    %185 = arith.addf %178, %184 : vector<8x16x32xf32>
    %186 = vector.extract_strided_slice %157 {offsets = [4, 0, 0], sizes = [8, 16, 32], strides = [1, 1, 1]} : vector<14x16x32xf32> to vector<8x16x32xf32>
    %187 = vector.extract_strided_slice %5 {offsets = [4, 3, 0], sizes = [1, 1, 32], strides = [1, 1, 1]} : vector<7x7x32xf32> to vector<1x1x32xf32>
    %188 = vector.shape_cast %187 : vector<1x1x32xf32> to vector<32xf32>
    %189 = vector.shape_cast %188 : vector<32xf32> to vector<1x1x32xf32>
    %190 = vector.broadcast %189 : vector<1x1x32xf32> to vector<8x16x32xf32>
    %191 = arith.mulf %186, %190 : vector<8x16x32xf32>
    %192 = arith.addf %185, %191 : vector<8x16x32xf32>
    %193 = vector.extract_strided_slice %157 {offsets = [5, 0, 0], sizes = [8, 16, 32], strides = [1, 1, 1]} : vector<14x16x32xf32> to vector<8x16x32xf32>
    %194 = vector.extract_strided_slice %5 {offsets = [5, 3, 0], sizes = [1, 1, 32], strides = [1, 1, 1]} : vector<7x7x32xf32> to vector<1x1x32xf32>
    %195 = vector.shape_cast %194 : vector<1x1x32xf32> to vector<32xf32>
    %196 = vector.shape_cast %195 : vector<32xf32> to vector<1x1x32xf32>
    %197 = vector.broadcast %196 : vector<1x1x32xf32> to vector<8x16x32xf32>
    %198 = arith.mulf %193, %197 : vector<8x16x32xf32>
    %199 = arith.addf %192, %198 : vector<8x16x32xf32>
    %200 = vector.extract_strided_slice %157 {offsets = [6, 0, 0], sizes = [8, 16, 32], strides = [1, 1, 1]} : vector<14x16x32xf32> to vector<8x16x32xf32>
    %201 = vector.extract_strided_slice %5 {offsets = [6, 3, 0], sizes = [1, 1, 32], strides = [1, 1, 1]} : vector<7x7x32xf32> to vector<1x1x32xf32>
    %202 = vector.shape_cast %201 : vector<1x1x32xf32> to vector<32xf32>
    %203 = vector.shape_cast %202 : vector<32xf32> to vector<1x1x32xf32>
    %204 = vector.broadcast %203 : vector<1x1x32xf32> to vector<8x16x32xf32>
    %205 = arith.mulf %200, %204 : vector<8x16x32xf32>
    %206 = arith.addf %199, %205 : vector<8x16x32xf32>
    %207 = vector.extract_strided_slice %4 {offsets = [0, 4, 0], sizes = [14, 16, 32], strides = [1, 1, 1]} : vector<14x22x32xf32> to vector<14x16x32xf32>
    %208 = vector.extract_strided_slice %207 {offsets = [0, 0, 0], sizes = [8, 16, 32], strides = [1, 1, 1]} : vector<14x16x32xf32> to vector<8x16x32xf32>
    %209 = vector.extract_strided_slice %5 {offsets = [0, 4, 0], sizes = [1, 1, 32], strides = [1, 1, 1]} : vector<7x7x32xf32> to vector<1x1x32xf32>
    %210 = vector.shape_cast %209 : vector<1x1x32xf32> to vector<32xf32>
    %211 = vector.shape_cast %210 : vector<32xf32> to vector<1x1x32xf32>
    %212 = vector.broadcast %211 : vector<1x1x32xf32> to vector<8x16x32xf32>
    %213 = arith.mulf %208, %212 : vector<8x16x32xf32>
    %214 = arith.addf %206, %213 : vector<8x16x32xf32>
    %215 = vector.extract_strided_slice %207 {offsets = [1, 0, 0], sizes = [8, 16, 32], strides = [1, 1, 1]} : vector<14x16x32xf32> to vector<8x16x32xf32>
    %216 = vector.extract_strided_slice %5 {offsets = [1, 4, 0], sizes = [1, 1, 32], strides = [1, 1, 1]} : vector<7x7x32xf32> to vector<1x1x32xf32>
    %217 = vector.shape_cast %216 : vector<1x1x32xf32> to vector<32xf32>
    %218 = vector.shape_cast %217 : vector<32xf32> to vector<1x1x32xf32>
    %219 = vector.broadcast %218 : vector<1x1x32xf32> to vector<8x16x32xf32>
    %220 = arith.mulf %215, %219 : vector<8x16x32xf32>
    %221 = arith.addf %214, %220 : vector<8x16x32xf32>
    %222 = vector.extract_strided_slice %207 {offsets = [2, 0, 0], sizes = [8, 16, 32], strides = [1, 1, 1]} : vector<14x16x32xf32> to vector<8x16x32xf32>
    %223 = vector.extract_strided_slice %5 {offsets = [2, 4, 0], sizes = [1, 1, 32], strides = [1, 1, 1]} : vector<7x7x32xf32> to vector<1x1x32xf32>
    %224 = vector.shape_cast %223 : vector<1x1x32xf32> to vector<32xf32>
    %225 = vector.shape_cast %224 : vector<32xf32> to vector<1x1x32xf32>
    %226 = vector.broadcast %225 : vector<1x1x32xf32> to vector<8x16x32xf32>
    %227 = arith.mulf %222, %226 : vector<8x16x32xf32>
    %228 = arith.addf %221, %227 : vector<8x16x32xf32>
    %229 = vector.extract_strided_slice %207 {offsets = [3, 0, 0], sizes = [8, 16, 32], strides = [1, 1, 1]} : vector<14x16x32xf32> to vector<8x16x32xf32>
    %230 = vector.extract_strided_slice %5 {offsets = [3, 4, 0], sizes = [1, 1, 32], strides = [1, 1, 1]} : vector<7x7x32xf32> to vector<1x1x32xf32>
    %231 = vector.shape_cast %230 : vector<1x1x32xf32> to vector<32xf32>
    %232 = vector.shape_cast %231 : vector<32xf32> to vector<1x1x32xf32>
    %233 = vector.broadcast %232 : vector<1x1x32xf32> to vector<8x16x32xf32>
    %234 = arith.mulf %229, %233 : vector<8x16x32xf32>
    %235 = arith.addf %228, %234 : vector<8x16x32xf32>
    %236 = vector.extract_strided_slice %207 {offsets = [4, 0, 0], sizes = [8, 16, 32], strides = [1, 1, 1]} : vector<14x16x32xf32> to vector<8x16x32xf32>
    %237 = vector.extract_strided_slice %5 {offsets = [4, 4, 0], sizes = [1, 1, 32], strides = [1, 1, 1]} : vector<7x7x32xf32> to vector<1x1x32xf32>
    %238 = vector.shape_cast %237 : vector<1x1x32xf32> to vector<32xf32>
    %239 = vector.shape_cast %238 : vector<32xf32> to vector<1x1x32xf32>
    %240 = vector.broadcast %239 : vector<1x1x32xf32> to vector<8x16x32xf32>
    %241 = arith.mulf %236, %240 : vector<8x16x32xf32>
    %242 = arith.addf %235, %241 : vector<8x16x32xf32>
    %243 = vector.extract_strided_slice %207 {offsets = [5, 0, 0], sizes = [8, 16, 32], strides = [1, 1, 1]} : vector<14x16x32xf32> to vector<8x16x32xf32>
    %244 = vector.extract_strided_slice %5 {offsets = [5, 4, 0], sizes = [1, 1, 32], strides = [1, 1, 1]} : vector<7x7x32xf32> to vector<1x1x32xf32>
    %245 = vector.shape_cast %244 : vector<1x1x32xf32> to vector<32xf32>
    %246 = vector.shape_cast %245 : vector<32xf32> to vector<1x1x32xf32>
    %247 = vector.broadcast %246 : vector<1x1x32xf32> to vector<8x16x32xf32>
    %248 = arith.mulf %243, %247 : vector<8x16x32xf32>
    %249 = arith.addf %242, %248 : vector<8x16x32xf32>
    %250 = vector.extract_strided_slice %207 {offsets = [6, 0, 0], sizes = [8, 16, 32], strides = [1, 1, 1]} : vector<14x16x32xf32> to vector<8x16x32xf32>
    %251 = vector.extract_strided_slice %5 {offsets = [6, 4, 0], sizes = [1, 1, 32], strides = [1, 1, 1]} : vector<7x7x32xf32> to vector<1x1x32xf32>
    %252 = vector.shape_cast %251 : vector<1x1x32xf32> to vector<32xf32>
    %253 = vector.shape_cast %252 : vector<32xf32> to vector<1x1x32xf32>
    %254 = vector.broadcast %253 : vector<1x1x32xf32> to vector<8x16x32xf32>
    %255 = arith.mulf %250, %254 : vector<8x16x32xf32>
    %256 = arith.addf %249, %255 : vector<8x16x32xf32>
    %257 = vector.extract_strided_slice %4 {offsets = [0, 5, 0], sizes = [14, 16, 32], strides = [1, 1, 1]} : vector<14x22x32xf32> to vector<14x16x32xf32>
    %258 = vector.extract_strided_slice %257 {offsets = [0, 0, 0], sizes = [8, 16, 32], strides = [1, 1, 1]} : vector<14x16x32xf32> to vector<8x16x32xf32>
    %259 = vector.extract_strided_slice %5 {offsets = [0, 5, 0], sizes = [1, 1, 32], strides = [1, 1, 1]} : vector<7x7x32xf32> to vector<1x1x32xf32>
    %260 = vector.shape_cast %259 : vector<1x1x32xf32> to vector<32xf32>
    %261 = vector.shape_cast %260 : vector<32xf32> to vector<1x1x32xf32>
    %262 = vector.broadcast %261 : vector<1x1x32xf32> to vector<8x16x32xf32>
    %263 = arith.mulf %258, %262 : vector<8x16x32xf32>
    %264 = arith.addf %256, %263 : vector<8x16x32xf32>
    %265 = vector.extract_strided_slice %257 {offsets = [1, 0, 0], sizes = [8, 16, 32], strides = [1, 1, 1]} : vector<14x16x32xf32> to vector<8x16x32xf32>
    %266 = vector.extract_strided_slice %5 {offsets = [1, 5, 0], sizes = [1, 1, 32], strides = [1, 1, 1]} : vector<7x7x32xf32> to vector<1x1x32xf32>
    %267 = vector.shape_cast %266 : vector<1x1x32xf32> to vector<32xf32>
    %268 = vector.shape_cast %267 : vector<32xf32> to vector<1x1x32xf32>
    %269 = vector.broadcast %268 : vector<1x1x32xf32> to vector<8x16x32xf32>
    %270 = arith.mulf %265, %269 : vector<8x16x32xf32>
    %271 = arith.addf %264, %270 : vector<8x16x32xf32>
    %272 = vector.extract_strided_slice %257 {offsets = [2, 0, 0], sizes = [8, 16, 32], strides = [1, 1, 1]} : vector<14x16x32xf32> to vector<8x16x32xf32>
    %273 = vector.extract_strided_slice %5 {offsets = [2, 5, 0], sizes = [1, 1, 32], strides = [1, 1, 1]} : vector<7x7x32xf32> to vector<1x1x32xf32>
    %274 = vector.shape_cast %273 : vector<1x1x32xf32> to vector<32xf32>
    %275 = vector.shape_cast %274 : vector<32xf32> to vector<1x1x32xf32>
    %276 = vector.broadcast %275 : vector<1x1x32xf32> to vector<8x16x32xf32>
    %277 = arith.mulf %272, %276 : vector<8x16x32xf32>
    %278 = arith.addf %271, %277 : vector<8x16x32xf32>
    %279 = vector.extract_strided_slice %257 {offsets = [3, 0, 0], sizes = [8, 16, 32], strides = [1, 1, 1]} : vector<14x16x32xf32> to vector<8x16x32xf32>
    %280 = vector.extract_strided_slice %5 {offsets = [3, 5, 0], sizes = [1, 1, 32], strides = [1, 1, 1]} : vector<7x7x32xf32> to vector<1x1x32xf32>
    %281 = vector.shape_cast %280 : vector<1x1x32xf32> to vector<32xf32>
    %282 = vector.shape_cast %281 : vector<32xf32> to vector<1x1x32xf32>
    %283 = vector.broadcast %282 : vector<1x1x32xf32> to vector<8x16x32xf32>
    %284 = arith.mulf %279, %283 : vector<8x16x32xf32>
    %285 = arith.addf %278, %284 : vector<8x16x32xf32>
    %286 = vector.extract_strided_slice %257 {offsets = [4, 0, 0], sizes = [8, 16, 32], strides = [1, 1, 1]} : vector<14x16x32xf32> to vector<8x16x32xf32>
    %287 = vector.extract_strided_slice %5 {offsets = [4, 5, 0], sizes = [1, 1, 32], strides = [1, 1, 1]} : vector<7x7x32xf32> to vector<1x1x32xf32>
    %288 = vector.shape_cast %287 : vector<1x1x32xf32> to vector<32xf32>
    %289 = vector.shape_cast %288 : vector<32xf32> to vector<1x1x32xf32>
    %290 = vector.broadcast %289 : vector<1x1x32xf32> to vector<8x16x32xf32>
    %291 = arith.mulf %286, %290 : vector<8x16x32xf32>
    %292 = arith.addf %285, %291 : vector<8x16x32xf32>
    %293 = vector.extract_strided_slice %257 {offsets = [5, 0, 0], sizes = [8, 16, 32], strides = [1, 1, 1]} : vector<14x16x32xf32> to vector<8x16x32xf32>
    %294 = vector.extract_strided_slice %5 {offsets = [5, 5, 0], sizes = [1, 1, 32], strides = [1, 1, 1]} : vector<7x7x32xf32> to vector<1x1x32xf32>
    %295 = vector.shape_cast %294 : vector<1x1x32xf32> to vector<32xf32>
    %296 = vector.shape_cast %295 : vector<32xf32> to vector<1x1x32xf32>
    %297 = vector.broadcast %296 : vector<1x1x32xf32> to vector<8x16x32xf32>
    %298 = arith.mulf %293, %297 : vector<8x16x32xf32>
    %299 = arith.addf %292, %298 : vector<8x16x32xf32>
    %300 = vector.extract_strided_slice %257 {offsets = [6, 0, 0], sizes = [8, 16, 32], strides = [1, 1, 1]} : vector<14x16x32xf32> to vector<8x16x32xf32>
    %301 = vector.extract_strided_slice %5 {offsets = [6, 5, 0], sizes = [1, 1, 32], strides = [1, 1, 1]} : vector<7x7x32xf32> to vector<1x1x32xf32>
    %302 = vector.shape_cast %301 : vector<1x1x32xf32> to vector<32xf32>
    %303 = vector.shape_cast %302 : vector<32xf32> to vector<1x1x32xf32>
    %304 = vector.broadcast %303 : vector<1x1x32xf32> to vector<8x16x32xf32>
    %305 = arith.mulf %300, %304 : vector<8x16x32xf32>
    %306 = arith.addf %299, %305 : vector<8x16x32xf32>
    %307 = vector.extract_strided_slice %4 {offsets = [0, 6, 0], sizes = [14, 16, 32], strides = [1, 1, 1]} : vector<14x22x32xf32> to vector<14x16x32xf32>
    %308 = vector.extract_strided_slice %307 {offsets = [0, 0, 0], sizes = [8, 16, 32], strides = [1, 1, 1]} : vector<14x16x32xf32> to vector<8x16x32xf32>
    %309 = vector.extract_strided_slice %5 {offsets = [0, 6, 0], sizes = [1, 1, 32], strides = [1, 1, 1]} : vector<7x7x32xf32> to vector<1x1x32xf32>
    %310 = vector.shape_cast %309 : vector<1x1x32xf32> to vector<32xf32>
    %311 = vector.shape_cast %310 : vector<32xf32> to vector<1x1x32xf32>
    %312 = vector.broadcast %311 : vector<1x1x32xf32> to vector<8x16x32xf32>
    %313 = arith.mulf %308, %312 : vector<8x16x32xf32>
    %314 = arith.addf %306, %313 : vector<8x16x32xf32>
    %315 = vector.extract_strided_slice %307 {offsets = [1, 0, 0], sizes = [8, 16, 32], strides = [1, 1, 1]} : vector<14x16x32xf32> to vector<8x16x32xf32>
    %316 = vector.extract_strided_slice %5 {offsets = [1, 6, 0], sizes = [1, 1, 32], strides = [1, 1, 1]} : vector<7x7x32xf32> to vector<1x1x32xf32>
    %317 = vector.shape_cast %316 : vector<1x1x32xf32> to vector<32xf32>
    %318 = vector.shape_cast %317 : vector<32xf32> to vector<1x1x32xf32>
    %319 = vector.broadcast %318 : vector<1x1x32xf32> to vector<8x16x32xf32>
    %320 = arith.mulf %315, %319 : vector<8x16x32xf32>
    %321 = arith.addf %314, %320 : vector<8x16x32xf32>
    %322 = vector.extract_strided_slice %307 {offsets = [2, 0, 0], sizes = [8, 16, 32], strides = [1, 1, 1]} : vector<14x16x32xf32> to vector<8x16x32xf32>
    %323 = vector.extract_strided_slice %5 {offsets = [2, 6, 0], sizes = [1, 1, 32], strides = [1, 1, 1]} : vector<7x7x32xf32> to vector<1x1x32xf32>
    %324 = vector.shape_cast %323 : vector<1x1x32xf32> to vector<32xf32>
    %325 = vector.shape_cast %324 : vector<32xf32> to vector<1x1x32xf32>
    %326 = vector.broadcast %325 : vector<1x1x32xf32> to vector<8x16x32xf32>
    %327 = arith.mulf %322, %326 : vector<8x16x32xf32>
    %328 = arith.addf %321, %327 : vector<8x16x32xf32>
    %329 = vector.extract_strided_slice %307 {offsets = [3, 0, 0], sizes = [8, 16, 32], strides = [1, 1, 1]} : vector<14x16x32xf32> to vector<8x16x32xf32>
    %330 = vector.extract_strided_slice %5 {offsets = [3, 6, 0], sizes = [1, 1, 32], strides = [1, 1, 1]} : vector<7x7x32xf32> to vector<1x1x32xf32>
    %331 = vector.shape_cast %330 : vector<1x1x32xf32> to vector<32xf32>
    %332 = vector.shape_cast %331 : vector<32xf32> to vector<1x1x32xf32>
    %333 = vector.broadcast %332 : vector<1x1x32xf32> to vector<8x16x32xf32>
    %334 = arith.mulf %329, %333 : vector<8x16x32xf32>
    %335 = arith.addf %328, %334 : vector<8x16x32xf32>
    %336 = vector.extract_strided_slice %307 {offsets = [4, 0, 0], sizes = [8, 16, 32], strides = [1, 1, 1]} : vector<14x16x32xf32> to vector<8x16x32xf32>
    %337 = vector.extract_strided_slice %5 {offsets = [4, 6, 0], sizes = [1, 1, 32], strides = [1, 1, 1]} : vector<7x7x32xf32> to vector<1x1x32xf32>
    %338 = vector.shape_cast %337 : vector<1x1x32xf32> to vector<32xf32>
    %339 = vector.shape_cast %338 : vector<32xf32> to vector<1x1x32xf32>
    %340 = vector.broadcast %339 : vector<1x1x32xf32> to vector<8x16x32xf32>
    %341 = arith.mulf %336, %340 : vector<8x16x32xf32>
    %342 = arith.addf %335, %341 : vector<8x16x32xf32>
    %343 = vector.extract_strided_slice %307 {offsets = [5, 0, 0], sizes = [8, 16, 32], strides = [1, 1, 1]} : vector<14x16x32xf32> to vector<8x16x32xf32>
    %344 = vector.extract_strided_slice %5 {offsets = [5, 6, 0], sizes = [1, 1, 32], strides = [1, 1, 1]} : vector<7x7x32xf32> to vector<1x1x32xf32>
    %345 = vector.shape_cast %344 : vector<1x1x32xf32> to vector<32xf32>
    %346 = vector.shape_cast %345 : vector<32xf32> to vector<1x1x32xf32>
    %347 = vector.broadcast %346 : vector<1x1x32xf32> to vector<8x16x32xf32>
    %348 = arith.mulf %343, %347 : vector<8x16x32xf32>
    %349 = arith.addf %342, %348 : vector<8x16x32xf32>
    %350 = vector.extract_strided_slice %307 {offsets = [6, 0, 0], sizes = [8, 16, 32], strides = [1, 1, 1]} : vector<14x16x32xf32> to vector<8x16x32xf32>
    %351 = vector.extract_strided_slice %5 {offsets = [6, 6, 0], sizes = [1, 1, 32], strides = [1, 1, 1]} : vector<7x7x32xf32> to vector<1x1x32xf32>
    %352 = vector.shape_cast %351 : vector<1x1x32xf32> to vector<32xf32>
    %353 = vector.shape_cast %352 : vector<32xf32> to vector<1x1x32xf32>
    %354 = vector.broadcast %353 : vector<1x1x32xf32> to vector<8x16x32xf32>
    %355 = arith.mulf %350, %354 : vector<8x16x32xf32>
    %356 = arith.addf %349, %355 : vector<8x16x32xf32>
    %c0_5 = arith.constant 0 : index
    %c0_6 = arith.constant 0 : index
    %357 = vector.load %arg4[%c0_5, %c0_6] : memref<1x32xf32, #tpu.memory_space<vmem>>, vector<1x32xf32>
    %358 = vector.shape_cast %357 : vector<1x32xf32> to vector<1x1x32xf32>
    %359 = vector.broadcast %358 : vector<1x1x32xf32> to vector<8x16x32xf32>
    %360 = arith.addf %356, %359 : vector<8x16x32xf32>
    %361 = vector.shape_cast %360 : vector<8x16x32xf32> to vector<128x32xf32>
    %cst_7 = arith.constant dense<0.000000e+00> : vector<128xf32>
    %362 = vector.multi_reduction <add>, %361, %cst_7 [1] : vector<128x32xf32> to vector<128xf32>
    %363 = vector.shape_cast %362 : vector<128xf32> to vector<128x1xf32>
    %cst_8 = arith.constant 3.200000e+01 : f32
    %364 = vector.broadcast %cst_8 : f32 to vector<128x1xf32>
    %365 = arith.divf %363, %364 : vector<128x1xf32>
    %366 = vector.broadcast %365 : vector<128x1xf32> to vector<128x32xf32>
    %367 = arith.subf %361, %366 : vector<128x32xf32>
    %368 = arith.mulf %367, %367 : vector<128x32xf32>
    %cst_9 = arith.constant dense<0.000000e+00> : vector<128xf32>
    %369 = vector.multi_reduction <add>, %368, %cst_9 [1] : vector<128x32xf32> to vector<128xf32>
    %370 = vector.shape_cast %369 : vector<128xf32> to vector<128x1xf32>
    %cst_10 = arith.constant 3.200000e+01 : f32
    %371 = vector.broadcast %cst_10 : f32 to vector<128x1xf32>
    %372 = arith.divf %370, %371 : vector<128x1xf32>
    %cst_11 = arith.constant 9.99999997E-7 : f32
    %373 = vector.broadcast %cst_11 : f32 to vector<128x1xf32>
    %374 = arith.addf %372, %373 : vector<128x1xf32>
    %375 = math.rsqrt %374 : vector<128x1xf32>
    %376 = vector.broadcast %375 : vector<128x1xf32> to vector<128x32xf32>
    %377 = arith.mulf %367, %376 : vector<128x32xf32>
    %c0_12 = arith.constant 0 : index
    %c0_13 = arith.constant 0 : index
    %378 = vector.load %arg5[%c0_12, %c0_13] : memref<1x32xf32, #tpu.memory_space<vmem>>, vector<1x32xf32>
    %379 = vector.broadcast %378 : vector<1x32xf32> to vector<128x32xf32>
    %380 = arith.mulf %377, %379 : vector<128x32xf32>
    %c0_14 = arith.constant 0 : index
    %c0_15 = arith.constant 0 : index
    %381 = vector.load %arg6[%c0_14, %c0_15] : memref<1x32xf32, #tpu.memory_space<vmem>>, vector<1x32xf32>
    %382 = vector.broadcast %381 : vector<1x32xf32> to vector<128x32xf32>
    %383 = arith.addf %380, %382 : vector<128x32xf32>
    %c0_16 = arith.constant 0 : index
    %c0_17 = arith.constant 0 : index
    %384 = vector.load %arg7[%c0_16, %c0_17] : memref<32x128xf32, #tpu.memory_space<vmem>>, vector<32x128xf32>
    %cst_18 = arith.constant dense<0.000000e+00> : vector<128x128xf32>
    %385 = tpu.matmul %383, %384, %cst_18 {dimension_numbers = #tpu.dot_dimension_numbers<[1], [0], [0], [1], [0, 0, 1, 1], [], []>} : vector<128x32xf32>, vector<32x128xf32>, vector<128x128xf32> -> vector<128x128xf32>
    %c0_19 = arith.constant 0 : index
    %c0_20 = arith.constant 0 : index
    %386 = vector.load %arg8[%c0_19, %c0_20] : memref<1x128xf32, #tpu.memory_space<vmem>>, vector<1x128xf32>
    %387 = vector.broadcast %386 : vector<1x128xf32> to vector<128x128xf32>
    %388 = arith.addf %385, %387 : vector<128x128xf32>
    %cst_21 = arith.constant 5.000000e-01 : f32
    %389 = vector.broadcast %cst_21 : f32 to vector<128x128xf32>
    %390 = arith.mulf %389, %388 : vector<128x128xf32>
    %cst_22 = arith.constant 0.707106769 : f32
    %391 = vector.broadcast %cst_22 : f32 to vector<128x128xf32>
    %392 = arith.mulf %388, %391 : vector<128x128xf32>
    %393 = math.erf %392 : vector<128x128xf32>
    %cst_23 = arith.constant 1.000000e+00 : f32
    %394 = vector.broadcast %cst_23 : f32 to vector<128x128xf32>
    %395 = arith.addf %394, %393 : vector<128x128xf32>
    %396 = arith.mulf %390, %395 : vector<128x128xf32>
    %c0_24 = arith.constant 0 : index
    %c0_25 = arith.constant 0 : index
    %397 = vector.load %arg9[%c0_24, %c0_25] : memref<128x32xf32, #tpu.memory_space<vmem>>, vector<128x32xf32>
    %cst_26 = arith.constant dense<0.000000e+00> : vector<128x32xf32>
    %398 = tpu.matmul %396, %397, %cst_26 {dimension_numbers = #tpu.dot_dimension_numbers<[1], [0], [0], [1], [0, 0, 1, 1], [], []>} : vector<128x128xf32>, vector<128x32xf32>, vector<128x32xf32> -> vector<128x32xf32>
    %c0_27 = arith.constant 0 : index
    %c0_28 = arith.constant 0 : index
    %399 = vector.load %arg10[%c0_27, %c0_28] : memref<1x32xf32, #tpu.memory_space<vmem>>, vector<1x32xf32>
    %400 = vector.broadcast %399 : vector<1x32xf32> to vector<128x32xf32>
    %401 = arith.addf %398, %400 : vector<128x32xf32>
    %c0_29 = arith.constant 0 : index
    %c0_30 = arith.constant 0 : index
    %402 = vector.load %arg11[%c0_29, %c0_30] : memref<1x32xf32, #tpu.memory_space<vmem>>, vector<1x32xf32>
    %403 = vector.broadcast %402 : vector<1x32xf32> to vector<128x32xf32>
    %404 = arith.mulf %401, %403 : vector<128x32xf32>
    %405 = vector.extract_strided_slice %4 {offsets = [3, 3, 0], sizes = [8, 16, 32], strides = [1, 1, 1]} : vector<14x22x32xf32> to vector<8x16x32xf32>
    %406 = vector.shape_cast %404 : vector<128x32xf32> to vector<8x16x32xf32>
    %407 = arith.addf %405, %406 : vector<8x16x32xf32>
    %c0_31 = arith.constant 0 : index
    %c0_32 = arith.constant 0 : index
    %c0_33 = arith.constant 0 : index
    %c0_34 = arith.constant 0 : index
    %408 = vector.load %arg12[%c0_31, %c0_32, %c0_33, %c0_34] : memref<1x8x16x32xf32, #tpu.memory_space<vmem>>, vector<1x8x16x32xf32>
    %409 = vector.shape_cast %408 : vector<1x8x16x32xf32> to vector<8x16x32xf32>
    %410 = vector.shape_cast %407 : vector<8x16x32xf32> to vector<1x8x16x32xf32>
    tpu.vector_store %arg12[%c0_31, %c0_32, %c0_33, %c0_34], %410 {strides = array<i32>} : memref<1x8x16x32xf32, #tpu.memory_space<vmem>>, vector<1x8x16x32xf32>,
    return
  }
  func.func @transform_0(%arg0: i32, %arg1: i32) -> (i32, i32, i32, i32) {
    %c0_i32 = arith.constant 0 : i32
    %c0_i32_0 = arith.constant 0 : i32
    %c0_i32_1 = arith.constant 0 : i32
    %c0_i32_2 = arith.constant 0 : i32
    return %arg0, %c0_i32, %c0_i32_0, %c0_i32_1 : i32, i32, i32, i32
  }
  func.func @transform_1(%arg0: i32, %arg1: i32) -> (i32, i32, i32) {
    %c0_i32 = arith.constant 0 : i32
    %c0_i32_0 = arith.constant 0 : i32
    %c0_i32_1 = arith.constant 0 : i32
    %c0_i32_2 = arith.constant 0 : i32
    return %c0_i32, %c0_i32_0, %c0_i32_1 : i32, i32, i32
  }
  func.func @transform_2(%arg0: i32, %arg1: i32) -> (i32, i32) {
    %c0_i32 = arith.constant 0 : i32
    %c0_i32_0 = arith.constant 0 : i32
    %c0_i32_1 = arith.constant 0 : i32
    return %c0_i32, %c0_i32_0 : i32, i32
  }
  func.func @transform_3(%arg0: i32, %arg1: i32) -> (i32, i32) {
    %c0_i32 = arith.constant 0 : i32
    %c0_i32_0 = arith.constant 0 : i32
    %c0_i32_1 = arith.constant 0 : i32
    return %c0_i32, %c0_i32_0 : i32, i32
  }
  func.func @transform_4(%arg0: i32, %arg1: i32) -> (i32, i32) {
    %c0_i32 = arith.constant 0 : i32
    %c0_i32_0 = arith.constant 0 : i32
    %c0_i32_1 = arith.constant 0 : i32
    return %c0_i32, %c0_i32_0 : i32, i32
  }
  func.func @transform_5(%arg0: i32, %arg1: i32) -> (i32, i32) {
    %c0_i32 = arith.constant 0 : i32
    %c0_i32_0 = arith.constant 0 : i32
    %c0_i32_1 = arith.constant 0 : i32
    return %c0_i32, %c0_i32_0 : i32, i32
  }
  func.func @transform_6(%arg0: i32, %arg1: i32) -> (i32, i32) {
    %c0_i32 = arith.constant 0 : i32
    %c0_i32_0 = arith.constant 0 : i32
    %c0_i32_1 = arith.constant 0 : i32
    return %c0_i32, %c0_i32_0 : i32, i32
  }
  func.func @transform_7(%arg0: i32, %arg1: i32) -> (i32, i32) {
    %c0_i32 = arith.constant 0 : i32
    %c0_i32_0 = arith.constant 0 : i32
    %c0_i32_1 = arith.constant 0 : i32
    return %c0_i32, %c0_i32_0 : i32, i32
  }
  func.func @transform_8(%arg0: i32, %arg1: i32) -> (i32, i32) {
    %c0_i32 = arith.constant 0 : i32
    %c0_i32_0 = arith.constant 0 : i32
    %c0_i32_1 = arith.constant 0 : i32
    return %c0_i32, %c0_i32_0 : i32, i32
  }
  func.func @transform_9(%arg0: i32, %arg1: i32) -> (i32, i32) {
    %c0_i32 = arith.constant 0 : i32
    %c0_i32_0 = arith.constant 0 : i32
    %c0_i32_1 = arith.constant 0 : i32
    return %c0_i32, %c0_i32_0 : i32, i32
  }
  func.func @transform_10(%arg0: i32, %arg1: i32) -> (i32, i32, i32, i32) {
    %c0_i32 = arith.constant 0 : i32
    %c0_i32_0 = arith.constant 0 : i32
    %c0_i32_1 = arith.constant 0 : i32
    return %arg0, %arg1, %c0_i32, %c0_i32_0 : i32, i32, i32, i32
  }
}

</mosaic_0001>

<llo_original>
// kernel: tpu_custom_call.1
$region0: #{tpu_custom_call.1}
  #allocation0 [shape = 'u32[]', space=smem, size = 0x4, offset = 0x4, fixed_abs, tag = 'smem constant byte address 0x4 - core index']
  #allocation1 [shape = 'u32[144,128]{1,0:T(1,128)}', space=vmem, size = 0x12000, scoped, tag = 'internal scratch']
  %s0 = inlined_call_operand.hbm [shape: f32[2,22,22,32], index: 0, kind: input, shape index: {}]
  %s1 = inlined_call_operand.hbm [shape: f32[7,7,32], index: 1, kind: input, shape index: {}]
  %s2 = inlined_call_operand.hbm [shape: f32[1,32], index: 2, kind: input, shape index: {}]
  %s3 = inlined_call_operand.hbm [shape: f32[1,32], index: 3, kind: input, shape index: {}]
  %s4 = inlined_call_operand.hbm [shape: f32[1,32], index: 4, kind: input, shape index: {}]
  %s5 = inlined_call_operand.hbm [shape: f32[32,128], index: 5, kind: input, shape index: {}]
  %s6 = inlined_call_operand.hbm [shape: f32[1,128], index: 6, kind: input, shape index: {}]
  %s7 = inlined_call_operand.hbm [shape: f32[128,32], index: 7, kind: input, shape index: {}]
  %s8 = inlined_call_operand.hbm [shape: f32[1,32], index: 8, kind: input, shape index: {}]
  %s9 = inlined_call_operand.hbm [shape: f32[1,32], index: 9, kind: input, shape index: {}]
  %s10 = inlined_call_operand.hbm [shape: f32[2,16,16,32], index: 10, kind: output, shape index: {}]
  %s11 = sld [smem:[#allocation0]]
  $region113: #{tpu_custom_call.1} parent=0
    _
  %s13 = ssub.s32 1, %s11
  %s14 = scalar_select 0, %s13, %s11
  $region1: #{tpu_custom_call.1} parent=0
    #allocation2 [shape = 'u8[540672]{0}', space=vmem, size = 0x84000, scoped, tag = 'input window, operand 0']
    #allocation3 [shape = 's32[2]{0}', space=sflag, size = 0x8, scoped, tag = 'scoped memory for tpu_custom_call.1']
    #allocation4 [shape = 's32[2]{0}', space=sflag, size = 0x8, scoped, tag = 'scoped memory for tpu_custom_call.1']
    #allocation5 [shape = 'u8[28672]{0}', space=vmem, size = 0x7000, scoped, tag = 'input window, operand 1, single buffered']
    #allocation6 [shape = 's32[1]{0}', space=sflag, size = 0x4, scoped, tag = 'scoped memory for tpu_custom_call.1']
    #allocation7 [shape = 'u8[512]{0}', space=vmem, size = 0x400, scoped, tag = 'input window, operand 2, single buffered']
    #allocation8 [shape = 'u8[512]{0}', space=vmem, size = 0x400, scoped, tag = 'input window, operand 3, single buffered']
    #allocation9 [shape = 's32[1]{0}', space=sflag, size = 0x4, scoped, tag = 'scoped memory for tpu_custom_call.1']
    #allocation10 [shape = 'u8[512]{0}', space=vmem, size = 0x400, scoped, tag = 'input window, operand 4, single buffered']
    #allocation11 [shape = 'u8[16384]{0}', space=vmem, size = 0x4000, scoped, tag = 'input window, operand 5, single buffered']
    #allocation12 [shape = 's32[1]{0}', space=sflag, size = 0x4, scoped, tag = 'scoped memory for tpu_custom_call.1']
    #allocation13 [shape = 'u8[512]{0}', space=vmem, size = 0x400, scoped, tag = 'input window, operand 6, single buffered']
    #allocation14 [shape = 'u8[65536]{0}', space=vmem, size = 0x10000, scoped, tag = 'input window, operand 7, single buffered']
    #allocation15 [shape = 's32[1]{0}', space=sflag, size = 0x4, scoped, tag = 'scoped memory for tpu_custom_call.1']
    #allocation16 [shape = 'u8[512]{0}', space=vmem, size = 0x400, scoped, tag = 'input window, operand 8, single buffered']
    #allocation17 [shape = 'u8[512]{0}', space=vmem, size = 0x400, scoped, tag = 'input window, operand 9, single buffered']
    #allocation18 [shape = 's32[1]{0}', space=sflag, size = 0x4, scoped, tag = 'scoped memory for tpu_custom_call.1']
    #allocation19 [shape = 'u8[131072]{0}', space=vmem, size = 0x20000, scoped, tag = 'output window, operand 0']
    %15 = vsyncpa [#allocation3], 0
    %s16 = scalar_lea.sflag [#allocation3], 1
    %17 = vsyncpa %s16, 0
    %18 = vsyncpa [#allocation6], 0
    %19 = vsyncpa [#allocation9], 0
    %20 = vsyncpa [#allocation12], 0
    %21 = vsyncpa [#allocation15], 0
    %22 = vsyncpa [#allocation18], 0
    %23 = vsyncpa [#allocation4], 0
    %s24 = scalar_lea.sflag [#allocation4], 1
    %25 = vsyncpa %s24, 0
    loop: start=0, step=1, limit=6
    $region2: #{tpu_custom_call.1} parent=1 // loop_pre_header
      _
    $region3: #{tpu_custom_call.1} parent=1 // loop_header
      %s27 = sphi 0, %s31
      %p28 = scmp.ge.s32.totalorder %s27, 6
      %s34 = sphi 0, %s46
      %s35 = sphi 0, %s42
      %s36 = sphi 0, %s34
      %s37 = sphi 0, %s35
      %s38 = sphi 0, %s36
      %s39 = sphi 0, %s37
      %s49 = sphi 0, %s51
      %s52 = sphi 0, %s49
      %s53 = sphi 0, %s52
      %s69 = sphi 0, %s53
      %s73 = sphi 0, %s73
      %s75 = sphi 0, %s73
      %s76 = sphi 0, %s75
      %s90 = sphi 0, %s76
      %s94 = sphi 0, %s94
      %s96 = sphi 0, %s94
      %s97 = sphi 0, %s96
      %s111 = sphi 0, %s97
      %s115 = sphi 0, %s115
      %s117 = sphi 0, %s115
      %s118 = sphi 0, %s117
      %s132 = sphi 0, %s118
      %s136 = sphi 0, %s136
      %s138 = sphi 0, %s136
      %s139 = sphi 0, %s138
      %s153 = sphi 0, %s139
      %s157 = sphi 0, %s157
      %s159 = sphi 0, %s157
      %s160 = sphi 0, %s159
      %s174 = sphi 0, %s160
      %s178 = sphi 0, %s178
      %s180 = sphi 0, %s178
      %s181 = sphi 0, %s180
      %s195 = sphi 0, %s181
      %s199 = sphi 0, %s199
      %s201 = sphi 0, %s199
      %s202 = sphi 0, %s201
      %s216 = sphi 0, %s202
      %s220 = sphi 0, %s220
      %s222 = sphi 0, %s220
      %s223 = sphi 0, %s222
      %s237 = sphi 0, %s223
      %s241 = sphi 0, %s241
      %s243 = sphi 0, %s241
      %s244 = sphi 0, %s243
      %s258 = sphi 0, %s244
      %s266 = sphi 0, %s268
      %s269 = sphi 0, %s266
      %s270 = sphi 0, %s269
      %s286 = sphi 0, %s270
    $region4: #{tpu_custom_call.1} parent=1 // loop_header_branch
      %30 = sbr.rel (%p28) target = $region8
    $region5: #{tpu_custom_call.1} parent=1 // loop_body
      %s32 = ssub.s32 %s27, 1
      %s33 = ssub.s32 %s27, 2
      %s40 = sadd.s32 1, %s35
      %p41 = scmp.ge.s32.totalorder %s40, 2
      %s42 = scalar_select %p41, 0, %s40
      %s43 = sadd.s32 1, %s34
      %s44 = scalar_select %p41, %s43, %s34
      %p45 = scmp.ge.s32.totalorder %s44, 2
      %s46 = scalar_select %p45, 0, %s44
      %s47 = ssub.s32 %s34, %s46
      %p48 = scmp.eq.s32.totalorder %s47, 0
      %s50 = sadd.s32 %s49, 1
      %s51 = scalar_select %p48, %s49, %s50
      %p54 = pneg %p48
      %p55 = scmp.eq.s32.totalorder %s27, 3
      %p56 = por %p54, %p55
      %p57 = scmp.ne.s32.totalorder %s49, %s52
      %p58 = scmp.eq.s32.totalorder %s27, 0
      %p59 = por %p57, %p58
      %p60 = scmp.ne.s32.totalorder %s49, %s52
      %p61 = scmp.eq.s32.totalorder %s32, 3
      %p62 = por %p60, %p61
      %p63 = scmp.ne.s32.totalorder %s52, %s53
      %p64 = scmp.eq.s32.totalorder %s32, 0
      %p65 = por %p63, %p64
      %p66 = scmp.ne.s32.totalorder %s52, %s53
      %p67 = scmp.eq.s32.totalorder %s33, 3
      %p68 = por %p66, %p67
      %p70 = scmp.ne.s32.totalorder %s53, %s69
      %p71 = scmp.eq.s32.totalorder %s33, 0
      %p72 = por %p70, %p71
      %s74 = sadd.s32 %s73, 1
      %p77 = scmp.eq.s32.totalorder %s27, 3
      %p78 = scmp.ne.s32.totalorder %s73, %s75
      %p79 = scmp.eq.s32.totalorder %s27, 0
      %p80 = por %p78, %p79
      %p81 = scmp.ne.s32.totalorder %s73, %s75
      %p82 = scmp.eq.s32.totalorder %s32, 3
      %p83 = por %p81, %p82
      %p84 = scmp.ne.s32.totalorder %s75, %s76
      %p85 = scmp.eq.s32.totalorder %s32, 0
      %p86 = por %p84, %p85
      %p87 = scmp.ne.s32.totalorder %s75, %s76
      %p88 = scmp.eq.s32.totalorder %s33, 3
      %p89 = por %p87, %p88
      %p91 = scmp.ne.s32.totalorder %s76, %s90
      %p92 = scmp.eq.s32.totalorder %s33, 0
      %p93 = por %p91, %p92
      %s95 = sadd.s32 %s94, 1
      %p98 = scmp.eq.s32.totalorder %s27, 3
      %p99 = scmp.ne.s32.totalorder %s94, %s96
      %p100 = scmp.eq.s32.totalorder %s27, 0
      %p101 = por %p99, %p100
      %p102 = scmp.ne.s32.totalorder %s94, %s96
      %p103 = scmp.eq.s32.totalorder %s32, 3
      %p104 = por %p102, %p103
      %p105 = scmp.ne.s32.totalorder %s96, %s97
      %p106 = scmp.eq.s32.totalorder %s32, 0
      %p107 = por %p105, %p106
      %p108 = scmp.ne.s32.totalorder %s96, %s97
      %p109 = scmp.eq.s32.totalorder %s33, 3
      %p110 = por %p108, %p109
      %p112 = scmp.ne.s32.totalorder %s97, %s111
      %p113 = scmp.eq.s32.totalorder %s33, 0
      %p114 = por %p112, %p113
      %s116 = sadd.s32 %s115, 1
      %p119 = scmp.eq.s32.totalorder %s27, 3
      %p120 = scmp.ne.s32.totalorder %s115, %s117
      %p121 = scmp.eq.s32.totalorder %s27, 0
      %p122 = por %p120, %p121
      %p123 = scmp.ne.s32.totalorder %s115, %s117
      %p124 = scmp.eq.s32.totalorder %s32, 3
      %p125 = por %p123, %p124
      %p126 = scmp.ne.s32.totalorder %s117, %s118
      %p127 = scmp.eq.s32.totalorder %s32, 0
      %p128 = por %p126, %p127
      %p129 = scmp.ne.s32.totalorder %s117, %s118
      %p130 = scmp.eq.s32.totalorder %s33, 3
      %p131 = por %p129, %p130
      %p133 = scmp.ne.s32.totalorder %s118, %s132
      %p134 = scmp.eq.s32.totalorder %s33, 0
      %p135 = por %p133, %p134
      %s137 = sadd.s32 %s136, 1
      %p140 = scmp.eq.s32.totalorder %s27, 3
      %p141 = scmp.ne.s32.totalorder %s136, %s138
      %p142 = scmp.eq.s32.totalorder %s27, 0
      %p143 = por %p141, %p142
      %p144 = scmp.ne.s32.totalorder %s136, %s138
      %p145 = scmp.eq.s32.totalorder %s32, 3
      %p146 = por %p144, %p145
      %p147 = scmp.ne.s32.totalorder %s138, %s139
      %p148 = scmp.eq.s32.totalorder %s32, 0
      %p149 = por %p147, %p148
      %p150 = scmp.ne.s32.totalorder %s138, %s139
      %p151 = scmp.eq.s32.totalorder %s33, 3
      %p152 = por %p150, %p151
      %p154 = scmp.ne.s32.totalorder %s139, %s153
      %p155 = scmp.eq.s32.totalorder %s33, 0
      %p156 = por %p154, %p155
      %s158 = sadd.s32 %s157, 1
      %p161 = scmp.eq.s32.totalorder %s27, 3
      %p162 = scmp.ne.s32.totalorder %s157, %s159
      %p163 = scmp.eq.s32.totalorder %s27, 0
      %p164 = por %p162, %p163
      %p165 = scmp.ne.s32.totalorder %s157, %s159
      %p166 = scmp.eq.s32.totalorder %s32, 3
      %p167 = por %p165, %p166
      %p168 = scmp.ne.s32.totalorder %s159, %s160
      %p169 = scmp.eq.s32.totalorder %s32, 0
      %p170 = por %p168, %p169
      %p171 = scmp.ne.s32.totalorder %s159, %s160
      %p172 = scmp.eq.s32.totalorder %s33, 3
      %p173 = por %p171, %p172
      %p175 = scmp.ne.s32.totalorder %s160, %s174
      %p176 = scmp.eq.s32.totalorder %s33, 0
      %p177 = por %p175, %p176
      %s179 = sadd.s32 %s178, 1
      %p182 = scmp.eq.s32.totalorder %s27, 3
      %p183 = scmp.ne.s32.totalorder %s178, %s180
      %p184 = scmp.eq.s32.totalorder %s27, 0
      %p185 = por %p183, %p184
      %p186 = scmp.ne.s32.totalorder %s178, %s180
      %p187 = scmp.eq.s32.totalorder %s32, 3
      %p188 = por %p186, %p187
      %p189 = scmp.ne.s32.totalorder %s180, %s181
      %p190 = scmp.eq.s32.totalorder %s32, 0
      %p191 = por %p189, %p190
      %p192 = scmp.ne.s32.totalorder %s180, %s181
      %p193 = scmp.eq.s32.totalorder %s33, 3
      %p194 = por %p192, %p193
      %p196 = scmp.ne.s32.totalorder %s181, %s195
      %p197 = scmp.eq.s32.totalorder %s33, 0
      %p198 = por %p196, %p197
      %s200 = sadd.s32 %s199, 1
      %p203 = scmp.eq.s32.totalorder %s27, 3
      %p204 = scmp.ne.s32.totalorder %s199, %s201
      %p205 = scmp.eq.s32.totalorder %s27, 0
      %p206 = por %p204, %p205
      %p207 = scmp.ne.s32.totalorder %s199, %s201
      %p208 = scmp.eq.s32.totalorder %s32, 3
      %p209 = por %p207, %p208
      %p210 = scmp.ne.s32.totalorder %s201, %s202
      %p211 = scmp.eq.s32.totalorder %s32, 0
      %p212 = por %p210, %p211
      %p213 = scmp.ne.s32.totalorder %s201, %s202
      %p214 = scmp.eq.s32.totalorder %s33, 3
      %p215 = por %p213, %p214
      %p217 = scmp.ne.s32.totalorder %s202, %s216
      %p218 = scmp.eq.s32.totalorder %s33, 0
      %p219 = por %p217, %p218
      %s221 = sadd.s32 %s220, 1
      %p224 = scmp.eq.s32.totalorder %s27, 3
      %p225 = scmp.ne.s32.totalorder %s220, %s222
      %p226 = scmp.eq.s32.totalorder %s27, 0
      %p227 = por %p225, %p226
      %p228 = scmp.ne.s32.totalorder %s220, %s222
      %p229 = scmp.eq.s32.totalorder %s32, 3
      %p230 = por %p228, %p229
      %p231 = scmp.ne.s32.totalorder %s222, %s223
      %p232 = scmp.eq.s32.totalorder %s32, 0
      %p233 = por %p231, %p232
      %p234 = scmp.ne.s32.totalorder %s222, %s223
      %p235 = scmp.eq.s32.totalorder %s33, 3
      %p236 = por %p234, %p235
      %p238 = scmp.ne.s32.totalorder %s223, %s237
      %p239 = scmp.eq.s32.totalorder %s33, 0
      %p240 = por %p238, %p239
      %s242 = sadd.s32 %s241, 1
      %p245 = scmp.eq.s32.totalorder %s27, 3
      %p246 = scmp.ne.s32.totalorder %s241, %s243
      %p247 = scmp.eq.s32.totalorder %s27, 0
      %p248 = por %p246, %p247
      %p249 = scmp.ne.s32.totalorder %s241, %s243
      %p250 = scmp.eq.s32.totalorder %s32, 3
      %p251 = por %p249, %p250
      %p252 = scmp.ne.s32.totalorder %s243, %s244
      %p253 = scmp.eq.s32.totalorder %s32, 0
      %p254 = por %p252, %p253
      %p255 = scmp.ne.s32.totalorder %s243, %s244
      %p256 = scmp.eq.s32.totalorder %s33, 3
      %p257 = por %p255, %p256
      %p259 = scmp.ne.s32.totalorder %s244, %s258
      %p260 = scmp.eq.s32.totalorder %s33, 0
      %p261 = por %p259, %p260
      %s262 = ssub.s32 %s34, %s46
      %s263 = ssub.s32 %s35, %s42
      %s264 = sor.u32 %s262, %s263
      %p265 = scmp.eq.s32.totalorder %s264, 0
      %s267 = sadd.s32 %s266, 1
      %s268 = scalar_select %p265, %s266, %s267
      %p271 = pneg %p265
      %p272 = scmp.eq.s32.totalorder %s27, 3
      %p273 = por %p271, %p272
      %p274 = scmp.ne.s32.totalorder %s266, %s269
      %p275 = scmp.eq.s32.totalorder %s27, 0
      %p276 = por %p274, %p275
      %p277 = scmp.ne.s32.totalorder %s266, %s269
      %p278 = scmp.eq.s32.totalorder %s32, 3
      %p279 = por %p277, %p278
      %p280 = scmp.ne.s32.totalorder %s269, %s270
      %p281 = scmp.eq.s32.totalorder %s32, 0
      %p282 = por %p280, %p281
      %p283 = scmp.ne.s32.totalorder %s269, %s270
      %p284 = scmp.eq.s32.totalorder %s33, 3
      %p285 = por %p283, %p284
      %p287 = scmp.ne.s32.totalorder %s270, %s286
      %p288 = scmp.eq.s32.totalorder %s33, 0
      %p289 = por %p287, %p288
      %p290 = scmp.le.s32.totalorder 1, %s27
      %p291 = scmp.lt.s32.totalorder %s27, 5
      %p292 = pnand %p290, %p291
      %p293 = pneg %p292
      // Predicated region
      $region9: #{tpu_custom_call.1} parent=5 // pred_check
        _
      $region10: #{tpu_custom_call.1} parent=5 // pred_check_branch
        %295 = sbr.rel (%p292) target = $region12
      $region11: #{tpu_custom_call.1} parent=5 // pred_region
        %s296 = ssub.s32 %s27, 1
        // Predicated region
        $region13: #{tpu_custom_call.1} parent=11 // pred_check
          %p297 = pneg %p86
        $region14: #{tpu_custom_call.1} parent=11 // pred_check_branch
          %299 = sbr.rel (%p297) target = $region16
        $region15: #{tpu_custom_call.1} parent=11 // pred_region
          %s301 = ssub.s32 896, 896
          %302 = vsyncadd [#allocation6], %s301
          %s303 = sshll.u32 [#allocation5], 4
          %s304 = int_to_ptr.vmem [resolvable:$true] %s303
          %309 = dma.hbm_to_vmem [thread:$0]  %s1, 896, %s304, [#allocation6], 128, 128, 8
        $region16: #{tpu_custom_call.1} parent=11 // pred_fallthru
          _
        // Predicated region
        $region17: #{tpu_custom_call.1} parent=11 // pred_check
          %p310 = pneg %p107
        $region18: #{tpu_custom_call.1} parent=11 // pred_check_branch
          %312 = sbr.rel (%p310) target = $region20
        $region19: #{tpu_custom_call.1} parent=11 // pred_region
          %s314 = ssub.s32 16, 16
          %315 = vsyncadd [#allocation6], %s314
          %s317 = sshll.u32 [#allocation7], 4
          %s318 = int_to_ptr.vmem [resolvable:$true] %s317
          %320 = dma.hbm_to_vmem [thread:$0]  %s2, 16, %s318, [#allocation6]
        $region20: #{tpu_custom_call.1} parent=11 // pred_fallthru
          _
        // Predicated region
        $region21: #{tpu_custom_call.1} parent=11 // pred_check
          %p321 = pneg %p128
        $region22: #{tpu_custom_call.1} parent=11 // pred_check_branch
          %323 = sbr.rel (%p321) target = $region24
        $region23: #{tpu_custom_call.1} parent=11 // pred_region
          %s325 = ssub.s32 16, 16
          %326 = vsyncadd [#allocation9], %s325
          %s328 = sshll.u32 [#allocation8], 4
          %s329 = int_to_ptr.vmem [resolvable:$true] %s328
          %331 = dma.hbm_to_vmem [thread:$0]  %s3, 16, %s329, [#allocation9]
        $region24: #{tpu_custom_call.1} parent=11 // pred_fallthru
          _
        // Predicated region
        $region25: #{tpu_custom_call.1} parent=11 // pred_check
          %p332 = pneg %p149
        $region26: #{tpu_custom_call.1} parent=11 // pred_check_branch
          %334 = sbr.rel (%p332) target = $region28
        $region27: #{tpu_custom_call.1} parent=11 // pred_region
          %s336 = ssub.s32 16, 16
          %337 = vsyncadd [#allocation9], %s336
          %s339 = sshll.u32 [#allocation10], 4
          %s340 = int_to_ptr.vmem [resolvable:$true] %s339
          %342 = dma.hbm_to_vmem [thread:$0]  %s4, 16, %s340, [#allocation9]
        $region28: #{tpu_custom_call.1} parent=11 // pred_fallthru
          _
        // Predicated region
        $region29: #{tpu_custom_call.1} parent=11 // pred_check
          %p343 = pneg %p170
        $region30: #{tpu_custom_call.1} parent=11 // pred_check_branch
          %345 = sbr.rel (%p343) target = $region32
        $region31: #{tpu_custom_call.1} parent=11 // pred_region
          %s347 = ssub.s32 512, 512
          %348 = vsyncadd [#allocation12], %s347
          %s349 = sshll.u32 [#allocation11], 4
          %s350 = int_to_ptr.vmem [resolvable:$true] %s349
          %355 = dma.hbm_to_vmem [thread:$0]  %s5, 512, %s350, [#allocation12], 128, 128, 8
        $region32: #{tpu_custom_call.1} parent=11 // pred_fallthru
          _
        // Predicated region
        $region33: #{tpu_custom_call.1} parent=11 // pred_check
          %p356 = pneg %p191
        $region34: #{tpu_custom_call.1} parent=11 // pred_check_branch
          %358 = sbr.rel (%p356) target = $region36
        $region35: #{tpu_custom_call.1} parent=11 // pred_region
          %s360 = ssub.s32 16, 16
          %361 = vsyncadd [#allocation12], %s360
          %s363 = sshll.u32 [#allocation13], 4
          %s364 = int_to_ptr.vmem [resolvable:$true] %s363
          %366 = dma.hbm_to_vmem [thread:$0]  %s6, 16, %s364, [#allocation12]
        $region36: #{tpu_custom_call.1} parent=11 // pred_fallthru
          _
        // Predicated region
        $region37: #{tpu_custom_call.1} parent=11 // pred_check
          %p367 = pneg %p212
        $region38: #{tpu_custom_call.1} parent=11 // pred_check_branch
          %369 = sbr.rel (%p367) target = $region40
        $region39: #{tpu_custom_call.1} parent=11 // pred_region
          %s371 = ssub.s32 2048, 2048
          %372 = vsyncadd [#allocation15], %s371
          %s373 = sshll.u32 [#allocation14], 4
          %s374 = int_to_ptr.vmem [resolvable:$true] %s373
          %379 = dma.hbm_to_vmem [thread:$0]  %s7, 2048, %s374, [#allocation15], 128, 128, 8
        $region40: #{tpu_custom_call.1} parent=11 // pred_fallthru
          _
        // Predicated region
        $region41: #{tpu_custom_call.1} parent=11 // pred_check
          %p380 = pneg %p233
        $region42: #{tpu_custom_call.1} parent=11 // pred_check_branch
          %382 = sbr.rel (%p380) target = $region44
        $region43: #{tpu_custom_call.1} parent=11 // pred_region
          %s384 = ssub.s32 16, 16
          %385 = vsyncadd [#allocation15], %s384
          %s387 = sshll.u32 [#allocation16], 4
          %s388 = int_to_ptr.vmem [resolvable:$true] %s387
          %390 = dma.hbm_to_vmem [thread:$0]  %s8, 16, %s388, [#allocation15]
        $region44: #{tpu_custom_call.1} parent=11 // pred_fallthru
          _
        // Predicated region
        $region45: #{tpu_custom_call.1} parent=11 // pred_check
          %p391 = pneg %p254
        $region46: #{tpu_custom_call.1} parent=11 // pred_check_branch
          %393 = sbr.rel (%p391) target = $region48
        $region47: #{tpu_custom_call.1} parent=11 // pred_region
          %s395 = ssub.s32 16, 16
          %396 = vsyncadd [#allocation18], %s395
          %s398 = sshll.u32 [#allocation17], 4
          %s399 = int_to_ptr.vmem [resolvable:$true] %s398
          %401 = dma.hbm_to_vmem [thread:$0]  %s9, 16, %s399, [#allocation18]
        $region48: #{tpu_custom_call.1} parent=11 // pred_fallthru
          _
      $region12: #{tpu_custom_call.1} parent=5 // pred_fallthru
        _
      %p402 = scmp.lt.s32.totalorder %s27, 4
      // Predicated region
      $region49: #{tpu_custom_call.1} parent=5 // pred_check
        %p403 = pneg %p402
      $region50: #{tpu_custom_call.1} parent=5 // pred_check_branch
        %405 = sbr.rel (%p403) target = $region52
      $region51: #{tpu_custom_call.1} parent=5 // pred_region
        // Predicated region
        $region53: #{tpu_custom_call.1} parent=51 // pred_check
          %p406 = pneg %p59
        $region54: #{tpu_custom_call.1} parent=51 // pred_check_branch
          %408 = sbr.rel (%p406) target = $region56
        $region55: #{tpu_custom_call.1} parent=51 // pred_region
          %s409 = sand.u32 %s49, 1
          %s410 = scalar_lea.sflag [#allocation3], %s409
          %s411 = sand.u32 %s49, 1
          %s412 = smul.addr %s411, 528
          %s413 = scalar_lea.vmem [#allocation2], %s412
          %s415 = ssub.s32 8448, 8448
          %416 = vsyncadd %s410, %s415
          %s417 = smul.addr %s34, 66
          %s418 = smul.addr %s417, 128
          %s419 = scalar_lea.hbm %s0, %s418
          %s420 = sshll.u32 %s413, 4
          %s421 = int_to_ptr.vmem [resolvable:$true] %s420
          %426 = dma.hbm_to_vmem [thread:$0]  %s419, 8448, %s421, %s410, 128, 128, 8
        $region56: #{tpu_custom_call.1} parent=51 // pred_fallthru
          _
      $region52: #{tpu_custom_call.1} parent=5 // pred_fallthru
        _
      %p427 = scmp.le.s32.totalorder 1, %s27
      %p428 = scmp.lt.s32.totalorder %s27, 5
      %p429 = pnand %p427, %p428
      %p430 = pneg %p429
      // Predicated region
      $region57: #{tpu_custom_call.1} parent=5 // pred_check
        _
      $region58: #{tpu_custom_call.1} parent=5 // pred_check_branch
        %432 = sbr.rel (%p429) target = $region60
      $region59: #{tpu_custom_call.1} parent=5 // pred_region
        %s433 = ssub.s32 %s27, 1
        %s434 = sand.u32 %s52, 1
        %s435 = scalar_lea.sflag [#allocation3], %s434
        %s436 = sand.u32 %s52, 1
        %s437 = smul.addr %s436, 528
        %s438 = scalar_lea.vmem [#allocation2], %s437
        // Predicated region
        $region61: #{tpu_custom_call.1} parent=59 // pred_check
          %p439 = pneg %p65
        $region62: #{tpu_custom_call.1} parent=59 // pred_check_branch
          %441 = sbr.rel (%p439) target = $region64
        $region63: #{tpu_custom_call.1} parent=59 // pred_region
          %442 = dma.done %s435, 8448
        $region64: #{tpu_custom_call.1} parent=59 // pred_fallthru
          _
        // Predicated region
        $region65: #{tpu_custom_call.1} parent=59 // pred_check
          %p443 = pneg %p86
        $region66: #{tpu_custom_call.1} parent=59 // pred_check_branch
          %445 = sbr.rel (%p443) target = $region68
        $region67: #{tpu_custom_call.1} parent=59 // pred_region
          %446 = dma.done [#allocation6], 896
        $region68: #{tpu_custom_call.1} parent=59 // pred_fallthru
          _
        // Predicated region
        $region69: #{tpu_custom_call.1} parent=59 // pred_check
          %p447 = pneg %p107
        $region70: #{tpu_custom_call.1} parent=59 // pred_check_branch
          %449 = sbr.rel (%p447) target = $region72
        $region71: #{tpu_custom_call.1} parent=59 // pred_region
          %450 = dma.done [#allocation6], 16
        $region72: #{tpu_custom_call.1} parent=59 // pred_fallthru
          _
        // Predicated region
        $region73: #{tpu_custom_call.1} parent=59 // pred_check
          %p451 = pneg %p128
        $region74: #{tpu_custom_call.1} parent=59 // pred_check_branch
          %453 = sbr.rel (%p451) target = $region76
        $region75: #{tpu_custom_call.1} parent=59 // pred_region
          %454 = dma.done [#allocation9], 16
        $region76: #{tpu_custom_call.1} parent=59 // pred_fallthru
          _
        // Predicated region
        $region77: #{tpu_custom_call.1} parent=59 // pred_check
          %p455 = pneg %p149
        $region78: #{tpu_custom_call.1} parent=59 // pred_check_branch
          %457 = sbr.rel (%p455) target = $region80
        $region79: #{tpu_custom_call.1} parent=59 // pred_region
          %458 = dma.done [#allocation9], 16
        $region80: #{tpu_custom_call.1} parent=59 // pred_fallthru
          _
        // Predicated region
        $region81: #{tpu_custom_call.1} parent=59 // pred_check
          %p459 = pneg %p170
        $region82: #{tpu_custom_call.1} parent=59 // pred_check_branch
          %461 = sbr.rel (%p459) target = $region84
        $region83: #{tpu_custom_call.1} parent=59 // pred_region
          %462 = dma.done [#allocation12], 512
        $region84: #{tpu_custom_call.1} parent=59 // pred_fallthru
          _
        // Predicated region
        $region85: #{tpu_custom_call.1} parent=59 // pred_check
          %p463 = pneg %p191
        $region86: #{tpu_custom_call.1} parent=59 // pred_check_branch
          %465 = sbr.rel (%p463) target = $region88
        $region87: #{tpu_custom_call.1} parent=59 // pred_region
          %466 = dma.done [#allocation12], 16
        $region88: #{tpu_custom_call.1} parent=59 // pred_fallthru
          _
        // Predicated region
        $region89: #{tpu_custom_call.1} parent=59 // pred_check
          %p467 = pneg %p212
        $region90: #{tpu_custom_call.1} parent=59 // pred_check_branch
          %469 = sbr.rel (%p467) target = $region92
        $region91: #{tpu_custom_call.1} parent=59 // pred_region
          %470 = dma.done [#allocation15], 2048
        $region92: #{tpu_custom_call.1} parent=59 // pred_fallthru
          _
        // Predicated region
        $region93: #{tpu_custom_call.1} parent=59 // pred_check
          %p471 = pneg %p233
        $region94: #{tpu_custom_call.1} parent=59 // pred_check_branch
          %473 = sbr.rel (%p471) target = $region96
        $region95: #{tpu_custom_call.1} parent=59 // pred_region
          %474 = dma.done [#allocation15], 16
        $region96: #{tpu_custom_call.1} parent=59 // pred_fallthru
          _
        // Predicated region
        $region97: #{tpu_custom_call.1} parent=59 // pred_check
          %p475 = pneg %p254
        $region98: #{tpu_custom_call.1} parent=59 // pred_check_branch
          %477 = sbr.rel (%p475) target = $region100
        $region99: #{tpu_custom_call.1} parent=59 // pred_region
          %478 = dma.done [#allocation18], 16
        $region100: #{tpu_custom_call.1} parent=59 // pred_fallthru
          _
        %s479 = sand.u32 %s52, 1
        %s480 = scalar_lea.sflag [#allocation3], %s479
        %s481 = sand.u32 %s52, 1
        %s482 = smul.addr %s481, 528
        %s483 = scalar_lea.vmem [#allocation2], %s482
        %p484 = pneg %p65
        %p485 = pneg %p62
        %p486 = pneg %p86
        %p487 = pneg %p83
        %p488 = pneg %p107
        %p489 = pneg %p104
        %p490 = pneg %p128
        %p491 = pneg %p125
        %p492 = pneg %p149
        %p493 = pneg %p146
        %p494 = pneg %p170
        %p495 = pneg %p167
        %p496 = pneg %p191
        %p497 = pneg %p188
        %p498 = pneg %p212
        %p499 = pneg %p209
        %p500 = pneg %p233
        %p501 = pneg %p230
        %p502 = pneg %p254
        %p503 = pneg %p251
        %p504 = pneg %p282
        %p505 = pneg %p279
        %s506 = sand.u32 %s269, 1
        %s507 = scalar_lea.sflag [#allocation4], %s506
        %s508 = sand.u32 %s269, 1
        %s509 = smul.addr %s508, 128
        %s510 = scalar_lea.vmem [#allocation19], %s509
        %s511 = smul.u32 8, %s37
        %s512 = smul.u32 %s37, 8
        %s513 = smul.u32 %s512, 24
        %s514 = scalar_lea.vmem %s438, %s513 [#allocation2]
        %v515 = vld [vmem:[%s514] sm:$0xff]
        %v516 = vld [vmem:[%s514 + $0x8] sm:$0xff]
        %v517 = vld [vmem:[%s514 + $0x10] sm:$0x3f]
        %v518 = vld [vmem:[%s514 + $0x18] sm:$0xff]
        %v519 = vld [vmem:[%s514 + $0x20] sm:$0xff]
        %v520 = vld [vmem:[%s514 + $0x28] sm:$0x3f]
        %v521 = vld [vmem:[%s514 + $0x30] sm:$0xff]
        %v522 = vld [vmem:[%s514 + $0x38] sm:$0xff]
        %v523 = vld [vmem:[%s514 + $0x40] sm:$0x3f]
        %v524 = vld [vmem:[%s514 + $0x48] sm:$0xff]
        %v525 = vld [vmem:[%s514 + $0x50] sm:$0xff]
        %v526 = vld [vmem:[%s514 + $0x58] sm:$0x3f]
        %v527 = vld [vmem:[%s514 + $0x60] sm:$0xff]
        %v528 = vld [vmem:[%s514 + $0x68] sm:$0xff]
        %v529 = vld [vmem:[%s514 + $0x70] sm:$0x3f]
        %v530 = vld [vmem:[%s514 + $0x78] sm:$0xff]
        %v531 = vld [vmem:[%s514 + $0x80] sm:$0xff]
        %v532 = vld [vmem:[%s514 + $0x88] sm:$0x3f]
        %v533 = vld [vmem:[%s514 + $0x90] sm:$0xff]
        %v534 = vld [vmem:[%s514 + $0x98] sm:$0xff]
        %v535 = vld [vmem:[%s514 + $0xa0] sm:$0x3f]
        %v536 = vld [vmem:[%s514 + $0xa8] sm:$0xff]
        %v537 = vld [vmem:[%s514 + $0xb0] sm:$0xff]
        %v538 = vld [vmem:[%s514 + $0xb8] sm:$0x3f]
        %v539 = vld [vmem:[%s514 + $0xc0] sm:$0xff]
        %v540 = vld [vmem:[%s514 + $0xc8] sm:$0xff]
        %v541 = vld [vmem:[%s514 + $0xd0] sm:$0x3f]
        %v542 = vld [vmem:[%s514 + $0xd8] sm:$0xff]
        %v543 = vld [vmem:[%s514 + $0xe0] sm:$0xff]
        %v544 = vld [vmem:[%s514 + $0xe8] sm:$0x3f]
        %v545 = vld [vmem:[%s514 + $0xf0] sm:$0xff]
        %v546 = vld [vmem:[%s514 + $0xf8] sm:$0xff]
        %v547 = vld [vmem:[%s514 + $0x100] sm:$0x3f]
        %v548 = vld [vmem:[%s514 + $0x108] sm:$0xff]
        %v549 = vld [vmem:[%s514 + $0x110] sm:$0xff]
        %v550 = vld [vmem:[%s514 + $0x118] sm:$0x3f]
        %v551 = vld [vmem:[%s514 + $0x120] sm:$0xff]
        %v552 = vld [vmem:[%s514 + $0x128] sm:$0xff]
        %v553 = vld [vmem:[%s514 + $0x130] sm:$0x3f]
        %v554 = vld [vmem:[%s514 + $0x138] sm:$0xff]
        %v555 = vld [vmem:[%s514 + $0x140] sm:$0xff]
        %v556 = vld [vmem:[%s514 + $0x148] sm:$0x3f]
        %v557 = vld [vmem:[#allocation5] sm:$0x7f]
        %v558 = vld [vmem:[#allocation5 + $0x8] sm:$0x7f]
        %v559 = vld [vmem:[#allocation5 + $0x10] sm:$0x7f]
        %v560 = vld [vmem:[#allocation5 + $0x18] sm:$0x7f]
        %v561 = vld [vmem:[#allocation5 + $0x20] sm:$0x7f]
        %v562 = vld [vmem:[#allocation5 + $0x28] sm:$0x7f]
        %v563 = vld [vmem:[#allocation5 + $0x30] sm:$0x7f]
        %v564 = vlaneseq
        %v565 = vshrl.u32 %v564, 7
        %v566 = vsub.s32 0, %v565
        %v567 = vrot.slane %v557, %v566
        %v568 = vmul.f32 %v515, %v567
        %v569 = vmul.f32 %v516, %v567
        %v570 = vmul.f32 %v518, %v567
        %v571 = vmul.f32 %v519, %v567
        %v572 = vmul.f32 %v521, %v567
        %v573 = vmul.f32 %v522, %v567
        %v574 = vmul.f32 %v524, %v567
        %v575 = vmul.f32 %v525, %v567
        %v576 = vmul.f32 %v527, %v567
        %v577 = vmul.f32 %v528, %v567
        %v578 = vmul.f32 %v530, %v567
        %v579 = vmul.f32 %v531, %v567
        %v580 = vmul.f32 %v533, %v567
        %v581 = vmul.f32 %v534, %v567
        %v582 = vmul.f32 %v536, %v567
        %v583 = vmul.f32 %v537, %v567
        %v584 = vadd.f32 %v568, 0.0
        %v585 = vadd.f32 %v569, 0.0
        %v586 = vadd.f32 %v570, 0.0
        %v587 = vadd.f32 %v571, 0.0
        %v588 = vadd.f32 %v572, 0.0
        %v589 = vadd.f32 %v573, 0.0
        %v590 = vadd.f32 %v574, 0.0
        %v591 = vadd.f32 %v575, 0.0
        %v592 = vadd.f32 %v576, 0.0
        %v593 = vadd.f32 %v577, 0.0
        %v594 = vadd.f32 %v578, 0.0
        %v595 = vadd.f32 %v579, 0.0
        %v596 = vadd.f32 %v580, 0.0
        %v597 = vadd.f32 %v581, 0.0
        %v598 = vadd.f32 %v582, 0.0
        %v599 = vadd.f32 %v583, 0.0
        %v600 = vlaneseq
        %v601 = vshrl.u32 %v600, 7
        %v602 = vsub.s32 0, %v601
        %v603 = vrot.slane %v558, %v602
        %v604 = vmul.f32 %v518, %v603
        %v605 = vmul.f32 %v519, %v603
        %v606 = vmul.f32 %v521, %v603
        %v607 = vmul.f32 %v522, %v603
        %v608 = vmul.f32 %v524, %v603
        %v609 = vmul.f32 %v525, %v603
        %v610 = vmul.f32 %v527, %v603
        %v611 = vmul.f32 %v528, %v603
        %v612 = vmul.f32 %v530, %v603
        %v613 = vmul.f32 %v531, %v603
        %v614 = vmul.f32 %v533, %v603
        %v615 = vmul.f32 %v534, %v603
        %v616 = vmul.f32 %v536, %v603
        %v617 = vmul.f32 %v537, %v603
        %v618 = vmul.f32 %v539, %v603
        %v619 = vmul.f32 %v540, %v603
        %v620 = vadd.f32 %v584, %v604
        %v621 = vadd.f32 %v585, %v605
        %v622 = vadd.f32 %v586, %v606
        %v623 = vadd.f32 %v587, %v607
        %v624 = vadd.f32 %v588, %v608
        %v625 = vadd.f32 %v589, %v609
        %v626 = vadd.f32 %v590, %v610
        %v627 = vadd.f32 %v591, %v611
        %v628 = vadd.f32 %v592, %v612
        %v629 = vadd.f32 %v593, %v613
        %v630 = vadd.f32 %v594, %v614
        %v631 = vadd.f32 %v595, %v615
        %v632 = vadd.f32 %v596, %v616
        %v633 = vadd.f32 %v597, %v617
        %v634 = vadd.f32 %v598, %v618
        %v635 = vadd.f32 %v599, %v619
        %v636 = vlaneseq
        %v637 = vshrl.u32 %v636, 7
        %v638 = vsub.s32 0, %v637
        %v639 = vrot.slane %v559, %v638
        %v640 = vmul.f32 %v521, %v639
        %v641 = vmul.f32 %v522, %v639
        %v642 = vmul.f32 %v524, %v639
        %v643 = vmul.f32 %v525, %v639
        %v644 = vmul.f32 %v527, %v639
        %v645 = vmul.f32 %v528, %v639
        %v646 = vmul.f32 %v530, %v639
        %v647 = vmul.f32 %v531, %v639
        %v648 = vmul.f32 %v533, %v639
        %v649 = vmul.f32 %v534, %v639
        %v650 = vmul.f32 %v536, %v639
        %v651 = vmul.f32 %v537, %v639
        %v652 = vmul.f32 %v539, %v639
        %v653 = vmul.f32 %v540, %v639
        %v654 = vmul.f32 %v542, %v639
        %v655 = vmul.f32 %v543, %v639
        %v656 = vadd.f32 %v620, %v640
        %v657 = vadd.f32 %v621, %v641
        %v658 = vadd.f32 %v622, %v642
        %v659 = vadd.f32 %v623, %v643
        %v660 = vadd.f32 %v624, %v644
        %v661 = vadd.f32 %v625, %v645
        %v662 = vadd.f32 %v626, %v646
        %v663 = vadd.f32 %v627, %v647
        %v664 = vadd.f32 %v628, %v648
        %v665 = vadd.f32 %v629, %v649
        %v666 = vadd.f32 %v630, %v650
        %v667 = vadd.f32 %v631, %v651
        %v668 = vadd.f32 %v632, %v652
        %v669 = vadd.f32 %v633, %v653
        %v670 = vadd.f32 %v634, %v654
        %v671 = vadd.f32 %v635, %v655
        %v672 = vlaneseq
        %v673 = vshrl.u32 %v672, 7
        %v674 = vsub.s32 0, %v673
        %v675 = vrot.slane %v560, %v674
        %v676 = vmul.f32 %v524, %v675
        %v677 = vmul.f32 %v525, %v675
        %v678 = vmul.f32 %v527, %v675
        %v679 = vmul.f32 %v528, %v675
        %v680 = vmul.f32 %v530, %v675
        %v681 = vmul.f32 %v531, %v675
        %v682 = vmul.f32 %v533, %v675
        %v683 = vmul.f32 %v534, %v675
        %v684 = vmul.f32 %v536, %v675
        %v685 = vmul.f32 %v537, %v675
        %v686 = vmul.f32 %v539, %v675
        %v687 = vmul.f32 %v540, %v675
        %v688 = vmul.f32 %v542, %v675
        %v689 = vmul.f32 %v543, %v675
        %v690 = vmul.f32 %v545, %v675
        %v691 = vmul.f32 %v546, %v675
        %v692 = vadd.f32 %v656, %v676
        %v693 = vadd.f32 %v657, %v677
        %v694 = vadd.f32 %v658, %v678
        %v695 = vadd.f32 %v659, %v679
        %v696 = vadd.f32 %v660, %v680
        %v697 = vadd.f32 %v661, %v681
        %v698 = vadd.f32 %v662, %v682
        %v699 = vadd.f32 %v663, %v683
        %v700 = vadd.f32 %v664, %v684
        %v701 = vadd.f32 %v665, %v685
        %v702 = vadd.f32 %v666, %v686
        %v703 = vadd.f32 %v667, %v687
        %v704 = vadd.f32 %v668, %v688
        %v705 = vadd.f32 %v669, %v689
        %v706 = vadd.f32 %v670, %v690
        %v707 = vadd.f32 %v671, %v691
        %v708 = vlaneseq
        %v709 = vshrl.u32 %v708, 7
        %v710 = vsub.s32 0, %v709
        %v711 = vrot.slane %v561, %v710
        %v712 = vmul.f32 %v527, %v711
        %v713 = vmul.f32 %v528, %v711
        %v714 = vmul.f32 %v530, %v711
        %v715 = vmul.f32 %v531, %v711
        %v716 = vmul.f32 %v533, %v711
        %v717 = vmul.f32 %v534, %v711
        %v718 = vmul.f32 %v536, %v711
        %v719 = vmul.f32 %v537, %v711
        %v720 = vmul.f32 %v539, %v711
        %v721 = vmul.f32 %v540, %v711
        %v722 = vmul.f32 %v542, %v711
        %v723 = vmul.f32 %v543, %v711
        %v724 = vmul.f32 %v545, %v711
        %v725 = vmul.f32 %v546, %v711
        %v726 = vmul.f32 %v548, %v711
        %v727 = vmul.f32 %v549, %v711
        %v728 = vadd.f32 %v692, %v712
        %v729 = vadd.f32 %v693, %v713
        %v730 = vadd.f32 %v694, %v714
        %v731 = vadd.f32 %v695, %v715
        %v732 = vadd.f32 %v696, %v716
        %v733 = vadd.f32 %v697, %v717
        %v734 = vadd.f32 %v698, %v718
        %v735 = vadd.f32 %v699, %v719
        %v736 = vadd.f32 %v700, %v720
        %v737 = vadd.f32 %v701, %v721
        %v738 = vadd.f32 %v702, %v722
        %v739 = vadd.f32 %v703, %v723
        %v740 = vadd.f32 %v704, %v724
        %v741 = vadd.f32 %v705, %v725
        %v742 = vadd.f32 %v706, %v726
        %v743 = vadd.f32 %v707, %v727
        %v744 = vlaneseq
        %v745 = vshrl.u32 %v744, 7
        %v746 = vsub.s32 0, %v745
        %v747 = vrot.slane %v562, %v746
        %v748 = vmul.f32 %v530, %v747
        %v749 = vmul.f32 %v531, %v747
        %v750 = vmul.f32 %v533, %v747
        %v751 = vmul.f32 %v534, %v747
        %v752 = vmul.f32 %v536, %v747
        %v753 = vmul.f32 %v537, %v747
        %v754 = vmul.f32 %v539, %v747
        %v755 = vmul.f32 %v540, %v747
        %v756 = vmul.f32 %v542, %v747
        %v757 = vmul.f32 %v543, %v747
        %v758 = vmul.f32 %v545, %v747
        %v759 = vmul.f32 %v546, %v747
        %v760 = vmul.f32 %v548, %v747
        %v761 = vmul.f32 %v549, %v747
        %v762 = vmul.f32 %v551, %v747
        %v763 = vmul.f32 %v552, %v747
        %v764 = vadd.f32 %v728, %v748
        %v765 = vadd.f32 %v729, %v749
        %v766 = vadd.f32 %v730, %v750
        %v767 = vadd.f32 %v731, %v751
        %v768 = vadd.f32 %v732, %v752
        %v769 = vadd.f32 %v733, %v753
        %v770 = vadd.f32 %v734, %v754
        %v771 = vadd.f32 %v735, %v755
        %v772 = vadd.f32 %v736, %v756
        %v773 = vadd.f32 %v737, %v757
        %v774 = vadd.f32 %v738, %v758
        %v775 = vadd.f32 %v739, %v759
        %v776 = vadd.f32 %v740, %v760
        %v777 = vadd.f32 %v741, %v761
        %v778 = vadd.f32 %v742, %v762
        %v779 = vadd.f32 %v743, %v763
        %v780 = vlaneseq
        %v781 = vshrl.u32 %v780, 7
        %v782 = vsub.s32 0, %v781
        %v783 = vrot.slane %v563, %v782
        %v784 = vmul.f32 %v533, %v783
        %v785 = vmul.f32 %v534, %v783
        %v786 = vmul.f32 %v536, %v783
        %v787 = vmul.f32 %v537, %v783
        %v788 = vmul.f32 %v539, %v783
        %v789 = vmul.f32 %v540, %v783
        %v790 = vmul.f32 %v542, %v783
        %v791 = vmul.f32 %v543, %v783
        %v792 = vmul.f32 %v545, %v783
        %v793 = vmul.f32 %v546, %v783
        %v794 = vmul.f32 %v548, %v783
        %v795 = vmul.f32 %v549, %v783
        %v796 = vmul.f32 %v551, %v783
        %v797 = vmul.f32 %v552, %v783
        %v798 = vmul.f32 %v554, %v783
        %v799 = vmul.f32 %v555, %v783
        %v800 = vadd.f32 %v764, %v784
        %v801 = vadd.f32 %v765, %v785
        %v802 = vadd.f32 %v766, %v786
        %v803 = vadd.f32 %v767, %v787
        %v804 = vadd.f32 %v768, %v788
        %v805 = vadd.f32 %v769, %v789
        %v806 = vadd.f32 %v770, %v790
        %v807 = vadd.f32 %v771, %v791
        %v808 = vadd.f32 %v772, %v792
        %v809 = vadd.f32 %v773, %v793
        %v810 = vadd.f32 %v774, %v794
        %v811 = vadd.f32 %v775, %v795
        %v812 = vadd.f32 %v776, %v796
        %v813 = vadd.f32 %v777, %v797
        %v814 = vadd.f32 %v778, %v798
        %v815 = vadd.f32 %v779, %v799
        %v816 = vlaneseq
        %v817 = vshrl.u32 %v816, 7
        %v818 = vsub.s32 1, %v817
        %v819 = vrot.slane %v557, %v818
        %v820 = vmul.f32 %v515, %v819
        %v821 = vmul.f32 %v516, %v819
        %v822 = vmul.f32 %v517, %v819
        %v823 = vmul.f32 %v518, %v819
        %v824 = vmul.f32 %v519, %v819
        %v825 = vmul.f32 %v520, %v819
        %v826 = vmul.f32 %v521, %v819
        %v827 = vmul.f32 %v522, %v819
        %v828 = vmul.f32 %v523, %v819
        %v829 = vmul.f32 %v524, %v819
        %v830 = vmul.f32 %v525, %v819
        %v831 = vmul.f32 %v526, %v819
        %v832 = vmul.f32 %v527, %v819
        %v833 = vmul.f32 %v528, %v819
        %v834 = vmul.f32 %v529, %v819
        %v835 = vmul.f32 %v530, %v819
        %v836 = vmul.f32 %v531, %v819
        %v837 = vmul.f32 %v532, %v819
        %v838 = vmul.f32 %v533, %v819
        %v839 = vmul.f32 %v534, %v819
        %v840 = vmul.f32 %v535, %v819
        %v841 = vmul.f32 %v536, %v819
        %v842 = vmul.f32 %v537, %v819
        %v843 = vmul.f32 %v538, %v819
        %vm868 = vcmask 1046528
        %v869 = vrot.slane %v820, 1
        %v870 = vrot.slane %v821, 1
        %v871 = vsel %vm868, %v869, %v870
        %v872 = vrot.slane %v822, 1
        %v873 = vsel %vm868, %v870, %v872
        %v874 = vrot.slane %v823, 1
        %v875 = vrot.slane %v824, 1
        %v876 = vsel %vm868, %v874, %v875
        %v877 = vrot.slane %v825, 1
        %v878 = vsel %vm868, %v875, %v877
        %v879 = vrot.slane %v826, 1
        %v880 = vrot.slane %v827, 1
        %v881 = vsel %vm868, %v879, %v880
        %v882 = vrot.slane %v828, 1
        %v883 = vsel %vm868, %v880, %v882
        %v884 = vrot.slane %v829, 1
        %v885 = vrot.slane %v830, 1
        %v886 = vsel %vm868, %v884, %v885
        %v887 = vrot.slane %v831, 1
        %v888 = vsel %vm868, %v885, %v887
        %v889 = vrot.slane %v832, 1
        %v890 = vrot.slane %v833, 1
        %v891 = vsel %vm868, %v889, %v890
        %v892 = vrot.slane %v834, 1
        %v893 = vsel %vm868, %v890, %v892
        %v894 = vrot.slane %v835, 1
        %v895 = vrot.slane %v836, 1
        %v896 = vsel %vm868, %v894, %v895
        %v897 = vrot.slane %v837, 1
        %v898 = vsel %vm868, %v895, %v897
        %v899 = vrot.slane %v838, 1
        %v900 = vrot.slane %v839, 1
        %v901 = vsel %vm868, %v899, %v900
        %v902 = vrot.slane %v840, 1
        %v903 = vsel %vm868, %v900, %v902
        %v904 = vrot.slane %v841, 1
        %v905 = vrot.slane %v842, 1
        %v906 = vsel %vm868, %v904, %v905
        %v907 = vrot.slane %v843, 1
        %v908 = vsel %vm868, %v905, %v907
        %v925 = vadd.f32 %v800, %v871
        %v926 = vadd.f32 %v801, %v873
        %v927 = vadd.f32 %v802, %v876
        %v928 = vadd.f32 %v803, %v878
        %v929 = vadd.f32 %v804, %v881
        %v930 = vadd.f32 %v805, %v883
        %v931 = vadd.f32 %v806, %v886
        %v932 = vadd.f32 %v807, %v888
        %v933 = vadd.f32 %v808, %v891
        %v934 = vadd.f32 %v809, %v893
        %v935 = vadd.f32 %v810, %v896
        %v936 = vadd.f32 %v811, %v898
        %v937 = vadd.f32 %v812, %v901
        %v938 = vadd.f32 %v813, %v903
        %v939 = vadd.f32 %v814, %v906
        %v940 = vadd.f32 %v815, %v908
        %v941 = vlaneseq
        %v942 = vshrl.u32 %v941, 7
        %v943 = vsub.s32 1, %v942
        %v944 = vrot.slane %v558, %v943
        %v945 = vmul.f32 %v518, %v944
        %v946 = vmul.f32 %v519, %v944
        %v947 = vmul.f32 %v520, %v944
        %v948 = vmul.f32 %v521, %v944
        %v949 = vmul.f32 %v522, %v944
        %v950 = vmul.f32 %v523, %v944
        %v951 = vmul.f32 %v524, %v944
        %v952 = vmul.f32 %v525, %v944
        %v953 = vmul.f32 %v526, %v944
        %v954 = vmul.f32 %v527, %v944
        %v955 = vmul.f32 %v528, %v944
        %v956 = vmul.f32 %v529, %v944
        %v957 = vmul.f32 %v530, %v944
        %v958 = vmul.f32 %v531, %v944
        %v959 = vmul.f32 %v532, %v944
        %v960 = vmul.f32 %v533, %v944
        %v961 = vmul.f32 %v534, %v944
        %v962 = vmul.f32 %v535, %v944
        %v963 = vmul.f32 %v536, %v944
        %v964 = vmul.f32 %v537, %v944
        %v965 = vmul.f32 %v538, %v944
        %v966 = vmul.f32 %v539, %v944
        %v967 = vmul.f32 %v540, %v944
        %v968 = vmul.f32 %v541, %v944
        %v993 = vrot.slane %v945, 1
        %v994 = vrot.slane %v946, 1
        %v995 = vsel %vm868, %v993, %v994
        %v996 = vrot.slane %v947, 1
        %v997 = vsel %vm868, %v994, %v996
        %v998 = vrot.slane %v948, 1
        %v999 = vrot.slane %v949, 1
        %v1000 = vsel %vm868, %v998, %v999
        %v1001 = vrot.slane %v950, 1
        %v1002 = vsel %vm868, %v999, %v1001
        %v1003 = vrot.slane %v951, 1
        %v1004 = vrot.slane %v952, 1
        %v1005 = vsel %vm868, %v1003, %v1004
        %v1006 = vrot.slane %v953, 1
        %v1007 = vsel %vm868, %v1004, %v1006
        %v1008 = vrot.slane %v954, 1
        %v1009 = vrot.slane %v955, 1
        %v1010 = vsel %vm868, %v1008, %v1009
        %v1011 = vrot.slane %v956, 1
        %v1012 = vsel %vm868, %v1009, %v1011
        %v1013 = vrot.slane %v957, 1
        %v1014 = vrot.slane %v958, 1
        %v1015 = vsel %vm868, %v1013, %v1014
        %v1016 = vrot.slane %v959, 1
        %v1017 = vsel %vm868, %v1014, %v1016
        %v1018 = vrot.slane %v960, 1
        %v1019 = vrot.slane %v961, 1
        %v1020 = vsel %vm868, %v1018, %v1019
        %v1021 = vrot.slane %v962, 1
        %v1022 = vsel %vm868, %v1019, %v1021
        %v1023 = vrot.slane %v963, 1
        %v1024 = vrot.slane %v964, 1
        %v1025 = vsel %vm868, %v1023, %v1024
        %v1026 = vrot.slane %v965, 1
        %v1027 = vsel %vm868, %v1024, %v1026
        %v1028 = vrot.slane %v966, 1
        %v1029 = vrot.slane %v967, 1
        %v1030 = vsel %vm868, %v1028, %v1029
        %v1031 = vrot.slane %v968, 1
        %v1032 = vsel %vm868, %v1029, %v1031
        %v1049 = vadd.f32 %v925, %v995
        %v1050 = vadd.f32 %v926, %v997
        %v1051 = vadd.f32 %v927, %v1000
        %v1052 = vadd.f32 %v928, %v1002
        %v1053 = vadd.f32 %v929, %v1005
        %v1054 = vadd.f32 %v930, %v1007
        %v1055 = vadd.f32 %v931, %v1010
        %v1056 = vadd.f32 %v932, %v1012
        %v1057 = vadd.f32 %v933, %v1015
        %v1058 = vadd.f32 %v934, %v1017
        %v1059 = vadd.f32 %v935, %v1020
        %v1060 = vadd.f32 %v936, %v1022
        %v1061 = vadd.f32 %v937, %v1025
        %v1062 = vadd.f32 %v938, %v1027
        %v1063 = vadd.f32 %v939, %v1030
        %v1064 = vadd.f32 %v940, %v1032
        %v1065 = vlaneseq
        %v1066 = vshrl.u32 %v1065, 7
        %v1067 = vsub.s32 1, %v1066
        %v1068 = vrot.slane %v559, %v1067
        %v1069 = vmul.f32 %v521, %v1068
        %v1070 = vmul.f32 %v522, %v1068
        %v1071 = vmul.f32 %v523, %v1068
        %v1072 = vmul.f32 %v524, %v1068
        %v1073 = vmul.f32 %v525, %v1068
        %v1074 = vmul.f32 %v526, %v1068
        %v1075 = vmul.f32 %v527, %v1068
        %v1076 = vmul.f32 %v528, %v1068
        %v1077 = vmul.f32 %v529, %v1068
        %v1078 = vmul.f32 %v530, %v1068
        %v1079 = vmul.f32 %v531, %v1068
        %v1080 = vmul.f32 %v532, %v1068
        %v1081 = vmul.f32 %v533, %v1068
        %v1082 = vmul.f32 %v534, %v1068
        %v1083 = vmul.f32 %v535, %v1068
        %v1084 = vmul.f32 %v536, %v1068
        %v1085 = vmul.f32 %v537, %v1068
        %v1086 = vmul.f32 %v538, %v1068
        %v1087 = vmul.f32 %v539, %v1068
        %v1088 = vmul.f32 %v540, %v1068
        %v1089 = vmul.f32 %v541, %v1068
        %v1090 = vmul.f32 %v542, %v1068
        %v1091 = vmul.f32 %v543, %v1068
        %v1092 = vmul.f32 %v544, %v1068
        %v1117 = vrot.slane %v1069, 1
        %v1118 = vrot.slane %v1070, 1
        %v1119 = vsel %vm868, %v1117, %v1118
        %v1120 = vrot.slane %v1071, 1
        %v1121 = vsel %vm868, %v1118, %v1120
        %v1122 = vrot.slane %v1072, 1
        %v1123 = vrot.slane %v1073, 1
        %v1124 = vsel %vm868, %v1122, %v1123
        %v1125 = vrot.slane %v1074, 1
        %v1126 = vsel %vm868, %v1123, %v1125
        %v1127 = vrot.slane %v1075, 1
        %v1128 = vrot.slane %v1076, 1
        %v1129 = vsel %vm868, %v1127, %v1128
        %v1130 = vrot.slane %v1077, 1
        %v1131 = vsel %vm868, %v1128, %v1130
        %v1132 = vrot.slane %v1078, 1
        %v1133 = vrot.slane %v1079, 1
        %v1134 = vsel %vm868, %v1132, %v1133
        %v1135 = vrot.slane %v1080, 1
        %v1136 = vsel %vm868, %v1133, %v1135
        %v1137 = vrot.slane %v1081, 1
        %v1138 = vrot.slane %v1082, 1
        %v1139 = vsel %vm868, %v1137, %v1138
        %v1140 = vrot.slane %v1083, 1
        %v1141 = vsel %vm868, %v1138, %v1140
        %v1142 = vrot.slane %v1084, 1
        %v1143 = vrot.slane %v1085, 1
        %v1144 = vsel %vm868, %v1142, %v1143
        %v1145 = vrot.slane %v1086, 1
        %v1146 = vsel %vm868, %v1143, %v1145
        %v1147 = vrot.slane %v1087, 1
        %v1148 = vrot.slane %v1088, 1
        %v1149 = vsel %vm868, %v1147, %v1148
        %v1150 = vrot.slane %v1089, 1
        %v1151 = vsel %vm868, %v1148, %v1150
        %v1152 = vrot.slane %v1090, 1
        %v1153 = vrot.slane %v1091, 1
        %v1154 = vsel %vm868, %v1152, %v1153
        %v1155 = vrot.slane %v1092, 1
        %v1156 = vsel %vm868, %v1153, %v1155
        %v1173 = vadd.f32 %v1049, %v1119
        %v1174 = vadd.f32 %v1050, %v1121
        %v1175 = vadd.f32 %v1051, %v1124
        %v1176 = vadd.f32 %v1052, %v1126
        %v1177 = vadd.f32 %v1053, %v1129
        %v1178 = vadd.f32 %v1054, %v1131
        %v1179 = vadd.f32 %v1055, %v1134
        %v1180 = vadd.f32 %v1056, %v1136
        %v1181 = vadd.f32 %v1057, %v1139
        %v1182 = vadd.f32 %v1058, %v1141
        %v1183 = vadd.f32 %v1059, %v1144
        %v1184 = vadd.f32 %v1060, %v1146
        %v1185 = vadd.f32 %v1061, %v1149
        %v1186 = vadd.f32 %v1062, %v1151
        %v1187 = vadd.f32 %v1063, %v1154
        %v1188 = vadd.f32 %v1064, %v1156
        %v1189 = vlaneseq
        %v1190 = vshrl.u32 %v1189, 7
        %v1191 = vsub.s32 1, %v1190
        %v1192 = vrot.slane %v560, %v1191
        %v1193 = vmul.f32 %v524, %v1192
        %v1194 = vmul.f32 %v525, %v1192
        %v1195 = vmul.f32 %v526, %v1192
        %v1196 = vmul.f32 %v527, %v1192
        %v1197 = vmul.f32 %v528, %v1192
        %v1198 = vmul.f32 %v529, %v1192
        %v1199 = vmul.f32 %v530, %v1192
        %v1200 = vmul.f32 %v531, %v1192
        %v1201 = vmul.f32 %v532, %v1192
        %v1202 = vmul.f32 %v533, %v1192
        %v1203 = vmul.f32 %v534, %v1192
        %v1204 = vmul.f32 %v535, %v1192
        %v1205 = vmul.f32 %v536, %v1192
        %v1206 = vmul.f32 %v537, %v1192
        %v1207 = vmul.f32 %v538, %v1192
        %v1208 = vmul.f32 %v539, %v1192
        %v1209 = vmul.f32 %v540, %v1192
        %v1210 = vmul.f32 %v541, %v1192
        %v1211 = vmul.f32 %v542, %v1192
        %v1212 = vmul.f32 %v543, %v1192
        %v1213 = vmul.f32 %v544, %v1192
        %v1214 = vmul.f32 %v545, %v1192
        %v1215 = vmul.f32 %v546, %v1192
        %v1216 = vmul.f32 %v547, %v1192
        %v1241 = vrot.slane %v1193, 1
        %v1242 = vrot.slane %v1194, 1
        %v1243 = vsel %vm868, %v1241, %v1242
        %v1244 = vrot.slane %v1195, 1
        %v1245 = vsel %vm868, %v1242, %v1244
        %v1246 = vrot.slane %v1196, 1
        %v1247 = vrot.slane %v1197, 1
        %v1248 = vsel %vm868, %v1246, %v1247
        %v1249 = vrot.slane %v1198, 1
        %v1250 = vsel %vm868, %v1247, %v1249
        %v1251 = vrot.slane %v1199, 1
        %v1252 = vrot.slane %v1200, 1
        %v1253 = vsel %vm868, %v1251, %v1252
        %v1254 = vrot.slane %v1201, 1
        %v1255 = vsel %vm868, %v1252, %v1254
        %v1256 = vrot.slane %v1202, 1
        %v1257 = vrot.slane %v1203, 1
        %v1258 = vsel %vm868, %v1256, %v1257
        %v1259 = vrot.slane %v1204, 1
        %v1260 = vsel %vm868, %v1257, %v1259
        %v1261 = vrot.slane %v1205, 1
        %v1262 = vrot.slane %v1206, 1
        %v1263 = vsel %vm868, %v1261, %v1262
        %v1264 = vrot.slane %v1207, 1
        %v1265 = vsel %vm868, %v1262, %v1264
        %v1266 = vrot.slane %v1208, 1
        %v1267 = vrot.slane %v1209, 1
        %v1268 = vsel %vm868, %v1266, %v1267
        %v1269 = vrot.slane %v1210, 1
        %v1270 = vsel %vm868, %v1267, %v1269
        %v1271 = vrot.slane %v1211, 1
        %v1272 = vrot.slane %v1212, 1
        %v1273 = vsel %vm868, %v1271, %v1272
        %v1274 = vrot.slane %v1213, 1
        %v1275 = vsel %vm868, %v1272, %v1274
        %v1276 = vrot.slane %v1214, 1
        %v1277 = vrot.slane %v1215, 1
        %v1278 = vsel %vm868, %v1276, %v1277
        %v1279 = vrot.slane %v1216, 1
        %v1280 = vsel %vm868, %v1277, %v1279
        %v1297 = vadd.f32 %v1173, %v1243
        %v1298 = vadd.f32 %v1174, %v1245
        %v1299 = vadd.f32 %v1175, %v1248
        %v1300 = vadd.f32 %v1176, %v1250
        %v1301 = vadd.f32 %v1177, %v1253
        %v1302 = vadd.f32 %v1178, %v1255
        %v1303 = vadd.f32 %v1179, %v1258
        %v1304 = vadd.f32 %v1180, %v1260
        %v1305 = vadd.f32 %v1181, %v1263
        %v1306 = vadd.f32 %v1182, %v1265
        %v1307 = vadd.f32 %v1183, %v1268
        %v1308 = vadd.f32 %v1184, %v1270
        %v1309 = vadd.f32 %v1185, %v1273
        %v1310 = vadd.f32 %v1186, %v1275
        %v1311 = vadd.f32 %v1187, %v1278
        %v1312 = vadd.f32 %v1188, %v1280
        %v1313 = vlaneseq
        %v1314 = vshrl.u32 %v1313, 7
        %v1315 = vsub.s32 1, %v1314
        %v1316 = vrot.slane %v561, %v1315
        %v1317 = vmul.f32 %v527, %v1316
        %v1318 = vmul.f32 %v528, %v1316
        %v1319 = vmul.f32 %v529, %v1316
        %v1320 = vmul.f32 %v530, %v1316
        %v1321 = vmul.f32 %v531, %v1316
        %v1322 = vmul.f32 %v532, %v1316
        %v1323 = vmul.f32 %v533, %v1316
        %v1324 = vmul.f32 %v534, %v1316
        %v1325 = vmul.f32 %v535, %v1316
        %v1326 = vmul.f32 %v536, %v1316
        %v1327 = vmul.f32 %v537, %v1316
        %v1328 = vmul.f32 %v538, %v1316
        %v1329 = vmul.f32 %v539, %v1316
        %v1330 = vmul.f32 %v540, %v1316
        %v1331 = vmul.f32 %v541, %v1316
        %v1332 = vmul.f32 %v542, %v1316
        %v1333 = vmul.f32 %v543, %v1316
        %v1334 = vmul.f32 %v544, %v1316
        %v1335 = vmul.f32 %v545, %v1316
        %v1336 = vmul.f32 %v546, %v1316
        %v1337 = vmul.f32 %v547, %v1316
        %v1338 = vmul.f32 %v548, %v1316
        %v1339 = vmul.f32 %v549, %v1316
        %v1340 = vmul.f32 %v550, %v1316
        %v1365 = vrot.slane %v1317, 1
        %v1366 = vrot.slane %v1318, 1
        %v1367 = vsel %vm868, %v1365, %v1366
        %v1368 = vrot.slane %v1319, 1
        %v1369 = vsel %vm868, %v1366, %v1368
        %v1370 = vrot.slane %v1320, 1
        %v1371 = vrot.slane %v1321, 1
        %v1372 = vsel %vm868, %v1370, %v1371
        %v1373 = vrot.slane %v1322, 1
        %v1374 = vsel %vm868, %v1371, %v1373
        %v1375 = vrot.slane %v1323, 1
        %v1376 = vrot.slane %v1324, 1
        %v1377 = vsel %vm868, %v1375, %v1376
        %v1378 = vrot.slane %v1325, 1
        %v1379 = vsel %vm868, %v1376, %v1378
        %v1380 = vrot.slane %v1326, 1
        %v1381 = vrot.slane %v1327, 1
        %v1382 = vsel %vm868, %v1380, %v1381
        %v1383 = vrot.slane %v1328, 1
        %v1384 = vsel %vm868, %v1381, %v1383
        %v1385 = vrot.slane %v1329, 1
        %v1386 = vrot.slane %v1330, 1
        %v1387 = vsel %vm868, %v1385, %v1386
        %v1388 = vrot.slane %v1331, 1
        %v1389 = vsel %vm868, %v1386, %v1388
        %v1390 = vrot.slane %v1332, 1
        %v1391 = vrot.slane %v1333, 1
        %v1392 = vsel %vm868, %v1390, %v1391
        %v1393 = vrot.slane %v1334, 1
        %v1394 = vsel %vm868, %v1391, %v1393
        %v1395 = vrot.slane %v1335, 1
        %v1396 = vrot.slane %v1336, 1
        %v1397 = vsel %vm868, %v1395, %v1396
        %v1398 = vrot.slane %v1337, 1
        %v1399 = vsel %vm868, %v1396, %v1398
        %v1400 = vrot.slane %v1338, 1
        %v1401 = vrot.slane %v1339, 1
        %v1402 = vsel %vm868, %v1400, %v1401
        %v1403 = vrot.slane %v1340, 1
        %v1404 = vsel %vm868, %v1401, %v1403
        %v1421 = vadd.f32 %v1297, %v1367
        %v1422 = vadd.f32 %v1298, %v1369
        %v1423 = vadd.f32 %v1299, %v1372
        %v1424 = vadd.f32 %v1300, %v1374
        %v1425 = vadd.f32 %v1301, %v1377
        %v1426 = vadd.f32 %v1302, %v1379
        %v1427 = vadd.f32 %v1303, %v1382
        %v1428 = vadd.f32 %v1304, %v1384
        %v1429 = vadd.f32 %v1305, %v1387
        %v1430 = vadd.f32 %v1306, %v1389
        %v1431 = vadd.f32 %v1307, %v1392
        %v1432 = vadd.f32 %v1308, %v1394
        %v1433 = vadd.f32 %v1309, %v1397
        %v1434 = vadd.f32 %v1310, %v1399
        %v1435 = vadd.f32 %v1311, %v1402
        %v1436 = vadd.f32 %v1312, %v1404
        %v1437 = vlaneseq
        %v1438 = vshrl.u32 %v1437, 7
        %v1439 = vsub.s32 1, %v1438
        %v1440 = vrot.slane %v562, %v1439
        %v1441 = vmul.f32 %v530, %v1440
        %v1442 = vmul.f32 %v531, %v1440
        %v1443 = vmul.f32 %v532, %v1440
        %v1444 = vmul.f32 %v533, %v1440
        %v1445 = vmul.f32 %v534, %v1440
        %v1446 = vmul.f32 %v535, %v1440
        %v1447 = vmul.f32 %v536, %v1440
        %v1448 = vmul.f32 %v537, %v1440
        %v1449 = vmul.f32 %v538, %v1440
        %v1450 = vmul.f32 %v539, %v1440
        %v1451 = vmul.f32 %v540, %v1440
        %v1452 = vmul.f32 %v541, %v1440
        %v1453 = vmul.f32 %v542, %v1440
        %v1454 = vmul.f32 %v543, %v1440
        %v1455 = vmul.f32 %v544, %v1440
        %v1456 = vmul.f32 %v545, %v1440
        %v1457 = vmul.f32 %v546, %v1440
        %v1458 = vmul.f32 %v547, %v1440
        %v1459 = vmul.f32 %v548, %v1440
        %v1460 = vmul.f32 %v549, %v1440
        %v1461 = vmul.f32 %v550, %v1440
        %v1462 = vmul.f32 %v551, %v1440
        %v1463 = vmul.f32 %v552, %v1440
        %v1464 = vmul.f32 %v553, %v1440
        %v1489 = vrot.slane %v1441, 1
        %v1490 = vrot.slane %v1442, 1
        %v1491 = vsel %vm868, %v1489, %v1490
        %v1492 = vrot.slane %v1443, 1
        %v1493 = vsel %vm868, %v1490, %v1492
        %v1494 = vrot.slane %v1444, 1
        %v1495 = vrot.slane %v1445, 1
        %v1496 = vsel %vm868, %v1494, %v1495
        %v1497 = vrot.slane %v1446, 1
        %v1498 = vsel %vm868, %v1495, %v1497
        %v1499 = vrot.slane %v1447, 1
        %v1500 = vrot.slane %v1448, 1
        %v1501 = vsel %vm868, %v1499, %v1500
        %v1502 = vrot.slane %v1449, 1
        %v1503 = vsel %vm868, %v1500, %v1502
        %v1504 = vrot.slane %v1450, 1
        %v1505 = vrot.slane %v1451, 1
        %v1506 = vsel %vm868, %v1504, %v1505
        %v1507 = vrot.slane %v1452, 1
        %v1508 = vsel %vm868, %v1505, %v1507
        %v1509 = vrot.slane %v1453, 1
        %v1510 = vrot.slane %v1454, 1
        %v1511 = vsel %vm868, %v1509, %v1510
        %v1512 = vrot.slane %v1455, 1
        %v1513 = vsel %vm868, %v1510, %v1512
        %v1514 = vrot.slane %v1456, 1
        %v1515 = vrot.slane %v1457, 1
        %v1516 = vsel %vm868, %v1514, %v1515
        %v1517 = vrot.slane %v1458, 1
        %v1518 = vsel %vm868, %v1515, %v1517
        %v1519 = vrot.slane %v1459, 1
        %v1520 = vrot.slane %v1460, 1
        %v1521 = vsel %vm868, %v1519, %v1520
        %v1522 = vrot.slane %v1461, 1
        %v1523 = vsel %vm868, %v1520, %v1522
        %v1524 = vrot.slane %v1462, 1
        %v1525 = vrot.slane %v1463, 1
        %v1526 = vsel %vm868, %v1524, %v1525
        %v1527 = vrot.slane %v1464, 1
        %v1528 = vsel %vm868, %v1525, %v1527
        %v1545 = vadd.f32 %v1421, %v1491
        %v1546 = vadd.f32 %v1422, %v1493
        %v1547 = vadd.f32 %v1423, %v1496
        %v1548 = vadd.f32 %v1424, %v1498
        %v1549 = vadd.f32 %v1425, %v1501
        %v1550 = vadd.f32 %v1426, %v1503
        %v1551 = vadd.f32 %v1427, %v1506
        %v1552 = vadd.f32 %v1428, %v1508
        %v1553 = vadd.f32 %v1429, %v1511
        %v1554 = vadd.f32 %v1430, %v1513
        %v1555 = vadd.f32 %v1431, %v1516
        %v1556 = vadd.f32 %v1432, %v1518
        %v1557 = vadd.f32 %v1433, %v1521
        %v1558 = vadd.f32 %v1434, %v1523
        %v1559 = vadd.f32 %v1435, %v1526
        %v1560 = vadd.f32 %v1436, %v1528
        %v1561 = vlaneseq
        %v1562 = vshrl.u32 %v1561, 7
        %v1563 = vsub.s32 1, %v1562
        %v1564 = vrot.slane %v563, %v1563
        %v1565 = vmul.f32 %v533, %v1564
        %v1566 = vmul.f32 %v534, %v1564
        %v1567 = vmul.f32 %v535, %v1564
        %v1568 = vmul.f32 %v536, %v1564
        %v1569 = vmul.f32 %v537, %v1564
        %v1570 = vmul.f32 %v538, %v1564
        %v1571 = vmul.f32 %v539, %v1564
        %v1572 = vmul.f32 %v540, %v1564
        %v1573 = vmul.f32 %v541, %v1564
        %v1574 = vmul.f32 %v542, %v1564
        %v1575 = vmul.f32 %v543, %v1564
        %v1576 = vmul.f32 %v544, %v1564
        %v1577 = vmul.f32 %v545, %v1564
        %v1578 = vmul.f32 %v546, %v1564
        %v1579 = vmul.f32 %v547, %v1564
        %v1580 = vmul.f32 %v548, %v1564
        %v1581 = vmul.f32 %v549, %v1564
        %v1582 = vmul.f32 %v550, %v1564
        %v1583 = vmul.f32 %v551, %v1564
        %v1584 = vmul.f32 %v552, %v1564
        %v1585 = vmul.f32 %v553, %v1564
        %v1586 = vmul.f32 %v554, %v1564
        %v1587 = vmul.f32 %v555, %v1564
        %v1588 = vmul.f32 %v556, %v1564
        %v1613 = vrot.slane %v1565, 1
        %v1614 = vrot.slane %v1566, 1
        %v1615 = vsel %vm868, %v1613, %v1614
        %v1616 = vrot.slane %v1567, 1
        %v1617 = vsel %vm868, %v1614, %v1616
        %v1618 = vrot.slane %v1568, 1
        %v1619 = vrot.slane %v1569, 1
        %v1620 = vsel %vm868, %v1618, %v1619
        %v1621 = vrot.slane %v1570, 1
        %v1622 = vsel %vm868, %v1619, %v1621
        %v1623 = vrot.slane %v1571, 1
        %v1624 = vrot.slane %v1572, 1
        %v1625 = vsel %vm868, %v1623, %v1624
        %v1626 = vrot.slane %v1573, 1
        %v1627 = vsel %vm868, %v1624, %v1626
        %v1628 = vrot.slane %v1574, 1
        %v1629 = vrot.slane %v1575, 1
        %v1630 = vsel %vm868, %v1628, %v1629
        %v1631 = vrot.slane %v1576, 1
        %v1632 = vsel %vm868, %v1629, %v1631
        %v1633 = vrot.slane %v1577, 1
        %v1634 = vrot.slane %v1578, 1
        %v1635 = vsel %vm868, %v1633, %v1634
        %v1636 = vrot.slane %v1579, 1
        %v1637 = vsel %vm868, %v1634, %v1636
        %v1638 = vrot.slane %v1580, 1
        %v1639 = vrot.slane %v1581, 1
        %v1640 = vsel %vm868, %v1638, %v1639
        %v1641 = vrot.slane %v1582, 1
        %v1642 = vsel %vm868, %v1639, %v1641
        %v1643 = vrot.slane %v1583, 1
        %v1644 = vrot.slane %v1584, 1
        %v1645 = vsel %vm868, %v1643, %v1644
        %v1646 = vrot.slane %v1585, 1
        %v1647 = vsel %vm868, %v1644, %v1646
        %v1648 = vrot.slane %v1586, 1
        %v1649 = vrot.slane %v1587, 1
        %v1650 = vsel %vm868, %v1648, %v1649
        %v1651 = vrot.slane %v1588, 1
        %v1652 = vsel %vm868, %v1649, %v1651
        %v1669 = vadd.f32 %v1545, %v1615
        %v1670 = vadd.f32 %v1546, %v1617
        %v1671 = vadd.f32 %v1547, %v1620
        %v1672 = vadd.f32 %v1548, %v1622
        %v1673 = vadd.f32 %v1549, %v1625
        %v1674 = vadd.f32 %v1550, %v1627
        %v1675 = vadd.f32 %v1551, %v1630
        %v1676 = vadd.f32 %v1552, %v1632
        %v1677 = vadd.f32 %v1553, %v1635
        %v1678 = vadd.f32 %v1554, %v1637
        %v1679 = vadd.f32 %v1555, %v1640
        %v1680 = vadd.f32 %v1556, %v1642
        %v1681 = vadd.f32 %v1557, %v1645
        %v1682 = vadd.f32 %v1558, %v1647
        %v1683 = vadd.f32 %v1559, %v1650
        %v1684 = vadd.f32 %v1560, %v1652
        %v1685 = vlaneseq
        %v1686 = vshrl.u32 %v1685, 7
        %v1687 = vsub.s32 2, %v1686
        %v1688 = vrot.slane %v557, %v1687
        %v1689 = vmul.f32 %v515, %v1688
        %v1690 = vmul.f32 %v516, %v1688
        %v1691 = vmul.f32 %v517, %v1688
        %v1692 = vmul.f32 %v518, %v1688
        %v1693 = vmul.f32 %v519, %v1688
        %v1694 = vmul.f32 %v520, %v1688
        %v1695 = vmul.f32 %v521, %v1688
        %v1696 = vmul.f32 %v522, %v1688
        %v1697 = vmul.f32 %v523, %v1688
        %v1698 = vmul.f32 %v524, %v1688
        %v1699 = vmul.f32 %v525, %v1688
        %v1700 = vmul.f32 %v526, %v1688
        %v1701 = vmul.f32 %v527, %v1688
        %v1702 = vmul.f32 %v528, %v1688
        %v1703 = vmul.f32 %v529, %v1688
        %v1704 = vmul.f32 %v530, %v1688
        %v1705 = vmul.f32 %v531, %v1688
        %v1706 = vmul.f32 %v532, %v1688
        %v1707 = vmul.f32 %v533, %v1688
        %v1708 = vmul.f32 %v534, %v1688
        %v1709 = vmul.f32 %v535, %v1688
        %v1710 = vmul.f32 %v536, %v1688
        %v1711 = vmul.f32 %v537, %v1688
        %v1712 = vmul.f32 %v538, %v1688
        %vm1737 = vcmask 1045504
        %v1738 = vrot.slane %v1689, 2
        %v1739 = vrot.slane %v1690, 2
        %v1740 = vsel %vm1737, %v1738, %v1739
        %v1741 = vrot.slane %v1691, 2
        %v1742 = vsel %vm1737, %v1739, %v1741
        %v1743 = vrot.slane %v1692, 2
        %v1744 = vrot.slane %v1693, 2
        %v1745 = vsel %vm1737, %v1743, %v1744
        %v1746 = vrot.slane %v1694, 2
        %v1747 = vsel %vm1737, %v1744, %v1746
        %v1748 = vrot.slane %v1695, 2
        %v1749 = vrot.slane %v1696, 2
        %v1750 = vsel %vm1737, %v1748, %v1749
        %v1751 = vrot.slane %v1697, 2
        %v1752 = vsel %vm1737, %v1749, %v1751
        %v1753 = vrot.slane %v1698, 2
        %v1754 = vrot.slane %v1699, 2
        %v1755 = vsel %vm1737, %v1753, %v1754
        %v1756 = vrot.slane %v1700, 2
        %v1757 = vsel %vm1737, %v1754, %v1756
        %v1758 = vrot.slane %v1701, 2
        %v1759 = vrot.slane %v1702, 2
        %v1760 = vsel %vm1737, %v1758, %v1759
        %v1761 = vrot.slane %v1703, 2
        %v1762 = vsel %vm1737, %v1759, %v1761
        %v1763 = vrot.slane %v1704, 2
        %v1764 = vrot.slane %v1705, 2
        %v1765 = vsel %vm1737, %v1763, %v1764
        %v1766 = vrot.slane %v1706, 2
        %v1767 = vsel %vm1737, %v1764, %v1766
        %v1768 = vrot.slane %v1707, 2
        %v1769 = vrot.slane %v1708, 2
        %v1770 = vsel %vm1737, %v1768, %v1769
        %v1771 = vrot.slane %v1709, 2
        %v1772 = vsel %vm1737, %v1769, %v1771
        %v1773 = vrot.slane %v1710, 2
        %v1774 = vrot.slane %v1711, 2
        %v1775 = vsel %vm1737, %v1773, %v1774
        %v1776 = vrot.slane %v1712, 2
        %v1777 = vsel %vm1737, %v1774, %v1776
        %v1794 = vadd.f32 %v1669, %v1740
        %v1795 = vadd.f32 %v1670, %v1742
        %v1796 = vadd.f32 %v1671, %v1745
        %v1797 = vadd.f32 %v1672, %v1747
        %v1798 = vadd.f32 %v1673, %v1750
        %v1799 = vadd.f32 %v1674, %v1752
        %v1800 = vadd.f32 %v1675, %v1755
        %v1801 = vadd.f32 %v1676, %v1757
        %v1802 = vadd.f32 %v1677, %v1760
        %v1803 = vadd.f32 %v1678, %v1762
        %v1804 = vadd.f32 %v1679, %v1765
        %v1805 = vadd.f32 %v1680, %v1767
        %v1806 = vadd.f32 %v1681, %v1770
        %v1807 = vadd.f32 %v1682, %v1772
        %v1808 = vadd.f32 %v1683, %v1775
        %v1809 = vadd.f32 %v1684, %v1777
        %v1810 = vlaneseq
        %v1811 = vshrl.u32 %v1810, 7
        %v1812 = vsub.s32 2, %v1811
        %v1813 = vrot.slane %v558, %v1812
        %v1814 = vmul.f32 %v518, %v1813
        %v1815 = vmul.f32 %v519, %v1813
        %v1816 = vmul.f32 %v520, %v1813
        %v1817 = vmul.f32 %v521, %v1813
        %v1818 = vmul.f32 %v522, %v1813
        %v1819 = vmul.f32 %v523, %v1813
        %v1820 = vmul.f32 %v524, %v1813
        %v1821 = vmul.f32 %v525, %v1813
        %v1822 = vmul.f32 %v526, %v1813
        %v1823 = vmul.f32 %v527, %v1813
        %v1824 = vmul.f32 %v528, %v1813
        %v1825 = vmul.f32 %v529, %v1813
        %v1826 = vmul.f32 %v530, %v1813
        %v1827 = vmul.f32 %v531, %v1813
        %v1828 = vmul.f32 %v532, %v1813
        %v1829 = vmul.f32 %v533, %v1813
        %v1830 = vmul.f32 %v534, %v1813
        %v1831 = vmul.f32 %v535, %v1813
        %v1832 = vmul.f32 %v536, %v1813
        %v1833 = vmul.f32 %v537, %v1813
        %v1834 = vmul.f32 %v538, %v1813
        %v1835 = vmul.f32 %v539, %v1813
        %v1836 = vmul.f32 %v540, %v1813
        %v1837 = vmul.f32 %v541, %v1813
        %v1862 = vrot.slane %v1814, 2
        %v1863 = vrot.slane %v1815, 2
        %v1864 = vsel %vm1737, %v1862, %v1863
        %v1865 = vrot.slane %v1816, 2
        %v1866 = vsel %vm1737, %v1863, %v1865
        %v1867 = vrot.slane %v1817, 2
        %v1868 = vrot.slane %v1818, 2
        %v1869 = vsel %vm1737, %v1867, %v1868
        %v1870 = vrot.slane %v1819, 2
        %v1871 = vsel %vm1737, %v1868, %v1870
        %v1872 = vrot.slane %v1820, 2
        %v1873 = vrot.slane %v1821, 2
        %v1874 = vsel %vm1737, %v1872, %v1873
        %v1875 = vrot.slane %v1822, 2
        %v1876 = vsel %vm1737, %v1873, %v1875
        %v1877 = vrot.slane %v1823, 2
        %v1878 = vrot.slane %v1824, 2
        %v1879 = vsel %vm1737, %v1877, %v1878
        %v1880 = vrot.slane %v1825, 2
        %v1881 = vsel %vm1737, %v1878, %v1880
        %v1882 = vrot.slane %v1826, 2
        %v1883 = vrot.slane %v1827, 2
        %v1884 = vsel %vm1737, %v1882, %v1883
        %v1885 = vrot.slane %v1828, 2
        %v1886 = vsel %vm1737, %v1883, %v1885
        %v1887 = vrot.slane %v1829, 2
        %v1888 = vrot.slane %v1830, 2
        %v1889 = vsel %vm1737, %v1887, %v1888
        %v1890 = vrot.slane %v1831, 2
        %v1891 = vsel %vm1737, %v1888, %v1890
        %v1892 = vrot.slane %v1832, 2
        %v1893 = vrot.slane %v1833, 2
        %v1894 = vsel %vm1737, %v1892, %v1893
        %v1895 = vrot.slane %v1834, 2
        %v1896 = vsel %vm1737, %v1893, %v1895
        %v1897 = vrot.slane %v1835, 2
        %v1898 = vrot.slane %v1836, 2
        %v1899 = vsel %vm1737, %v1897, %v1898
        %v1900 = vrot.slane %v1837, 2
        %v1901 = vsel %vm1737, %v1898, %v1900
        %v1918 = vadd.f32 %v1794, %v1864
        %v1919 = vadd.f32 %v1795, %v1866
        %v1920 = vadd.f32 %v1796, %v1869
        %v1921 = vadd.f32 %v1797, %v1871
        %v1922 = vadd.f32 %v1798, %v1874
        %v1923 = vadd.f32 %v1799, %v1876
        %v1924 = vadd.f32 %v1800, %v1879
        %v1925 = vadd.f32 %v1801, %v1881
        %v1926 = vadd.f32 %v1802, %v1884
        %v1927 = vadd.f32 %v1803, %v1886
        %v1928 = vadd.f32 %v1804, %v1889
        %v1929 = vadd.f32 %v1805, %v1891
        %v1930 = vadd.f32 %v1806, %v1894
        %v1931 = vadd.f32 %v1807, %v1896
        %v1932 = vadd.f32 %v1808, %v1899
        %v1933 = vadd.f32 %v1809, %v1901
        %v1934 = vlaneseq
        %v1935 = vshrl.u32 %v1934, 7
        %v1936 = vsub.s32 2, %v1935
        %v1937 = vrot.slane %v559, %v1936
        %v1938 = vmul.f32 %v521, %v1937
        %v1939 = vmul.f32 %v522, %v1937
        %v1940 = vmul.f32 %v523, %v1937
        %v1941 = vmul.f32 %v524, %v1937
        %v1942 = vmul.f32 %v525, %v1937
        %v1943 = vmul.f32 %v526, %v1937
        %v1944 = vmul.f32 %v527, %v1937
        %v1945 = vmul.f32 %v528, %v1937
        %v1946 = vmul.f32 %v529, %v1937
        %v1947 = vmul.f32 %v530, %v1937
        %v1948 = vmul.f32 %v531, %v1937
        %v1949 = vmul.f32 %v532, %v1937
        %v1950 = vmul.f32 %v533, %v1937
        %v1951 = vmul.f32 %v534, %v1937
        %v1952 = vmul.f32 %v535, %v1937
        %v1953 = vmul.f32 %v536, %v1937
        %v1954 = vmul.f32 %v537, %v1937
        %v1955 = vmul.f32 %v538, %v1937
        %v1956 = vmul.f32 %v539, %v1937
        %v1957 = vmul.f32 %v540, %v1937
        %v1958 = vmul.f32 %v541, %v1937
        %v1959 = vmul.f32 %v542, %v1937
        %v1960 = vmul.f32 %v543, %v1937
        %v1961 = vmul.f32 %v544, %v1937
        %v1986 = vrot.slane %v1938, 2
        %v1987 = vrot.slane %v1939, 2
        %v1988 = vsel %vm1737, %v1986, %v1987
        %v1989 = vrot.slane %v1940, 2
        %v1990 = vsel %vm1737, %v1987, %v1989
        %v1991 = vrot.slane %v1941, 2
        %v1992 = vrot.slane %v1942, 2
        %v1993 = vsel %vm1737, %v1991, %v1992
        %v1994 = vrot.slane %v1943, 2
        %v1995 = vsel %vm1737, %v1992, %v1994
        %v1996 = vrot.slane %v1944, 2
        %v1997 = vrot.slane %v1945, 2
        %v1998 = vsel %vm1737, %v1996, %v1997
        %v1999 = vrot.slane %v1946, 2
        %v2000 = vsel %vm1737, %v1997, %v1999
        %v2001 = vrot.slane %v1947, 2
        %v2002 = vrot.slane %v1948, 2
        %v2003 = vsel %vm1737, %v2001, %v2002
        %v2004 = vrot.slane %v1949, 2
        %v2005 = vsel %vm1737, %v2002, %v2004
        %v2006 = vrot.slane %v1950, 2
        %v2007 = vrot.slane %v1951, 2
        %v2008 = vsel %vm1737, %v2006, %v2007
        %v2009 = vrot.slane %v1952, 2
        %v2010 = vsel %vm1737, %v2007, %v2009
        %v2011 = vrot.slane %v1953, 2
        %v2012 = vrot.slane %v1954, 2
        %v2013 = vsel %vm1737, %v2011, %v2012
        %v2014 = vrot.slane %v1955, 2
        %v2015 = vsel %vm1737, %v2012, %v2014
        %v2016 = vrot.slane %v1956, 2
        %v2017 = vrot.slane %v1957, 2
        %v2018 = vsel %vm1737, %v2016, %v2017
        %v2019 = vrot.slane %v1958, 2
        %v2020 = vsel %vm1737, %v2017, %v2019
        %v2021 = vrot.slane %v1959, 2
        %v2022 = vrot.slane %v1960, 2
        %v2023 = vsel %vm1737, %v2021, %v2022
        %v2024 = vrot.slane %v1961, 2
        %v2025 = vsel %vm1737, %v2022, %v2024
        %v2042 = vadd.f32 %v1918, %v1988
        %v2043 = vadd.f32 %v1919, %v1990
        %v2044 = vadd.f32 %v1920, %v1993
        %v2045 = vadd.f32 %v1921, %v1995
        %v2046 = vadd.f32 %v1922, %v1998
        %v2047 = vadd.f32 %v1923, %v2000
        %v2048 = vadd.f32 %v1924, %v2003
        %v2049 = vadd.f32 %v1925, %v2005
        %v2050 = vadd.f32 %v1926, %v2008
        %v2051 = vadd.f32 %v1927, %v2010
        %v2052 = vadd.f32 %v1928, %v2013
        %v2053 = vadd.f32 %v1929, %v2015
        %v2054 = vadd.f32 %v1930, %v2018
        %v2055 = vadd.f32 %v1931, %v2020
        %v2056 = vadd.f32 %v1932, %v2023
        %v2057 = vadd.f32 %v1933, %v2025
        %v2058 = vlaneseq
        %v2059 = vshrl.u32 %v2058, 7
        %v2060 = vsub.s32 2, %v2059
        %v2061 = vrot.slane %v560, %v2060
        %v2062 = vmul.f32 %v524, %v2061
        %v2063 = vmul.f32 %v525, %v2061
        %v2064 = vmul.f32 %v526, %v2061
        %v2065 = vmul.f32 %v527, %v2061
        %v2066 = vmul.f32 %v528, %v2061
        %v2067 = vmul.f32 %v529, %v2061
        %v2068 = vmul.f32 %v530, %v2061
        %v2069 = vmul.f32 %v531, %v2061
        %v2070 = vmul.f32 %v532, %v2061
        %v2071 = vmul.f32 %v533, %v2061
        %v2072 = vmul.f32 %v534, %v2061
        %v2073 = vmul.f32 %v535, %v2061
        %v2074 = vmul.f32 %v536, %v2061
        %v2075 = vmul.f32 %v537, %v2061
        %v2076 = vmul.f32 %v538, %v2061
        %v2077 = vmul.f32 %v539, %v2061
        %v2078 = vmul.f32 %v540, %v2061
        %v2079 = vmul.f32 %v541, %v2061
        %v2080 = vmul.f32 %v542, %v2061
        %v2081 = vmul.f32 %v543, %v2061
        %v2082 = vmul.f32 %v544, %v2061
        %v2083 = vmul.f32 %v545, %v2061
        %v2084 = vmul.f32 %v546, %v2061
        %v2085 = vmul.f32 %v547, %v2061
        %v2110 = vrot.slane %v2062, 2
        %v2111 = vrot.slane %v2063, 2
        %v2112 = vsel %vm1737, %v2110, %v2111
        %v2113 = vrot.slane %v2064, 2
        %v2114 = vsel %vm1737, %v2111, %v2113
        %v2115 = vrot.slane %v2065, 2
        %v2116 = vrot.slane %v2066, 2
        %v2117 = vsel %vm1737, %v2115, %v2116
        %v2118 = vrot.slane %v2067, 2
        %v2119 = vsel %vm1737, %v2116, %v2118
        %v2120 = vrot.slane %v2068, 2
        %v2121 = vrot.slane %v2069, 2
        %v2122 = vsel %vm1737, %v2120, %v2121
        %v2123 = vrot.slane %v2070, 2
        %v2124 = vsel %vm1737, %v2121, %v2123
        %v2125 = vrot.slane %v2071, 2
        %v2126 = vrot.slane %v2072, 2
        %v2127 = vsel %vm1737, %v2125, %v2126
        %v2128 = vrot.slane %v2073, 2
        %v2129 = vsel %vm1737, %v2126, %v2128
        %v2130 = vrot.slane %v2074, 2
        %v2131 = vrot.slane %v2075, 2
        %v2132 = vsel %vm1737, %v2130, %v2131
        %v2133 = vrot.slane %v2076, 2
        %v2134 = vsel %vm1737, %v2131, %v2133
        %v2135 = vrot.slane %v2077, 2
        %v2136 = vrot.slane %v2078, 2
        %v2137 = vsel %vm1737, %v2135, %v2136
        %v2138 = vrot.slane %v2079, 2
        %v2139 = vsel %vm1737, %v2136, %v2138
        %v2140 = vrot.slane %v2080, 2
        %v2141 = vrot.slane %v2081, 2
        %v2142 = vsel %vm1737, %v2140, %v2141
        %v2143 = vrot.slane %v2082, 2
        %v2144 = vsel %vm1737, %v2141, %v2143
        %v2145 = vrot.slane %v2083, 2
        %v2146 = vrot.slane %v2084, 2
        %v2147 = vsel %vm1737, %v2145, %v2146
        %v2148 = vrot.slane %v2085, 2
        %v2149 = vsel %vm1737, %v2146, %v2148
        %v2166 = vadd.f32 %v2042, %v2112
        %v2167 = vadd.f32 %v2043, %v2114
        %v2168 = vadd.f32 %v2044, %v2117
        %v2169 = vadd.f32 %v2045, %v2119
        %v2170 = vadd.f32 %v2046, %v2122
        %v2171 = vadd.f32 %v2047, %v2124
        %v2172 = vadd.f32 %v2048, %v2127
        %v2173 = vadd.f32 %v2049, %v2129
        %v2174 = vadd.f32 %v2050, %v2132
        %v2175 = vadd.f32 %v2051, %v2134
        %v2176 = vadd.f32 %v2052, %v2137
        %v2177 = vadd.f32 %v2053, %v2139
        %v2178 = vadd.f32 %v2054, %v2142
        %v2179 = vadd.f32 %v2055, %v2144
        %v2180 = vadd.f32 %v2056, %v2147
        %v2181 = vadd.f32 %v2057, %v2149
        %v2182 = vlaneseq
        %v2183 = vshrl.u32 %v2182, 7
        %v2184 = vsub.s32 2, %v2183
        %v2185 = vrot.slane %v561, %v2184
        %v2186 = vmul.f32 %v527, %v2185
        %v2187 = vmul.f32 %v528, %v2185
        %v2188 = vmul.f32 %v529, %v2185
        %v2189 = vmul.f32 %v530, %v2185
        %v2190 = vmul.f32 %v531, %v2185
        %v2191 = vmul.f32 %v532, %v2185
        %v2192 = vmul.f32 %v533, %v2185
        %v2193 = vmul.f32 %v534, %v2185
        %v2194 = vmul.f32 %v535, %v2185
        %v2195 = vmul.f32 %v536, %v2185
        %v2196 = vmul.f32 %v537, %v2185
        %v2197 = vmul.f32 %v538, %v2185
        %v2198 = vmul.f32 %v539, %v2185
        %v2199 = vmul.f32 %v540, %v2185
        %v2200 = vmul.f32 %v541, %v2185
        %v2201 = vmul.f32 %v542, %v2185
        %v2202 = vmul.f32 %v543, %v2185
        %v2203 = vmul.f32 %v544, %v2185
        %v2204 = vmul.f32 %v545, %v2185
        %v2205 = vmul.f32 %v546, %v2185
        %v2206 = vmul.f32 %v547, %v2185
        %v2207 = vmul.f32 %v548, %v2185
        %v2208 = vmul.f32 %v549, %v2185
        %v2209 = vmul.f32 %v550, %v2185
        %v2234 = vrot.slane %v2186, 2
        %v2235 = vrot.slane %v2187, 2
        %v2236 = vsel %vm1737, %v2234, %v2235
        %v2237 = vrot.slane %v2188, 2
        %v2238 = vsel %vm1737, %v2235, %v2237
        %v2239 = vrot.slane %v2189, 2
        %v2240 = vrot.slane %v2190, 2
        %v2241 = vsel %vm1737, %v2239, %v2240
        %v2242 = vrot.slane %v2191, 2
        %v2243 = vsel %vm1737, %v2240, %v2242
        %v2244 = vrot.slane %v2192, 2
        %v2245 = vrot.slane %v2193, 2
        %v2246 = vsel %vm1737, %v2244, %v2245
        %v2247 = vrot.slane %v2194, 2
        %v2248 = vsel %vm1737, %v2245, %v2247
        %v2249 = vrot.slane %v2195, 2
        %v2250 = vrot.slane %v2196, 2
        %v2251 = vsel %vm1737, %v2249, %v2250
        %v2252 = vrot.slane %v2197, 2
        %v2253 = vsel %vm1737, %v2250, %v2252
        %v2254 = vrot.slane %v2198, 2
        %v2255 = vrot.slane %v2199, 2
        %v2256 = vsel %vm1737, %v2254, %v2255
        %v2257 = vrot.slane %v2200, 2
        %v2258 = vsel %vm1737, %v2255, %v2257
        %v2259 = vrot.slane %v2201, 2
        %v2260 = vrot.slane %v2202, 2
        %v2261 = vsel %vm1737, %v2259, %v2260
        %v2262 = vrot.slane %v2203, 2
        %v2263 = vsel %vm1737, %v2260, %v2262
        %v2264 = vrot.slane %v2204, 2
        %v2265 = vrot.slane %v2205, 2
        %v2266 = vsel %vm1737, %v2264, %v2265
        %v2267 = vrot.slane %v2206, 2
        %v2268 = vsel %vm1737, %v2265, %v2267
        %v2269 = vrot.slane %v2207, 2
        %v2270 = vrot.slane %v2208, 2
        %v2271 = vsel %vm1737, %v2269, %v2270
        %v2272 = vrot.slane %v2209, 2
        %v2273 = vsel %vm1737, %v2270, %v2272
        %v2290 = vadd.f32 %v2166, %v2236
        %v2291 = vadd.f32 %v2167, %v2238
        %v2292 = vadd.f32 %v2168, %v2241
        %v2293 = vadd.f32 %v2169, %v2243
        %v2294 = vadd.f32 %v2170, %v2246
        %v2295 = vadd.f32 %v2171, %v2248
        %v2296 = vadd.f32 %v2172, %v2251
        %v2297 = vadd.f32 %v2173, %v2253
        %v2298 = vadd.f32 %v2174, %v2256
        %v2299 = vadd.f32 %v2175, %v2258
        %v2300 = vadd.f32 %v2176, %v2261
        %v2301 = vadd.f32 %v2177, %v2263
        %v2302 = vadd.f32 %v2178, %v2266
        %v2303 = vadd.f32 %v2179, %v2268
        %v2304 = vadd.f32 %v2180, %v2271
        %v2305 = vadd.f32 %v2181, %v2273
        %v2306 = vlaneseq
        %v2307 = vshrl.u32 %v2306, 7
        %v2308 = vsub.s32 2, %v2307
        %v2309 = vrot.slane %v562, %v2308
        %v2310 = vmul.f32 %v530, %v2309
        %v2311 = vmul.f32 %v531, %v2309
        %v2312 = vmul.f32 %v532, %v2309
        %v2313 = vmul.f32 %v533, %v2309
        %v2314 = vmul.f32 %v534, %v2309
        %v2315 = vmul.f32 %v535, %v2309
        %v2316 = vmul.f32 %v536, %v2309
        %v2317 = vmul.f32 %v537, %v2309
        %v2318 = vmul.f32 %v538, %v2309
        %v2319 = vmul.f32 %v539, %v2309
        %v2320 = vmul.f32 %v540, %v2309
        %v2321 = vmul.f32 %v541, %v2309
        %v2322 = vmul.f32 %v542, %v2309
        %v2323 = vmul.f32 %v543, %v2309
        %v2324 = vmul.f32 %v544, %v2309
        %v2325 = vmul.f32 %v545, %v2309
        %v2326 = vmul.f32 %v546, %v2309
        %v2327 = vmul.f32 %v547, %v2309
        %v2328 = vmul.f32 %v548, %v2309
        %v2329 = vmul.f32 %v549, %v2309
        %v2330 = vmul.f32 %v550, %v2309
        %v2331 = vmul.f32 %v551, %v2309
        %v2332 = vmul.f32 %v552, %v2309
        %v2333 = vmul.f32 %v553, %v2309
        %v2358 = vrot.slane %v2310, 2
        %v2359 = vrot.slane %v2311, 2
        %v2360 = vsel %vm1737, %v2358, %v2359
        %v2361 = vrot.slane %v2312, 2
        %v2362 = vsel %vm1737, %v2359, %v2361
        %v2363 = vrot.slane %v2313, 2
        %v2364 = vrot.slane %v2314, 2
        %v2365 = vsel %vm1737, %v2363, %v2364
        %v2366 = vrot.slane %v2315, 2
        %v2367 = vsel %vm1737, %v2364, %v2366
        %v2368 = vrot.slane %v2316, 2
        %v2369 = vrot.slane %v2317, 2
        %v2370 = vsel %vm1737, %v2368, %v2369
        %v2371 = vrot.slane %v2318, 2
        %v2372 = vsel %vm1737, %v2369, %v2371
        %v2373 = vrot.slane %v2319, 2
        %v2374 = vrot.slane %v2320, 2
        %v2375 = vsel %vm1737, %v2373, %v2374
        %v2376 = vrot.slane %v2321, 2
        %v2377 = vsel %vm1737, %v2374, %v2376
        %v2378 = vrot.slane %v2322, 2
        %v2379 = vrot.slane %v2323, 2
        %v2380 = vsel %vm1737, %v2378, %v2379
        %v2381 = vrot.slane %v2324, 2
        %v2382 = vsel %vm1737, %v2379, %v2381
        %v2383 = vrot.slane %v2325, 2
        %v2384 = vrot.slane %v2326, 2
        %v2385 = vsel %vm1737, %v2383, %v2384
        %v2386 = vrot.slane %v2327, 2
        %v2387 = vsel %vm1737, %v2384, %v2386
        %v2388 = vrot.slane %v2328, 2
        %v2389 = vrot.slane %v2329, 2
        %v2390 = vsel %vm1737, %v2388, %v2389
        %v2391 = vrot.slane %v2330, 2
        %v2392 = vsel %vm1737, %v2389, %v2391
        %v2393 = vrot.slane %v2331, 2
        %v2394 = vrot.slane %v2332, 2
        %v2395 = vsel %vm1737, %v2393, %v2394
        %v2396 = vrot.slane %v2333, 2
        %v2397 = vsel %vm1737, %v2394, %v2396
        %v2414 = vadd.f32 %v2290, %v2360
        %v2415 = vadd.f32 %v2291, %v2362
        %v2416 = vadd.f32 %v2292, %v2365
        %v2417 = vadd.f32 %v2293, %v2367
        %v2418 = vadd.f32 %v2294, %v2370
        %v2419 = vadd.f32 %v2295, %v2372
        %v2420 = vadd.f32 %v2296, %v2375
        %v2421 = vadd.f32 %v2297, %v2377
        %v2422 = vadd.f32 %v2298, %v2380
        %v2423 = vadd.f32 %v2299, %v2382
        %v2424 = vadd.f32 %v2300, %v2385
        %v2425 = vadd.f32 %v2301, %v2387
        %v2426 = vadd.f32 %v2302, %v2390
        %v2427 = vadd.f32 %v2303, %v2392
        %v2428 = vadd.f32 %v2304, %v2395
        %v2429 = vadd.f32 %v2305, %v2397
        %v2430 = vlaneseq
        %v2431 = vshrl.u32 %v2430, 7
        %v2432 = vsub.s32 2, %v2431
        %v2433 = vrot.slane %v563, %v2432
        %v2434 = vmul.f32 %v533, %v2433
        %v2435 = vmul.f32 %v534, %v2433
        %v2436 = vmul.f32 %v535, %v2433
        %v2437 = vmul.f32 %v536, %v2433
        %v2438 = vmul.f32 %v537, %v2433
        %v2439 = vmul.f32 %v538, %v2433
        %v2440 = vmul.f32 %v539, %v2433
        %v2441 = vmul.f32 %v540, %v2433
        %v2442 = vmul.f32 %v541, %v2433
        %v2443 = vmul.f32 %v542, %v2433
        %v2444 = vmul.f32 %v543, %v2433
        %v2445 = vmul.f32 %v544, %v2433
        %v2446 = vmul.f32 %v545, %v2433
        %v2447 = vmul.f32 %v546, %v2433
        %v2448 = vmul.f32 %v547, %v2433
        %v2449 = vmul.f32 %v548, %v2433
        %v2450 = vmul.f32 %v549, %v2433
        %v2451 = vmul.f32 %v550, %v2433
        %v2452 = vmul.f32 %v551, %v2433
        %v2453 = vmul.f32 %v552, %v2433
        %v2454 = vmul.f32 %v553, %v2433
        %v2455 = vmul.f32 %v554, %v2433
        %v2456 = vmul.f32 %v555, %v2433
        %v2457 = vmul.f32 %v556, %v2433
        %v2482 = vrot.slane %v2434, 2
        %v2483 = vrot.slane %v2435, 2
        %v2484 = vsel %vm1737, %v2482, %v2483
        %v2485 = vrot.slane %v2436, 2
        %v2486 = vsel %vm1737, %v2483, %v2485
        %v2487 = vrot.slane %v2437, 2
        %v2488 = vrot.slane %v2438, 2
        %v2489 = vsel %vm1737, %v2487, %v2488
        %v2490 = vrot.slane %v2439, 2
        %v2491 = vsel %vm1737, %v2488, %v2490
        %v2492 = vrot.slane %v2440, 2
        %v2493 = vrot.slane %v2441, 2
        %v2494 = vsel %vm1737, %v2492, %v2493
        %v2495 = vrot.slane %v2442, 2
        %v2496 = vsel %vm1737, %v2493, %v2495
        %v2497 = vrot.slane %v2443, 2
        %v2498 = vrot.slane %v2444, 2
        %v2499 = vsel %vm1737, %v2497, %v2498
        %v2500 = vrot.slane %v2445, 2
        %v2501 = vsel %vm1737, %v2498, %v2500
        %v2502 = vrot.slane %v2446, 2
        %v2503 = vrot.slane %v2447, 2
        %v2504 = vsel %vm1737, %v2502, %v2503
        %v2505 = vrot.slane %v2448, 2
        %v2506 = vsel %vm1737, %v2503, %v2505
        %v2507 = vrot.slane %v2449, 2
        %v2508 = vrot.slane %v2450, 2
        %v2509 = vsel %vm1737, %v2507, %v2508
        %v2510 = vrot.slane %v2451, 2
        %v2511 = vsel %vm1737, %v2508, %v2510
        %v2512 = vrot.slane %v2452, 2
        %v2513 = vrot.slane %v2453, 2
        %v2514 = vsel %vm1737, %v2512, %v2513
        %v2515 = vrot.slane %v2454, 2
        %v2516 = vsel %vm1737, %v2513, %v2515
        %v2517 = vrot.slane %v2455, 2
        %v2518 = vrot.slane %v2456, 2
        %v2519 = vsel %vm1737, %v2517, %v2518
        %v2520 = vrot.slane %v2457, 2
        %v2521 = vsel %vm1737, %v2518, %v2520
        %v2538 = vadd.f32 %v2414, %v2484
        %v2539 = vadd.f32 %v2415, %v2486
        %v2540 = vadd.f32 %v2416, %v2489
        %v2541 = vadd.f32 %v2417, %v2491
        %v2542 = vadd.f32 %v2418, %v2494
        %v2543 = vadd.f32 %v2419, %v2496
        %v2544 = vadd.f32 %v2420, %v2499
        %v2545 = vadd.f32 %v2421, %v2501
        %v2546 = vadd.f32 %v2422, %v2504
        %v2547 = vadd.f32 %v2423, %v2506
        %v2548 = vadd.f32 %v2424, %v2509
        %v2549 = vadd.f32 %v2425, %v2511
        %v2550 = vadd.f32 %v2426, %v2514
        %v2551 = vadd.f32 %v2427, %v2516
        %v2552 = vadd.f32 %v2428, %v2519
        %v2553 = vadd.f32 %v2429, %v2521
        %v2554 = vlaneseq
        %v2555 = vshrl.u32 %v2554, 7
        %v2556 = vsub.s32 3, %v2555
        %v2557 = vrot.slane %v557, %v2556
        %v2558 = vmul.f32 %v515, %v2557
        %v2559 = vmul.f32 %v516, %v2557
        %v2560 = vmul.f32 %v517, %v2557
        %v2561 = vmul.f32 %v518, %v2557
        %v2562 = vmul.f32 %v519, %v2557
        %v2563 = vmul.f32 %v520, %v2557
        %v2564 = vmul.f32 %v521, %v2557
        %v2565 = vmul.f32 %v522, %v2557
        %v2566 = vmul.f32 %v523, %v2557
        %v2567 = vmul.f32 %v524, %v2557
        %v2568 = vmul.f32 %v525, %v2557
        %v2569 = vmul.f32 %v526, %v2557
        %v2570 = vmul.f32 %v527, %v2557
        %v2571 = vmul.f32 %v528, %v2557
        %v2572 = vmul.f32 %v529, %v2557
        %v2573 = vmul.f32 %v530, %v2557
        %v2574 = vmul.f32 %v531, %v2557
        %v2575 = vmul.f32 %v532, %v2557
        %v2576 = vmul.f32 %v533, %v2557
        %v2577 = vmul.f32 %v534, %v2557
        %v2578 = vmul.f32 %v535, %v2557
        %v2579 = vmul.f32 %v536, %v2557
        %v2580 = vmul.f32 %v537, %v2557
        %v2581 = vmul.f32 %v538, %v2557
        %vm2606 = vcmask 1044480
        %v2607 = vrot.slane %v2558, 3
        %v2608 = vrot.slane %v2559, 3
        %v2609 = vsel %vm2606, %v2607, %v2608
        %v2610 = vrot.slane %v2560, 3
        %v2611 = vsel %vm2606, %v2608, %v2610
        %v2612 = vrot.slane %v2561, 3
        %v2613 = vrot.slane %v2562, 3
        %v2614 = vsel %vm2606, %v2612, %v2613
        %v2615 = vrot.slane %v2563, 3
        %v2616 = vsel %vm2606, %v2613, %v2615
        %v2617 = vrot.slane %v2564, 3
        %v2618 = vrot.slane %v2565, 3
        %v2619 = vsel %vm2606, %v2617, %v2618
        %v2620 = vrot.slane %v2566, 3
        %v2621 = vsel %vm2606, %v2618, %v2620
        %v2622 = vrot.slane %v2567, 3
        %v2623 = vrot.slane %v2568, 3
        %v2624 = vsel %vm2606, %v2622, %v2623
        %v2625 = vrot.slane %v2569, 3
        %v2626 = vsel %vm2606, %v2623, %v2625
        %v2627 = vrot.slane %v2570, 3
        %v2628 = vrot.slane %v2571, 3
        %v2629 = vsel %vm2606, %v2627, %v2628
        %v2630 = vrot.slane %v2572, 3
        %v2631 = vsel %vm2606, %v2628, %v2630
        %v2632 = vrot.slane %v2573, 3
        %v2633 = vrot.slane %v2574, 3
        %v2634 = vsel %vm2606, %v2632, %v2633
        %v2635 = vrot.slane %v2575, 3
        %v2636 = vsel %vm2606, %v2633, %v2635
        %v2637 = vrot.slane %v2576, 3
        %v2638 = vrot.slane %v2577, 3
        %v2639 = vsel %vm2606, %v2637, %v2638
        %v2640 = vrot.slane %v2578, 3
        %v2641 = vsel %vm2606, %v2638, %v2640
        %v2642 = vrot.slane %v2579, 3
        %v2643 = vrot.slane %v2580, 3
        %v2644 = vsel %vm2606, %v2642, %v2643
        %v2645 = vrot.slane %v2581, 3
        %v2646 = vsel %vm2606, %v2643, %v2645
        %v2663 = vadd.f32 %v2538, %v2609
        %v2664 = vadd.f32 %v2539, %v2611
        %v2665 = vadd.f32 %v2540, %v2614
        %v2666 = vadd.f32 %v2541, %v2616
        %v2667 = vadd.f32 %v2542, %v2619
        %v2668 = vadd.f32 %v2543, %v2621
        %v2669 = vadd.f32 %v2544, %v2624
        %v2670 = vadd.f32 %v2545, %v2626
        %v2671 = vadd.f32 %v2546, %v2629
        %v2672 = vadd.f32 %v2547, %v2631
        %v2673 = vadd.f32 %v2548, %v2634
        %v2674 = vadd.f32 %v2549, %v2636
        %v2675 = vadd.f32 %v2550, %v2639
        %v2676 = vadd.f32 %v2551, %v2641
        %v2677 = vadd.f32 %v2552, %v2644
        %v2678 = vadd.f32 %v2553, %v2646
        %v2679 = vlaneseq
        %v2680 = vshrl.u32 %v2679, 7
        %v2681 = vsub.s32 3, %v2680
        %v2682 = vrot.slane %v558, %v2681
        %v2683 = vmul.f32 %v518, %v2682
        %v2684 = vmul.f32 %v519, %v2682
        %v2685 = vmul.f32 %v520, %v2682
        %v2686 = vmul.f32 %v521, %v2682
        %v2687 = vmul.f32 %v522, %v2682
        %v2688 = vmul.f32 %v523, %v2682
        %v2689 = vmul.f32 %v524, %v2682
        %v2690 = vmul.f32 %v525, %v2682
        %v2691 = vmul.f32 %v526, %v2682
        %v2692 = vmul.f32 %v527, %v2682
        %v2693 = vmul.f32 %v528, %v2682
        %v2694 = vmul.f32 %v529, %v2682
        %v2695 = vmul.f32 %v530, %v2682
        %v2696 = vmul.f32 %v531, %v2682
        %v2697 = vmul.f32 %v532, %v2682
        %v2698 = vmul.f32 %v533, %v2682
        %v2699 = vmul.f32 %v534, %v2682
        %v2700 = vmul.f32 %v535, %v2682
        %v2701 = vmul.f32 %v536, %v2682
        %v2702 = vmul.f32 %v537, %v2682
        %v2703 = vmul.f32 %v538, %v2682
        %v2704 = vmul.f32 %v539, %v2682
        %v2705 = vmul.f32 %v540, %v2682
        %v2706 = vmul.f32 %v541, %v2682
        %v2731 = vrot.slane %v2683, 3
        %v2732 = vrot.slane %v2684, 3
        %v2733 = vsel %vm2606, %v2731, %v2732
        %v2734 = vrot.slane %v2685, 3
        %v2735 = vsel %vm2606, %v2732, %v2734
        %v2736 = vrot.slane %v2686, 3
        %v2737 = vrot.slane %v2687, 3
        %v2738 = vsel %vm2606, %v2736, %v2737
        %v2739 = vrot.slane %v2688, 3
        %v2740 = vsel %vm2606, %v2737, %v2739
        %v2741 = vrot.slane %v2689, 3
        %v2742 = vrot.slane %v2690, 3
        %v2743 = vsel %vm2606, %v2741, %v2742
        %v2744 = vrot.slane %v2691, 3
        %v2745 = vsel %vm2606, %v2742, %v2744
        %v2746 = vrot.slane %v2692, 3
        %v2747 = vrot.slane %v2693, 3
        %v2748 = vsel %vm2606, %v2746, %v2747
        %v2749 = vrot.slane %v2694, 3
        %v2750 = vsel %vm2606, %v2747, %v2749
        %v2751 = vrot.slane %v2695, 3
        %v2752 = vrot.slane %v2696, 3
        %v2753 = vsel %vm2606, %v2751, %v2752
        %v2754 = vrot.slane %v2697, 3
        %v2755 = vsel %vm2606, %v2752, %v2754
        %v2756 = vrot.slane %v2698, 3
        %v2757 = vrot.slane %v2699, 3
        %v2758 = vsel %vm2606, %v2756, %v2757
        %v2759 = vrot.slane %v2700, 3
        %v2760 = vsel %vm2606, %v2757, %v2759
        %v2761 = vrot.slane %v2701, 3
        %v2762 = vrot.slane %v2702, 3
        %v2763 = vsel %vm2606, %v2761, %v2762
        %v2764 = vrot.slane %v2703, 3
        %v2765 = vsel %vm2606, %v2762, %v2764
        %v2766 = vrot.slane %v2704, 3
        %v2767 = vrot.slane %v2705, 3
        %v2768 = vsel %vm2606, %v2766, %v2767
        %v2769 = vrot.slane %v2706, 3
        %v2770 = vsel %vm2606, %v2767, %v2769
        %v2787 = vadd.f32 %v2663, %v2733
        %v2788 = vadd.f32 %v2664, %v2735
        %v2789 = vadd.f32 %v2665, %v2738
        %v2790 = vadd.f32 %v2666, %v2740
        %v2791 = vadd.f32 %v2667, %v2743
        %v2792 = vadd.f32 %v2668, %v2745
        %v2793 = vadd.f32 %v2669, %v2748
        %v2794 = vadd.f32 %v2670, %v2750
        %v2795 = vadd.f32 %v2671, %v2753
        %v2796 = vadd.f32 %v2672, %v2755
        %v2797 = vadd.f32 %v2673, %v2758
        %v2798 = vadd.f32 %v2674, %v2760
        %v2799 = vadd.f32 %v2675, %v2763
        %v2800 = vadd.f32 %v2676, %v2765
        %v2801 = vadd.f32 %v2677, %v2768
        %v2802 = vadd.f32 %v2678, %v2770
        %v2803 = vlaneseq
        %v2804 = vshrl.u32 %v2803, 7
        %v2805 = vsub.s32 3, %v2804
        %v2806 = vrot.slane %v559, %v2805
        %v2807 = vmul.f32 %v521, %v2806
        %v2808 = vmul.f32 %v522, %v2806
        %v2809 = vmul.f32 %v523, %v2806
        %v2810 = vmul.f32 %v524, %v2806
        %v2811 = vmul.f32 %v525, %v2806
        %v2812 = vmul.f32 %v526, %v2806
        %v2813 = vmul.f32 %v527, %v2806
        %v2814 = vmul.f32 %v528, %v2806
        %v2815 = vmul.f32 %v529, %v2806
        %v2816 = vmul.f32 %v530, %v2806
        %v2817 = vmul.f32 %v531, %v2806
        %v2818 = vmul.f32 %v532, %v2806
        %v2819 = vmul.f32 %v533, %v2806
        %v2820 = vmul.f32 %v534, %v2806
        %v2821 = vmul.f32 %v535, %v2806
        %v2822 = vmul.f32 %v536, %v2806
        %v2823 = vmul.f32 %v537, %v2806
        %v2824 = vmul.f32 %v538, %v2806
        %v2825 = vmul.f32 %v539, %v2806
        %v2826 = vmul.f32 %v540, %v2806
        %v2827 = vmul.f32 %v541, %v2806
        %v2828 = vmul.f32 %v542, %v2806
        %v2829 = vmul.f32 %v543, %v2806
        %v2830 = vmul.f32 %v544, %v2806
        %v2855 = vrot.slane %v2807, 3
        %v2856 = vrot.slane %v2808, 3
        %v2857 = vsel %vm2606, %v2855, %v2856
        %v2858 = vrot.slane %v2809, 3
        %v2859 = vsel %vm2606, %v2856, %v2858
        %v2860 = vrot.slane %v2810, 3
        %v2861 = vrot.slane %v2811, 3
        %v2862 = vsel %vm2606, %v2860, %v2861
        %v2863 = vrot.slane %v2812, 3
        %v2864 = vsel %vm2606, %v2861, %v2863
        %v2865 = vrot.slane %v2813, 3
        %v2866 = vrot.slane %v2814, 3
        %v2867 = vsel %vm2606, %v2865, %v2866
        %v2868 = vrot.slane %v2815, 3
        %v2869 = vsel %vm2606, %v2866, %v2868
        %v2870 = vrot.slane %v2816, 3
        %v2871 = vrot.slane %v2817, 3
        %v2872 = vsel %vm2606, %v2870, %v2871
        %v2873 = vrot.slane %v2818, 3
        %v2874 = vsel %vm2606, %v2871, %v2873
        %v2875 = vrot.slane %v2819, 3
        %v2876 = vrot.slane %v2820, 3
        %v2877 = vsel %vm2606, %v2875, %v2876
        %v2878 = vrot.slane %v2821, 3
        %v2879 = vsel %vm2606, %v2876, %v2878
        %v2880 = vrot.slane %v2822, 3
        %v2881 = vrot.slane %v2823, 3
        %v2882 = vsel %vm2606, %v2880, %v2881
        %v2883 = vrot.slane %v2824, 3
        %v2884 = vsel %vm2606, %v2881, %v2883
        %v2885 = vrot.slane %v2825, 3
        %v2886 = vrot.slane %v2826, 3
        %v2887 = vsel %vm2606, %v2885, %v2886
        %v2888 = vrot.slane %v2827, 3
        %v2889 = vsel %vm2606, %v2886, %v2888
        %v2890 = vrot.slane %v2828, 3
        %v2891 = vrot.slane %v2829, 3
        %v2892 = vsel %vm2606, %v2890, %v2891
        %v2893 = vrot.slane %v2830, 3
        %v2894 = vsel %vm2606, %v2891, %v2893
        %v2911 = vadd.f32 %v2787, %v2857
        %v2912 = vadd.f32 %v2788, %v2859
        %v2913 = vadd.f32 %v2789, %v2862
        %v2914 = vadd.f32 %v2790, %v2864
        %v2915 = vadd.f32 %v2791, %v2867
        %v2916 = vadd.f32 %v2792, %v2869
        %v2917 = vadd.f32 %v2793, %v2872
        %v2918 = vadd.f32 %v2794, %v2874
        %v2919 = vadd.f32 %v2795, %v2877
        %v2920 = vadd.f32 %v2796, %v2879
        %v2921 = vadd.f32 %v2797, %v2882
        %v2922 = vadd.f32 %v2798, %v2884
        %v2923 = vadd.f32 %v2799, %v2887
        %v2924 = vadd.f32 %v2800, %v2889
        %v2925 = vadd.f32 %v2801, %v2892
        %v2926 = vadd.f32 %v2802, %v2894
        %v2927 = vlaneseq
        %v2928 = vshrl.u32 %v2927, 7
        %v2929 = vsub.s32 3, %v2928
        %v2930 = vrot.slane %v560, %v2929
        %v2931 = vmul.f32 %v524, %v2930
        %v2932 = vmul.f32 %v525, %v2930
        %v2933 = vmul.f32 %v526, %v2930
        %v2934 = vmul.f32 %v527, %v2930
        %v2935 = vmul.f32 %v528, %v2930
        %v2936 = vmul.f32 %v529, %v2930
        %v2937 = vmul.f32 %v530, %v2930
        %v2938 = vmul.f32 %v531, %v2930
        %v2939 = vmul.f32 %v532, %v2930
        %v2940 = vmul.f32 %v533, %v2930
        %v2941 = vmul.f32 %v534, %v2930
        %v2942 = vmul.f32 %v535, %v2930
        %v2943 = vmul.f32 %v536, %v2930
        %v2944 = vmul.f32 %v537, %v2930
        %v2945 = vmul.f32 %v538, %v2930
        %v2946 = vmul.f32 %v539, %v2930
        %v2947 = vmul.f32 %v540, %v2930
        %v2948 = vmul.f32 %v541, %v2930
        %v2949 = vmul.f32 %v542, %v2930
        %v2950 = vmul.f32 %v543, %v2930
        %v2951 = vmul.f32 %v544, %v2930
        %v2952 = vmul.f32 %v545, %v2930
        %v2953 = vmul.f32 %v546, %v2930
        %v2954 = vmul.f32 %v547, %v2930
        %v2979 = vrot.slane %v2931, 3
        %v2980 = vrot.slane %v2932, 3
        %v2981 = vsel %vm2606, %v2979, %v2980
        %v2982 = vrot.slane %v2933, 3
        %v2983 = vsel %vm2606, %v2980, %v2982
        %v2984 = vrot.slane %v2934, 3
        %v2985 = vrot.slane %v2935, 3
        %v2986 = vsel %vm2606, %v2984, %v2985
        %v2987 = vrot.slane %v2936, 3
        %v2988 = vsel %vm2606, %v2985, %v2987
        %v2989 = vrot.slane %v2937, 3
        %v2990 = vrot.slane %v2938, 3
        %v2991 = vsel %vm2606, %v2989, %v2990
        %v2992 = vrot.slane %v2939, 3
        %v2993 = vsel %vm2606, %v2990, %v2992
        %v2994 = vrot.slane %v2940, 3
        %v2995 = vrot.slane %v2941, 3
        %v2996 = vsel %vm2606, %v2994, %v2995
        %v2997 = vrot.slane %v2942, 3
        %v2998 = vsel %vm2606, %v2995, %v2997
        %v2999 = vrot.slane %v2943, 3
        %v3000 = vrot.slane %v2944, 3
        %v3001 = vsel %vm2606, %v2999, %v3000
        %v3002 = vrot.slane %v2945, 3
        %v3003 = vsel %vm2606, %v3000, %v3002
        %v3004 = vrot.slane %v2946, 3
        %v3005 = vrot.slane %v2947, 3
        %v3006 = vsel %vm2606, %v3004, %v3005
        %v3007 = vrot.slane %v2948, 3
        %v3008 = vsel %vm2606, %v3005, %v3007
        %v3009 = vrot.slane %v2949, 3
        %v3010 = vrot.slane %v2950, 3
        %v3011 = vsel %vm2606, %v3009, %v3010
        %v3012 = vrot.slane %v2951, 3
        %v3013 = vsel %vm2606, %v3010, %v3012
        %v3014 = vrot.slane %v2952, 3
        %v3015 = vrot.slane %v2953, 3
        %v3016 = vsel %vm2606, %v3014, %v3015
        %v3017 = vrot.slane %v2954, 3
        %v3018 = vsel %vm2606, %v3015, %v3017
        %v3035 = vadd.f32 %v2911, %v2981
        %v3036 = vadd.f32 %v2912, %v2983
        %v3037 = vadd.f32 %v2913, %v2986
        %v3038 = vadd.f32 %v2914, %v2988
        %v3039 = vadd.f32 %v2915, %v2991
        %v3040 = vadd.f32 %v2916, %v2993
        %v3041 = vadd.f32 %v2917, %v2996
        %v3042 = vadd.f32 %v2918, %v2998
        %v3043 = vadd.f32 %v2919, %v3001
        %v3044 = vadd.f32 %v2920, %v3003
        %v3045 = vadd.f32 %v2921, %v3006
        %v3046 = vadd.f32 %v2922, %v3008
        %v3047 = vadd.f32 %v2923, %v3011
        %v3048 = vadd.f32 %v2924, %v3013
        %v3049 = vadd.f32 %v2925, %v3016
        %v3050 = vadd.f32 %v2926, %v3018
        %v3051 = vlaneseq
        %v3052 = vshrl.u32 %v3051, 7
        %v3053 = vsub.s32 3, %v3052
        %v3054 = vrot.slane %v561, %v3053
        %v3055 = vmul.f32 %v527, %v3054
        %v3056 = vmul.f32 %v528, %v3054
        %v3057 = vmul.f32 %v529, %v3054
        %v3058 = vmul.f32 %v530, %v3054
        %v3059 = vmul.f32 %v531, %v3054
        %v3060 = vmul.f32 %v532, %v3054
        %v3061 = vmul.f32 %v533, %v3054
        %v3062 = vmul.f32 %v534, %v3054
        %v3063 = vmul.f32 %v535, %v3054
        %v3064 = vmul.f32 %v536, %v3054
        %v3065 = vmul.f32 %v537, %v3054
        %v3066 = vmul.f32 %v538, %v3054
        %v3067 = vmul.f32 %v539, %v3054
        %v3068 = vmul.f32 %v540, %v3054
        %v3069 = vmul.f32 %v541, %v3054
        %v3070 = vmul.f32 %v542, %v3054
        %v3071 = vmul.f32 %v543, %v3054
        %v3072 = vmul.f32 %v544, %v3054
        %v3073 = vmul.f32 %v545, %v3054
        %v3074 = vmul.f32 %v546, %v3054
        %v3075 = vmul.f32 %v547, %v3054
        %v3076 = vmul.f32 %v548, %v3054
        %v3077 = vmul.f32 %v549, %v3054
        %v3078 = vmul.f32 %v550, %v3054
        %v3103 = vrot.slane %v3055, 3
        %v3104 = vrot.slane %v3056, 3
        %v3105 = vsel %vm2606, %v3103, %v3104
        %v3106 = vrot.slane %v3057, 3
        %v3107 = vsel %vm2606, %v3104, %v3106
        %v3108 = vrot.slane %v3058, 3
        %v3109 = vrot.slane %v3059, 3
        %v3110 = vsel %vm2606, %v3108, %v3109
        %v3111 = vrot.slane %v3060, 3
        %v3112 = vsel %vm2606, %v3109, %v3111
        %v3113 = vrot.slane %v3061, 3
        %v3114 = vrot.slane %v3062, 3
        %v3115 = vsel %vm2606, %v3113, %v3114
        %v3116 = vrot.slane %v3063, 3
        %v3117 = vsel %vm2606, %v3114, %v3116
        %v3118 = vrot.slane %v3064, 3
        %v3119 = vrot.slane %v3065, 3
        %v3120 = vsel %vm2606, %v3118, %v3119
        %v3121 = vrot.slane %v3066, 3
        %v3122 = vsel %vm2606, %v3119, %v3121
        %v3123 = vrot.slane %v3067, 3
        %v3124 = vrot.slane %v3068, 3
        %v3125 = vsel %vm2606, %v3123, %v3124
        %v3126 = vrot.slane %v3069, 3
        %v3127 = vsel %vm2606, %v3124, %v3126
        %v3128 = vrot.slane %v3070, 3
        %v3129 = vrot.slane %v3071, 3
        %v3130 = vsel %vm2606, %v3128, %v3129
        %v3131 = vrot.slane %v3072, 3
        %v3132 = vsel %vm2606, %v3129, %v3131
        %v3133 = vrot.slane %v3073, 3
        %v3134 = vrot.slane %v3074, 3
        %v3135 = vsel %vm2606, %v3133, %v3134
        %v3136 = vrot.slane %v3075, 3
        %v3137 = vsel %vm2606, %v3134, %v3136
        %v3138 = vrot.slane %v3076, 3
        %v3139 = vrot.slane %v3077, 3
        %v3140 = vsel %vm2606, %v3138, %v3139
        %v3141 = vrot.slane %v3078, 3
        %v3142 = vsel %vm2606, %v3139, %v3141
        %v3159 = vadd.f32 %v3035, %v3105
        %v3160 = vadd.f32 %v3036, %v3107
        %v3161 = vadd.f32 %v3037, %v3110
        %v3162 = vadd.f32 %v3038, %v3112
        %v3163 = vadd.f32 %v3039, %v3115
        %v3164 = vadd.f32 %v3040, %v3117
        %v3165 = vadd.f32 %v3041, %v3120
        %v3166 = vadd.f32 %v3042, %v3122
        %v3167 = vadd.f32 %v3043, %v3125
        %v3168 = vadd.f32 %v3044, %v3127
        %v3169 = vadd.f32 %v3045, %v3130
        %v3170 = vadd.f32 %v3046, %v3132
        %v3171 = vadd.f32 %v3047, %v3135
        %v3172 = vadd.f32 %v3048, %v3137
        %v3173 = vadd.f32 %v3049, %v3140
        %v3174 = vadd.f32 %v3050, %v3142
        %v3175 = vlaneseq
        %v3176 = vshrl.u32 %v3175, 7
        %v3177 = vsub.s32 3, %v3176
        %v3178 = vrot.slane %v562, %v3177
        %v3179 = vmul.f32 %v530, %v3178
        %v3180 = vmul.f32 %v531, %v3178
        %v3181 = vmul.f32 %v532, %v3178
        %v3182 = vmul.f32 %v533, %v3178
        %v3183 = vmul.f32 %v534, %v3178
        %v3184 = vmul.f32 %v535, %v3178
        %v3185 = vmul.f32 %v536, %v3178
        %v3186 = vmul.f32 %v537, %v3178
        %v3187 = vmul.f32 %v538, %v3178
        %v3188 = vmul.f32 %v539, %v3178
        %v3189 = vmul.f32 %v540, %v3178
        %v3190 = vmul.f32 %v541, %v3178
        %v3191 = vmul.f32 %v542, %v3178
        %v3192 = vmul.f32 %v543, %v3178
        %v3193 = vmul.f32 %v544, %v3178
        %v3194 = vmul.f32 %v545, %v3178
        %v3195 = vmul.f32 %v546, %v3178
        %v3196 = vmul.f32 %v547, %v3178
        %v3197 = vmul.f32 %v548, %v3178
        %v3198 = vmul.f32 %v549, %v3178
        %v3199 = vmul.f32 %v550, %v3178
        %v3200 = vmul.f32 %v551, %v3178
        %v3201 = vmul.f32 %v552, %v3178
        %v3202 = vmul.f32 %v553, %v3178
        %v3227 = vrot.slane %v3179, 3
        %v3228 = vrot.slane %v3180, 3
        %v3229 = vsel %vm2606, %v3227, %v3228
        %v3230 = vrot.slane %v3181, 3
        %v3231 = vsel %vm2606, %v3228, %v3230
        %v3232 = vrot.slane %v3182, 3
        %v3233 = vrot.slane %v3183, 3
        %v3234 = vsel %vm2606, %v3232, %v3233
        %v3235 = vrot.slane %v3184, 3
        %v3236 = vsel %vm2606, %v3233, %v3235
        %v3237 = vrot.slane %v3185, 3
        %v3238 = vrot.slane %v3186, 3
        %v3239 = vsel %vm2606, %v3237, %v3238
        %v3240 = vrot.slane %v3187, 3
        %v3241 = vsel %vm2606, %v3238, %v3240
        %v3242 = vrot.slane %v3188, 3
        %v3243 = vrot.slane %v3189, 3
        %v3244 = vsel %vm2606, %v3242, %v3243
        %v3245 = vrot.slane %v3190, 3
        %v3246 = vsel %vm2606, %v3243, %v3245
        %v3247 = vrot.slane %v3191, 3
        %v3248 = vrot.slane %v3192, 3
        %v3249 = vsel %vm2606, %v3247, %v3248
        %v3250 = vrot.slane %v3193, 3
        %v3251 = vsel %vm2606, %v3248, %v3250
        %v3252 = vrot.slane %v3194, 3
        %v3253 = vrot.slane %v3195, 3
        %v3254 = vsel %vm2606, %v3252, %v3253
        %v3255 = vrot.slane %v3196, 3
        %v3256 = vsel %vm2606, %v3253, %v3255
        %v3257 = vrot.slane %v3197, 3
        %v3258 = vrot.slane %v3198, 3
        %v3259 = vsel %vm2606, %v3257, %v3258
        %v3260 = vrot.slane %v3199, 3
        %v3261 = vsel %vm2606, %v3258, %v3260
        %v3262 = vrot.slane %v3200, 3
        %v3263 = vrot.slane %v3201, 3
        %v3264 = vsel %vm2606, %v3262, %v3263
        %v3265 = vrot.slane %v3202, 3
        %v3266 = vsel %vm2606, %v3263, %v3265
        %v3283 = vadd.f32 %v3159, %v3229
        %v3284 = vadd.f32 %v3160, %v3231
        %v3285 = vadd.f32 %v3161, %v3234
        %v3286 = vadd.f32 %v3162, %v3236
        %v3287 = vadd.f32 %v3163, %v3239
        %v3288 = vadd.f32 %v3164, %v3241
        %v3289 = vadd.f32 %v3165, %v3244
        %v3290 = vadd.f32 %v3166, %v3246
        %v3291 = vadd.f32 %v3167, %v3249
        %v3292 = vadd.f32 %v3168, %v3251
        %v3293 = vadd.f32 %v3169, %v3254
        %v3294 = vadd.f32 %v3170, %v3256
        %v3295 = vadd.f32 %v3171, %v3259
        %v3296 = vadd.f32 %v3172, %v3261
        %v3297 = vadd.f32 %v3173, %v3264
        %v3298 = vadd.f32 %v3174, %v3266
        %v3299 = vlaneseq
        %v3300 = vshrl.u32 %v3299, 7
        %v3301 = vsub.s32 3, %v3300
        %v3302 = vrot.slane %v563, %v3301
        %v3303 = vmul.f32 %v533, %v3302
        %v3304 = vmul.f32 %v534, %v3302
        %v3305 = vmul.f32 %v535, %v3302
        %v3306 = vmul.f32 %v536, %v3302
        %v3307 = vmul.f32 %v537, %v3302
        %v3308 = vmul.f32 %v538, %v3302
        %v3309 = vmul.f32 %v539, %v3302
        %v3310 = vmul.f32 %v540, %v3302
        %v3311 = vmul.f32 %v541, %v3302
        %v3312 = vmul.f32 %v542, %v3302
        %v3313 = vmul.f32 %v543, %v3302
        %v3314 = vmul.f32 %v544, %v3302
        %v3315 = vmul.f32 %v545, %v3302
        %v3316 = vmul.f32 %v546, %v3302
        %v3317 = vmul.f32 %v547, %v3302
        %v3318 = vmul.f32 %v548, %v3302
        %v3319 = vmul.f32 %v549, %v3302
        %v3320 = vmul.f32 %v550, %v3302
        %v3321 = vmul.f32 %v551, %v3302
        %v3322 = vmul.f32 %v552, %v3302
        %v3323 = vmul.f32 %v553, %v3302
        %v3324 = vmul.f32 %v554, %v3302
        %v3325 = vmul.f32 %v555, %v3302
        %v3326 = vmul.f32 %v556, %v3302
        %v3351 = vrot.slane %v3303, 3
        %v3352 = vrot.slane %v3304, 3
        %v3353 = vsel %vm2606, %v3351, %v3352
        %v3354 = vrot.slane %v3305, 3
        %v3355 = vsel %vm2606, %v3352, %v3354
        %v3356 = vrot.slane %v3306, 3
        %v3357 = vrot.slane %v3307, 3
        %v3358 = vsel %vm2606, %v3356, %v3357
        %v3359 = vrot.slane %v3308, 3
        %v3360 = vsel %vm2606, %v3357, %v3359
        %v3361 = vrot.slane %v3309, 3
        %v3362 = vrot.slane %v3310, 3
        %v3363 = vsel %vm2606, %v3361, %v3362
        %v3364 = vrot.slane %v3311, 3
        %v3365 = vsel %vm2606, %v3362, %v3364
        %v3366 = vrot.slane %v3312, 3
        %v3367 = vrot.slane %v3313, 3
        %v3368 = vsel %vm2606, %v3366, %v3367
        %v3369 = vrot.slane %v3314, 3
        %v3370 = vsel %vm2606, %v3367, %v3369
        %v3371 = vrot.slane %v3315, 3
        %v3372 = vrot.slane %v3316, 3
        %v3373 = vsel %vm2606, %v3371, %v3372
        %v3374 = vrot.slane %v3317, 3
        %v3375 = vsel %vm2606, %v3372, %v3374
        %v3376 = vrot.slane %v3318, 3
        %v3377 = vrot.slane %v3319, 3
        %v3378 = vsel %vm2606, %v3376, %v3377
        %v3379 = vrot.slane %v3320, 3
        %v3380 = vsel %vm2606, %v3377, %v3379
        %v3381 = vrot.slane %v3321, 3
        %v3382 = vrot.slane %v3322, 3
        %v3383 = vsel %vm2606, %v3381, %v3382
        %v3384 = vrot.slane %v3323, 3
        %v3385 = vsel %vm2606, %v3382, %v3384
        %v3386 = vrot.slane %v3324, 3
        %v3387 = vrot.slane %v3325, 3
        %v3388 = vsel %vm2606, %v3386, %v3387
        %v3389 = vrot.slane %v3326, 3
        %v3390 = vsel %vm2606, %v3387, %v3389
        %v3407 = vadd.f32 %v3283, %v3353
        %v3408 = vadd.f32 %v3284, %v3355
        %v3409 = vadd.f32 %v3285, %v3358
        %v3410 = vadd.f32 %v3286, %v3360
        %v3411 = vadd.f32 %v3287, %v3363
        %v3412 = vadd.f32 %v3288, %v3365
        %v3413 = vadd.f32 %v3289, %v3368
        %v3414 = vadd.f32 %v3290, %v3370
        %v3415 = vadd.f32 %v3291, %v3373
        %v3416 = vadd.f32 %v3292, %v3375
        %v3417 = vadd.f32 %v3293, %v3378
        %v3418 = vadd.f32 %v3294, %v3380
        %v3419 = vadd.f32 %v3295, %v3383
        %v3420 = vadd.f32 %v3296, %v3385
        %v3421 = vadd.f32 %v3297, %v3388
        %v3422 = vadd.f32 %v3298, %v3390
        %v3423 = vlaneseq
        %v3424 = vshrl.u32 %v3423, 7
        %v3425 = vsub.s32 4, %v3424
        %v3426 = vrot.slane %v557, %v3425
        %v3427 = vmul.f32 %v515, %v3426
        %v3428 = vmul.f32 %v516, %v3426
        %v3429 = vmul.f32 %v517, %v3426
        %v3430 = vmul.f32 %v518, %v3426
        %v3431 = vmul.f32 %v519, %v3426
        %v3432 = vmul.f32 %v520, %v3426
        %v3433 = vmul.f32 %v521, %v3426
        %v3434 = vmul.f32 %v522, %v3426
        %v3435 = vmul.f32 %v523, %v3426
        %v3436 = vmul.f32 %v524, %v3426
        %v3437 = vmul.f32 %v525, %v3426
        %v3438 = vmul.f32 %v526, %v3426
        %v3439 = vmul.f32 %v527, %v3426
        %v3440 = vmul.f32 %v528, %v3426
        %v3441 = vmul.f32 %v529, %v3426
        %v3442 = vmul.f32 %v530, %v3426
        %v3443 = vmul.f32 %v531, %v3426
        %v3444 = vmul.f32 %v532, %v3426
        %v3445 = vmul.f32 %v533, %v3426
        %v3446 = vmul.f32 %v534, %v3426
        %v3447 = vmul.f32 %v535, %v3426
        %v3448 = vmul.f32 %v536, %v3426
        %v3449 = vmul.f32 %v537, %v3426
        %v3450 = vmul.f32 %v538, %v3426
        %vm3475 = vcmask 1043456
        %v3476 = vrot.slane %v3427, 4
        %v3477 = vrot.slane %v3428, 4
        %v3478 = vsel %vm3475, %v3476, %v3477
        %v3479 = vrot.slane %v3429, 4
        %v3480 = vsel %vm3475, %v3477, %v3479
        %v3481 = vrot.slane %v3430, 4
        %v3482 = vrot.slane %v3431, 4
        %v3483 = vsel %vm3475, %v3481, %v3482
        %v3484 = vrot.slane %v3432, 4
        %v3485 = vsel %vm3475, %v3482, %v3484
        %v3486 = vrot.slane %v3433, 4
        %v3487 = vrot.slane %v3434, 4
        %v3488 = vsel %vm3475, %v3486, %v3487
        %v3489 = vrot.slane %v3435, 4
        %v3490 = vsel %vm3475, %v3487, %v3489
        %v3491 = vrot.slane %v3436, 4
        %v3492 = vrot.slane %v3437, 4
        %v3493 = vsel %vm3475, %v3491, %v3492
        %v3494 = vrot.slane %v3438, 4
        %v3495 = vsel %vm3475, %v3492, %v3494
        %v3496 = vrot.slane %v3439, 4
        %v3497 = vrot.slane %v3440, 4
        %v3498 = vsel %vm3475, %v3496, %v3497
        %v3499 = vrot.slane %v3441, 4
        %v3500 = vsel %vm3475, %v3497, %v3499
        %v3501 = vrot.slane %v3442, 4
        %v3502 = vrot.slane %v3443, 4
        %v3503 = vsel %vm3475, %v3501, %v3502
        %v3504 = vrot.slane %v3444, 4
        %v3505 = vsel %vm3475, %v3502, %v3504
        %v3506 = vrot.slane %v3445, 4
        %v3507 = vrot.slane %v3446, 4
        %v3508 = vsel %vm3475, %v3506, %v3507
        %v3509 = vrot.slane %v3447, 4
        %v3510 = vsel %vm3475, %v3507, %v3509
        %v3511 = vrot.slane %v3448, 4
        %v3512 = vrot.slane %v3449, 4
        %v3513 = vsel %vm3475, %v3511, %v3512
        %v3514 = vrot.slane %v3450, 4
        %v3515 = vsel %vm3475, %v3512, %v3514
        %v3532 = vadd.f32 %v3407, %v3478
        %v3533 = vadd.f32 %v3408, %v3480
        %v3534 = vadd.f32 %v3409, %v3483
        %v3535 = vadd.f32 %v3410, %v3485
        %v3536 = vadd.f32 %v3411, %v3488
        %v3537 = vadd.f32 %v3412, %v3490
        %v3538 = vadd.f32 %v3413, %v3493
        %v3539 = vadd.f32 %v3414, %v3495
        %v3540 = vadd.f32 %v3415, %v3498
        %v3541 = vadd.f32 %v3416, %v3500
        %v3542 = vadd.f32 %v3417, %v3503
        %v3543 = vadd.f32 %v3418, %v3505
        %v3544 = vadd.f32 %v3419, %v3508
        %v3545 = vadd.f32 %v3420, %v3510
        %v3546 = vadd.f32 %v3421, %v3513
        %v3547 = vadd.f32 %v3422, %v3515
        %v3548 = vlaneseq
        %v3549 = vshrl.u32 %v3548, 7
        %v3550 = vsub.s32 4, %v3549
        %v3551 = vrot.slane %v558, %v3550
        %v3552 = vmul.f32 %v518, %v3551
        %v3553 = vmul.f32 %v519, %v3551
        %v3554 = vmul.f32 %v520, %v3551
        %v3555 = vmul.f32 %v521, %v3551
        %v3556 = vmul.f32 %v522, %v3551
        %v3557 = vmul.f32 %v523, %v3551
        %v3558 = vmul.f32 %v524, %v3551
        %v3559 = vmul.f32 %v525, %v3551
        %v3560 = vmul.f32 %v526, %v3551
        %v3561 = vmul.f32 %v527, %v3551
        %v3562 = vmul.f32 %v528, %v3551
        %v3563 = vmul.f32 %v529, %v3551
        %v3564 = vmul.f32 %v530, %v3551
        %v3565 = vmul.f32 %v531, %v3551
        %v3566 = vmul.f32 %v532, %v3551
        %v3567 = vmul.f32 %v533, %v3551
        %v3568 = vmul.f32 %v534, %v3551
        %v3569 = vmul.f32 %v535, %v3551
        %v3570 = vmul.f32 %v536, %v3551
        %v3571 = vmul.f32 %v537, %v3551
        %v3572 = vmul.f32 %v538, %v3551
        %v3573 = vmul.f32 %v539, %v3551
        %v3574 = vmul.f32 %v540, %v3551
        %v3575 = vmul.f32 %v541, %v3551
        %v3600 = vrot.slane %v3552, 4
        %v3601 = vrot.slane %v3553, 4
        %v3602 = vsel %vm3475, %v3600, %v3601
        %v3603 = vrot.slane %v3554, 4
        %v3604 = vsel %vm3475, %v3601, %v3603
        %v3605 = vrot.slane %v3555, 4
        %v3606 = vrot.slane %v3556, 4
        %v3607 = vsel %vm3475, %v3605, %v3606
        %v3608 = vrot.slane %v3557, 4
        %v3609 = vsel %vm3475, %v3606, %v3608
        %v3610 = vrot.slane %v3558, 4
        %v3611 = vrot.slane %v3559, 4
        %v3612 = vsel %vm3475, %v3610, %v3611
        %v3613 = vrot.slane %v3560, 4
        %v3614 = vsel %vm3475, %v3611, %v3613
        %v3615 = vrot.slane %v3561, 4
        %v3616 = vrot.slane %v3562, 4
        %v3617 = vsel %vm3475, %v3615, %v3616
        %v3618 = vrot.slane %v3563, 4
        %v3619 = vsel %vm3475, %v3616, %v3618
        %v3620 = vrot.slane %v3564, 4
        %v3621 = vrot.slane %v3565, 4
        %v3622 = vsel %vm3475, %v3620, %v3621
        %v3623 = vrot.slane %v3566, 4
        %v3624 = vsel %vm3475, %v3621, %v3623
        %v3625 = vrot.slane %v3567, 4
        %v3626 = vrot.slane %v3568, 4
        %v3627 = vsel %vm3475, %v3625, %v3626
        %v3628 = vrot.slane %v3569, 4
        %v3629 = vsel %vm3475, %v3626, %v3628
        %v3630 = vrot.slane %v3570, 4
        %v3631 = vrot.slane %v3571, 4
        %v3632 = vsel %vm3475, %v3630, %v3631
        %v3633 = vrot.slane %v3572, 4
        %v3634 = vsel %vm3475, %v3631, %v3633
        %v3635 = vrot.slane %v3573, 4
        %v3636 = vrot.slane %v3574, 4
        %v3637 = vsel %vm3475, %v3635, %v3636
        %v3638 = vrot.slane %v3575, 4
        %v3639 = vsel %vm3475, %v3636, %v3638
        %v3656 = vadd.f32 %v3532, %v3602
        %v3657 = vadd.f32 %v3533, %v3604
        %v3658 = vadd.f32 %v3534, %v3607
        %v3659 = vadd.f32 %v3535, %v3609
        %v3660 = vadd.f32 %v3536, %v3612
        %v3661 = vadd.f32 %v3537, %v3614
        %v3662 = vadd.f32 %v3538, %v3617
        %v3663 = vadd.f32 %v3539, %v3619
        %v3664 = vadd.f32 %v3540, %v3622
        %v3665 = vadd.f32 %v3541, %v3624
        %v3666 = vadd.f32 %v3542, %v3627
        %v3667 = vadd.f32 %v3543, %v3629
        %v3668 = vadd.f32 %v3544, %v3632
        %v3669 = vadd.f32 %v3545, %v3634
        %v3670 = vadd.f32 %v3546, %v3637
        %v3671 = vadd.f32 %v3547, %v3639
        %v3672 = vlaneseq
        %v3673 = vshrl.u32 %v3672, 7
        %v3674 = vsub.s32 4, %v3673
        %v3675 = vrot.slane %v559, %v3674
        %v3676 = vmul.f32 %v521, %v3675
        %v3677 = vmul.f32 %v522, %v3675
        %v3678 = vmul.f32 %v523, %v3675
        %v3679 = vmul.f32 %v524, %v3675
        %v3680 = vmul.f32 %v525, %v3675
        %v3681 = vmul.f32 %v526, %v3675
        %v3682 = vmul.f32 %v527, %v3675
        %v3683 = vmul.f32 %v528, %v3675
        %v3684 = vmul.f32 %v529, %v3675
        %v3685 = vmul.f32 %v530, %v3675
        %v3686 = vmul.f32 %v531, %v3675
        %v3687 = vmul.f32 %v532, %v3675
        %v3688 = vmul.f32 %v533, %v3675
        %v3689 = vmul.f32 %v534, %v3675
        %v3690 = vmul.f32 %v535, %v3675
        %v3691 = vmul.f32 %v536, %v3675
        %v3692 = vmul.f32 %v537, %v3675
        %v3693 = vmul.f32 %v538, %v3675
        %v3694 = vmul.f32 %v539, %v3675
        %v3695 = vmul.f32 %v540, %v3675
        %v3696 = vmul.f32 %v541, %v3675
        %v3697 = vmul.f32 %v542, %v3675
        %v3698 = vmul.f32 %v543, %v3675
        %v3699 = vmul.f32 %v544, %v3675
        %v3724 = vrot.slane %v3676, 4
        %v3725 = vrot.slane %v3677, 4
        %v3726 = vsel %vm3475, %v3724, %v3725
        %v3727 = vrot.slane %v3678, 4
        %v3728 = vsel %vm3475, %v3725, %v3727
        %v3729 = vrot.slane %v3679, 4
        %v3730 = vrot.slane %v3680, 4
        %v3731 = vsel %vm3475, %v3729, %v3730
        %v3732 = vrot.slane %v3681, 4
        %v3733 = vsel %vm3475, %v3730, %v3732
        %v3734 = vrot.slane %v3682, 4
        %v3735 = vrot.slane %v3683, 4
        %v3736 = vsel %vm3475, %v3734, %v3735
        %v3737 = vrot.slane %v3684, 4
        %v3738 = vsel %vm3475, %v3735, %v3737
        %v3739 = vrot.slane %v3685, 4
        %v3740 = vrot.slane %v3686, 4
        %v3741 = vsel %vm3475, %v3739, %v3740
        %v3742 = vrot.slane %v3687, 4
        %v3743 = vsel %vm3475, %v3740, %v3742
        %v3744 = vrot.slane %v3688, 4
        %v3745 = vrot.slane %v3689, 4
        %v3746 = vsel %vm3475, %v3744, %v3745
        %v3747 = vrot.slane %v3690, 4
        %v3748 = vsel %vm3475, %v3745, %v3747
        %v3749 = vrot.slane %v3691, 4
        %v3750 = vrot.slane %v3692, 4
        %v3751 = vsel %vm3475, %v3749, %v3750
        %v3752 = vrot.slane %v3693, 4
        %v3753 = vsel %vm3475, %v3750, %v3752
        %v3754 = vrot.slane %v3694, 4
        %v3755 = vrot.slane %v3695, 4
        %v3756 = vsel %vm3475, %v3754, %v3755
        %v3757 = vrot.slane %v3696, 4
        %v3758 = vsel %vm3475, %v3755, %v3757
        %v3759 = vrot.slane %v3697, 4
        %v3760 = vrot.slane %v3698, 4
        %v3761 = vsel %vm3475, %v3759, %v3760
        %v3762 = vrot.slane %v3699, 4
        %v3763 = vsel %vm3475, %v3760, %v3762
        %v3780 = vadd.f32 %v3656, %v3726
        %v3781 = vadd.f32 %v3657, %v3728
        %v3782 = vadd.f32 %v3658, %v3731
        %v3783 = vadd.f32 %v3659, %v3733
        %v3784 = vadd.f32 %v3660, %v3736
        %v3785 = vadd.f32 %v3661, %v3738
        %v3786 = vadd.f32 %v3662, %v3741
        %v3787 = vadd.f32 %v3663, %v3743
        %v3788 = vadd.f32 %v3664, %v3746
        %v3789 = vadd.f32 %v3665, %v3748
        %v3790 = vadd.f32 %v3666, %v3751
        %v3791 = vadd.f32 %v3667, %v3753
        %v3792 = vadd.f32 %v3668, %v3756
        %v3793 = vadd.f32 %v3669, %v3758
        %v3794 = vadd.f32 %v3670, %v3761
        %v3795 = vadd.f32 %v3671, %v3763
        %v3796 = vlaneseq
        %v3797 = vshrl.u32 %v3796, 7
        %v3798 = vsub.s32 4, %v3797
        %v3799 = vrot.slane %v560, %v3798
        %v3800 = vmul.f32 %v524, %v3799
        %v3801 = vmul.f32 %v525, %v3799
        %v3802 = vmul.f32 %v526, %v3799
        %v3803 = vmul.f32 %v527, %v3799
        %v3804 = vmul.f32 %v528, %v3799
        %v3805 = vmul.f32 %v529, %v3799
        %v3806 = vmul.f32 %v530, %v3799
        %v3807 = vmul.f32 %v531, %v3799
        %v3808 = vmul.f32 %v532, %v3799
        %v3809 = vmul.f32 %v533, %v3799
        %v3810 = vmul.f32 %v534, %v3799
        %v3811 = vmul.f32 %v535, %v3799
        %v3812 = vmul.f32 %v536, %v3799
        %v3813 = vmul.f32 %v537, %v3799
        %v3814 = vmul.f32 %v538, %v3799
        %v3815 = vmul.f32 %v539, %v3799
        %v3816 = vmul.f32 %v540, %v3799
        %v3817 = vmul.f32 %v541, %v3799
        %v3818 = vmul.f32 %v542, %v3799
        %v3819 = vmul.f32 %v543, %v3799
        %v3820 = vmul.f32 %v544, %v3799
        %v3821 = vmul.f32 %v545, %v3799
        %v3822 = vmul.f32 %v546, %v3799
        %v3823 = vmul.f32 %v547, %v3799
        %v3848 = vrot.slane %v3800, 4
        %v3849 = vrot.slane %v3801, 4
        %v3850 = vsel %vm3475, %v3848, %v3849
        %v3851 = vrot.slane %v3802, 4
        %v3852 = vsel %vm3475, %v3849, %v3851
        %v3853 = vrot.slane %v3803, 4
        %v3854 = vrot.slane %v3804, 4
        %v3855 = vsel %vm3475, %v3853, %v3854
        %v3856 = vrot.slane %v3805, 4
        %v3857 = vsel %vm3475, %v3854, %v3856
        %v3858 = vrot.slane %v3806, 4
        %v3859 = vrot.slane %v3807, 4
        %v3860 = vsel %vm3475, %v3858, %v3859
        %v3861 = vrot.slane %v3808, 4
        %v3862 = vsel %vm3475, %v3859, %v3861
        %v3863 = vrot.slane %v3809, 4
        %v3864 = vrot.slane %v3810, 4
        %v3865 = vsel %vm3475, %v3863, %v3864
        %v3866 = vrot.slane %v3811, 4
        %v3867 = vsel %vm3475, %v3864, %v3866
        %v3868 = vrot.slane %v3812, 4
        %v3869 = vrot.slane %v3813, 4
        %v3870 = vsel %vm3475, %v3868, %v3869
        %v3871 = vrot.slane %v3814, 4
        %v3872 = vsel %vm3475, %v3869, %v3871
        %v3873 = vrot.slane %v3815, 4
        %v3874 = vrot.slane %v3816, 4
        %v3875 = vsel %vm3475, %v3873, %v3874
        %v3876 = vrot.slane %v3817, 4
        %v3877 = vsel %vm3475, %v3874, %v3876
        %v3878 = vrot.slane %v3818, 4
        %v3879 = vrot.slane %v3819, 4
        %v3880 = vsel %vm3475, %v3878, %v3879
        %v3881 = vrot.slane %v3820, 4
        %v3882 = vsel %vm3475, %v3879, %v3881
        %v3883 = vrot.slane %v3821, 4
        %v3884 = vrot.slane %v3822, 4
        %v3885 = vsel %vm3475, %v3883, %v3884
        %v3886 = vrot.slane %v3823, 4
        %v3887 = vsel %vm3475, %v3884, %v3886
        %v3904 = vadd.f32 %v3780, %v3850
        %v3905 = vadd.f32 %v3781, %v3852
        %v3906 = vadd.f32 %v3782, %v3855
        %v3907 = vadd.f32 %v3783, %v3857
        %v3908 = vadd.f32 %v3784, %v3860
        %v3909 = vadd.f32 %v3785, %v3862
        %v3910 = vadd.f32 %v3786, %v3865
        %v3911 = vadd.f32 %v3787, %v3867
        %v3912 = vadd.f32 %v3788, %v3870
        %v3913 = vadd.f32 %v3789, %v3872
        %v3914 = vadd.f32 %v3790, %v3875
        %v3915 = vadd.f32 %v3791, %v3877
        %v3916 = vadd.f32 %v3792, %v3880
        %v3917 = vadd.f32 %v3793, %v3882
        %v3918 = vadd.f32 %v3794, %v3885
        %v3919 = vadd.f32 %v3795, %v3887
        %v3920 = vlaneseq
        %v3921 = vshrl.u32 %v3920, 7
        %v3922 = vsub.s32 4, %v3921
        %v3923 = vrot.slane %v561, %v3922
        %v3924 = vmul.f32 %v527, %v3923
        %v3925 = vmul.f32 %v528, %v3923
        %v3926 = vmul.f32 %v529, %v3923
        %v3927 = vmul.f32 %v530, %v3923
        %v3928 = vmul.f32 %v531, %v3923
        %v3929 = vmul.f32 %v532, %v3923
        %v3930 = vmul.f32 %v533, %v3923
        %v3931 = vmul.f32 %v534, %v3923
        %v3932 = vmul.f32 %v535, %v3923
        %v3933 = vmul.f32 %v536, %v3923
        %v3934 = vmul.f32 %v537, %v3923
        %v3935 = vmul.f32 %v538, %v3923
        %v3936 = vmul.f32 %v539, %v3923
        %v3937 = vmul.f32 %v540, %v3923
        %v3938 = vmul.f32 %v541, %v3923
        %v3939 = vmul.f32 %v542, %v3923
        %v3940 = vmul.f32 %v543, %v3923
        %v3941 = vmul.f32 %v544, %v3923
        %v3942 = vmul.f32 %v545, %v3923
        %v3943 = vmul.f32 %v546, %v3923
        %v3944 = vmul.f32 %v547, %v3923
        %v3945 = vmul.f32 %v548, %v3923
        %v3946 = vmul.f32 %v549, %v3923
        %v3947 = vmul.f32 %v550, %v3923
        %v3972 = vrot.slane %v3924, 4
        %v3973 = vrot.slane %v3925, 4
        %v3974 = vsel %vm3475, %v3972, %v3973
        %v3975 = vrot.slane %v3926, 4
        %v3976 = vsel %vm3475, %v3973, %v3975
        %v3977 = vrot.slane %v3927, 4
        %v3978 = vrot.slane %v3928, 4
        %v3979 = vsel %vm3475, %v3977, %v3978
        %v3980 = vrot.slane %v3929, 4
        %v3981 = vsel %vm3475, %v3978, %v3980
        %v3982 = vrot.slane %v3930, 4
        %v3983 = vrot.slane %v3931, 4
        %v3984 = vsel %vm3475, %v3982, %v3983
        %v3985 = vrot.slane %v3932, 4
        %v3986 = vsel %vm3475, %v3983, %v3985
        %v3987 = vrot.slane %v3933, 4
        %v3988 = vrot.slane %v3934, 4
        %v3989 = vsel %vm3475, %v3987, %v3988
        %v3990 = vrot.slane %v3935, 4
        %v3991 = vsel %vm3475, %v3988, %v3990
        %v3992 = vrot.slane %v3936, 4
        %v3993 = vrot.slane %v3937, 4
        %v3994 = vsel %vm3475, %v3992, %v3993
        %v3995 = vrot.slane %v3938, 4
        %v3996 = vsel %vm3475, %v3993, %v3995
        %v3997 = vrot.slane %v3939, 4
        %v3998 = vrot.slane %v3940, 4
        %v3999 = vsel %vm3475, %v3997, %v3998
        %v4000 = vrot.slane %v3941, 4
        %v4001 = vsel %vm3475, %v3998, %v4000
        %v4002 = vrot.slane %v3942, 4
        %v4003 = vrot.slane %v3943, 4
        %v4004 = vsel %vm3475, %v4002, %v4003
        %v4005 = vrot.slane %v3944, 4
        %v4006 = vsel %vm3475, %v4003, %v4005
        %v4007 = vrot.slane %v3945, 4
        %v4008 = vrot.slane %v3946, 4
        %v4009 = vsel %vm3475, %v4007, %v4008
        %v4010 = vrot.slane %v3947, 4
        %v4011 = vsel %vm3475, %v4008, %v4010
        %v4028 = vadd.f32 %v3904, %v3974
        %v4029 = vadd.f32 %v3905, %v3976
        %v4030 = vadd.f32 %v3906, %v3979
        %v4031 = vadd.f32 %v3907, %v3981
        %v4032 = vadd.f32 %v3908, %v3984
        %v4033 = vadd.f32 %v3909, %v3986
        %v4034 = vadd.f32 %v3910, %v3989
        %v4035 = vadd.f32 %v3911, %v3991
        %v4036 = vadd.f32 %v3912, %v3994
        %v4037 = vadd.f32 %v3913, %v3996
        %v4038 = vadd.f32 %v3914, %v3999
        %v4039 = vadd.f32 %v3915, %v4001
        %v4040 = vadd.f32 %v3916, %v4004
        %v4041 = vadd.f32 %v3917, %v4006
        %v4042 = vadd.f32 %v3918, %v4009
        %v4043 = vadd.f32 %v3919, %v4011
        %v4044 = vlaneseq
        %v4045 = vshrl.u32 %v4044, 7
        %v4046 = vsub.s32 4, %v4045
        %v4047 = vrot.slane %v562, %v4046
        %v4048 = vmul.f32 %v530, %v4047
        %v4049 = vmul.f32 %v531, %v4047
        %v4050 = vmul.f32 %v532, %v4047
        %v4051 = vmul.f32 %v533, %v4047
        %v4052 = vmul.f32 %v534, %v4047
        %v4053 = vmul.f32 %v535, %v4047
        %v4054 = vmul.f32 %v536, %v4047
        %v4055 = vmul.f32 %v537, %v4047
        %v4056 = vmul.f32 %v538, %v4047
        %v4057 = vmul.f32 %v539, %v4047
        %v4058 = vmul.f32 %v540, %v4047
        %v4059 = vmul.f32 %v541, %v4047
        %v4060 = vmul.f32 %v542, %v4047
        %v4061 = vmul.f32 %v543, %v4047
        %v4062 = vmul.f32 %v544, %v4047
        %v4063 = vmul.f32 %v545, %v4047
        %v4064 = vmul.f32 %v546, %v4047
        %v4065 = vmul.f32 %v547, %v4047
        %v4066 = vmul.f32 %v548, %v4047
        %v4067 = vmul.f32 %v549, %v4047
        %v4068 = vmul.f32 %v550, %v4047
        %v4069 = vmul.f32 %v551, %v4047
        %v4070 = vmul.f32 %v552, %v4047
        %v4071 = vmul.f32 %v553, %v4047
        %v4096 = vrot.slane %v4048, 4
        %v4097 = vrot.slane %v4049, 4
        %v4098 = vsel %vm3475, %v4096, %v4097
        %v4099 = vrot.slane %v4050, 4
        %v4100 = vsel %vm3475, %v4097, %v4099
        %v4101 = vrot.slane %v4051, 4
        %v4102 = vrot.slane %v4052, 4
        %v4103 = vsel %vm3475, %v4101, %v4102
        %v4104 = vrot.slane %v4053, 4
        %v4105 = vsel %vm3475, %v4102, %v4104
        %v4106 = vrot.slane %v4054, 4
        %v4107 = vrot.slane %v4055, 4
        %v4108 = vsel %vm3475, %v4106, %v4107
        %v4109 = vrot.slane %v4056, 4
        %v4110 = vsel %vm3475, %v4107, %v4109
        %v4111 = vrot.slane %v4057, 4
        %v4112 = vrot.slane %v4058, 4
        %v4113 = vsel %vm3475, %v4111, %v4112
        %v4114 = vrot.slane %v4059, 4
        %v4115 = vsel %vm3475, %v4112, %v4114
        %v4116 = vrot.slane %v4060, 4
        %v4117 = vrot.slane %v4061, 4
        %v4118 = vsel %vm3475, %v4116, %v4117
        %v4119 = vrot.slane %v4062, 4
        %v4120 = vsel %vm3475, %v4117, %v4119
        %v4121 = vrot.slane %v4063, 4
        %v4122 = vrot.slane %v4064, 4
        %v4123 = vsel %vm3475, %v4121, %v4122
        %v4124 = vrot.slane %v4065, 4
        %v4125 = vsel %vm3475, %v4122, %v4124
        %v4126 = vrot.slane %v4066, 4
        %v4127 = vrot.slane %v4067, 4
        %v4128 = vsel %vm3475, %v4126, %v4127
        %v4129 = vrot.slane %v4068, 4
        %v4130 = vsel %vm3475, %v4127, %v4129
        %v4131 = vrot.slane %v4069, 4
        %v4132 = vrot.slane %v4070, 4
        %v4133 = vsel %vm3475, %v4131, %v4132
        %v4134 = vrot.slane %v4071, 4
        %v4135 = vsel %vm3475, %v4132, %v4134
        %v4152 = vadd.f32 %v4028, %v4098
        %v4153 = vadd.f32 %v4029, %v4100
        %v4154 = vadd.f32 %v4030, %v4103
        %v4155 = vadd.f32 %v4031, %v4105
        %v4156 = vadd.f32 %v4032, %v4108
        %v4157 = vadd.f32 %v4033, %v4110
        %v4158 = vadd.f32 %v4034, %v4113
        %v4159 = vadd.f32 %v4035, %v4115
        %v4160 = vadd.f32 %v4036, %v4118
        %v4161 = vadd.f32 %v4037, %v4120
        %v4162 = vadd.f32 %v4038, %v4123
        %v4163 = vadd.f32 %v4039, %v4125
        %v4164 = vadd.f32 %v4040, %v4128
        %v4165 = vadd.f32 %v4041, %v4130
        %v4166 = vadd.f32 %v4042, %v4133
        %v4167 = vadd.f32 %v4043, %v4135
        %v4168 = vlaneseq
        %v4169 = vshrl.u32 %v4168, 7
        %v4170 = vsub.s32 4, %v4169
        %v4171 = vrot.slane %v563, %v4170
        %v4172 = vmul.f32 %v533, %v4171
        %v4173 = vmul.f32 %v534, %v4171
        %v4174 = vmul.f32 %v535, %v4171
        %v4175 = vmul.f32 %v536, %v4171
        %v4176 = vmul.f32 %v537, %v4171
        %v4177 = vmul.f32 %v538, %v4171
        %v4178 = vmul.f32 %v539, %v4171
        %v4179 = vmul.f32 %v540, %v4171
        %v4180 = vmul.f32 %v541, %v4171
        %v4181 = vmul.f32 %v542, %v4171
        %v4182 = vmul.f32 %v543, %v4171
        %v4183 = vmul.f32 %v544, %v4171
        %v4184 = vmul.f32 %v545, %v4171
        %v4185 = vmul.f32 %v546, %v4171
        %v4186 = vmul.f32 %v547, %v4171
        %v4187 = vmul.f32 %v548, %v4171
        %v4188 = vmul.f32 %v549, %v4171
        %v4189 = vmul.f32 %v550, %v4171
        %v4190 = vmul.f32 %v551, %v4171
        %v4191 = vmul.f32 %v552, %v4171
        %v4192 = vmul.f32 %v553, %v4171
        %v4193 = vmul.f32 %v554, %v4171
        %v4194 = vmul.f32 %v555, %v4171
        %v4195 = vmul.f32 %v556, %v4171
        %v4220 = vrot.slane %v4172, 4
        %v4221 = vrot.slane %v4173, 4
        %v4222 = vsel %vm3475, %v4220, %v4221
        %v4223 = vrot.slane %v4174, 4
        %v4224 = vsel %vm3475, %v4221, %v4223
        %v4225 = vrot.slane %v4175, 4
        %v4226 = vrot.slane %v4176, 4
        %v4227 = vsel %vm3475, %v4225, %v4226
        %v4228 = vrot.slane %v4177, 4
        %v4229 = vsel %vm3475, %v4226, %v4228
        %v4230 = vrot.slane %v4178, 4
        %v4231 = vrot.slane %v4179, 4
        %v4232 = vsel %vm3475, %v4230, %v4231
        %v4233 = vrot.slane %v4180, 4
        %v4234 = vsel %vm3475, %v4231, %v4233
        %v4235 = vrot.slane %v4181, 4
        %v4236 = vrot.slane %v4182, 4
        %v4237 = vsel %vm3475, %v4235, %v4236
        %v4238 = vrot.slane %v4183, 4
        %v4239 = vsel %vm3475, %v4236, %v4238
        %v4240 = vrot.slane %v4184, 4
        %v4241 = vrot.slane %v4185, 4
        %v4242 = vsel %vm3475, %v4240, %v4241
        %v4243 = vrot.slane %v4186, 4
        %v4244 = vsel %vm3475, %v4241, %v4243
        %v4245 = vrot.slane %v4187, 4
        %v4246 = vrot.slane %v4188, 4
        %v4247 = vsel %vm3475, %v4245, %v4246
        %v4248 = vrot.slane %v4189, 4
        %v4249 = vsel %vm3475, %v4246, %v4248
        %v4250 = vrot.slane %v4190, 4
        %v4251 = vrot.slane %v4191, 4
        %v4252 = vsel %vm3475, %v4250, %v4251
        %v4253 = vrot.slane %v4192, 4
        %v4254 = vsel %vm3475, %v4251, %v4253
        %v4255 = vrot.slane %v4193, 4
        %v4256 = vrot.slane %v4194, 4
        %v4257 = vsel %vm3475, %v4255, %v4256
        %v4258 = vrot.slane %v4195, 4
        %v4259 = vsel %vm3475, %v4256, %v4258
        %v4276 = vadd.f32 %v4152, %v4222
        %v4277 = vadd.f32 %v4153, %v4224
        %v4278 = vadd.f32 %v4154, %v4227
        %v4279 = vadd.f32 %v4155, %v4229
        %v4280 = vadd.f32 %v4156, %v4232
        %v4281 = vadd.f32 %v4157, %v4234
        %v4282 = vadd.f32 %v4158, %v4237
        %v4283 = vadd.f32 %v4159, %v4239
        %v4284 = vadd.f32 %v4160, %v4242
        %v4285 = vadd.f32 %v4161, %v4244
        %v4286 = vadd.f32 %v4162, %v4247
        %v4287 = vadd.f32 %v4163, %v4249
        %v4288 = vadd.f32 %v4164, %v4252
        %v4289 = vadd.f32 %v4165, %v4254
        %v4290 = vadd.f32 %v4166, %v4257
        %v4291 = vadd.f32 %v4167, %v4259
        %v4292 = vlaneseq
        %v4293 = vshrl.u32 %v4292, 7
        %v4294 = vsub.s32 5, %v4293
        %v4295 = vrot.slane %v557, %v4294
        %v4296 = vmul.f32 %v515, %v4295
        %v4297 = vmul.f32 %v516, %v4295
        %v4298 = vmul.f32 %v517, %v4295
        %v4299 = vmul.f32 %v518, %v4295
        %v4300 = vmul.f32 %v519, %v4295
        %v4301 = vmul.f32 %v520, %v4295
        %v4302 = vmul.f32 %v521, %v4295
        %v4303 = vmul.f32 %v522, %v4295
        %v4304 = vmul.f32 %v523, %v4295
        %v4305 = vmul.f32 %v524, %v4295
        %v4306 = vmul.f32 %v525, %v4295
        %v4307 = vmul.f32 %v526, %v4295
        %v4308 = vmul.f32 %v527, %v4295
        %v4309 = vmul.f32 %v528, %v4295
        %v4310 = vmul.f32 %v529, %v4295
        %v4311 = vmul.f32 %v530, %v4295
        %v4312 = vmul.f32 %v531, %v4295
        %v4313 = vmul.f32 %v532, %v4295
        %v4314 = vmul.f32 %v533, %v4295
        %v4315 = vmul.f32 %v534, %v4295
        %v4316 = vmul.f32 %v535, %v4295
        %v4317 = vmul.f32 %v536, %v4295
        %v4318 = vmul.f32 %v537, %v4295
        %v4319 = vmul.f32 %v538, %v4295
        %vm4344 = vcmask 1042432
        %v4345 = vrot.slane %v4296, 5
        %v4346 = vrot.slane %v4297, 5
        %v4347 = vsel %vm4344, %v4345, %v4346
        %v4348 = vrot.slane %v4298, 5
        %v4349 = vsel %vm4344, %v4346, %v4348
        %v4350 = vrot.slane %v4299, 5
        %v4351 = vrot.slane %v4300, 5
        %v4352 = vsel %vm4344, %v4350, %v4351
        %v4353 = vrot.slane %v4301, 5
        %v4354 = vsel %vm4344, %v4351, %v4353
        %v4355 = vrot.slane %v4302, 5
        %v4356 = vrot.slane %v4303, 5
        %v4357 = vsel %vm4344, %v4355, %v4356
        %v4358 = vrot.slane %v4304, 5
        %v4359 = vsel %vm4344, %v4356, %v4358
        %v4360 = vrot.slane %v4305, 5
        %v4361 = vrot.slane %v4306, 5
        %v4362 = vsel %vm4344, %v4360, %v4361
        %v4363 = vrot.slane %v4307, 5
        %v4364 = vsel %vm4344, %v4361, %v4363
        %v4365 = vrot.slane %v4308, 5
        %v4366 = vrot.slane %v4309, 5
        %v4367 = vsel %vm4344, %v4365, %v4366
        %v4368 = vrot.slane %v4310, 5
        %v4369 = vsel %vm4344, %v4366, %v4368
        %v4370 = vrot.slane %v4311, 5
        %v4371 = vrot.slane %v4312, 5
        %v4372 = vsel %vm4344, %v4370, %v4371
        %v4373 = vrot.slane %v4313, 5
        %v4374 = vsel %vm4344, %v4371, %v4373
        %v4375 = vrot.slane %v4314, 5
        %v4376 = vrot.slane %v4315, 5
        %v4377 = vsel %vm4344, %v4375, %v4376
        %v4378 = vrot.slane %v4316, 5
        %v4379 = vsel %vm4344, %v4376, %v4378
        %v4380 = vrot.slane %v4317, 5
        %v4381 = vrot.slane %v4318, 5
        %v4382 = vsel %vm4344, %v4380, %v4381
        %v4383 = vrot.slane %v4319, 5
        %v4384 = vsel %vm4344, %v4381, %v4383
        %v4401 = vadd.f32 %v4276, %v4347
        %v4402 = vadd.f32 %v4277, %v4349
        %v4403 = vadd.f32 %v4278, %v4352
        %v4404 = vadd.f32 %v4279, %v4354
        %v4405 = vadd.f32 %v4280, %v4357
        %v4406 = vadd.f32 %v4281, %v4359
        %v4407 = vadd.f32 %v4282, %v4362
        %v4408 = vadd.f32 %v4283, %v4364
        %v4409 = vadd.f32 %v4284, %v4367
        %v4410 = vadd.f32 %v4285, %v4369
        %v4411 = vadd.f32 %v4286, %v4372
        %v4412 = vadd.f32 %v4287, %v4374
        %v4413 = vadd.f32 %v4288, %v4377
        %v4414 = vadd.f32 %v4289, %v4379
        %v4415 = vadd.f32 %v4290, %v4382
        %v4416 = vadd.f32 %v4291, %v4384
        %v4417 = vlaneseq
        %v4418 = vshrl.u32 %v4417, 7
        %v4419 = vsub.s32 5, %v4418
        %v4420 = vrot.slane %v558, %v4419
        %v4421 = vmul.f32 %v518, %v4420
        %v4422 = vmul.f32 %v519, %v4420
        %v4423 = vmul.f32 %v520, %v4420
        %v4424 = vmul.f32 %v521, %v4420
        %v4425 = vmul.f32 %v522, %v4420
        %v4426 = vmul.f32 %v523, %v4420
        %v4427 = vmul.f32 %v524, %v4420
        %v4428 = vmul.f32 %v525, %v4420
        %v4429 = vmul.f32 %v526, %v4420
        %v4430 = vmul.f32 %v527, %v4420
        %v4431 = vmul.f32 %v528, %v4420
        %v4432 = vmul.f32 %v529, %v4420
        %v4433 = vmul.f32 %v530, %v4420
        %v4434 = vmul.f32 %v531, %v4420
        %v4435 = vmul.f32 %v532, %v4420
        %v4436 = vmul.f32 %v533, %v4420
        %v4437 = vmul.f32 %v534, %v4420
        %v4438 = vmul.f32 %v535, %v4420
        %v4439 = vmul.f32 %v536, %v4420
        %v4440 = vmul.f32 %v537, %v4420
        %v4441 = vmul.f32 %v538, %v4420
        %v4442 = vmul.f32 %v539, %v4420
        %v4443 = vmul.f32 %v540, %v4420
        %v4444 = vmul.f32 %v541, %v4420
        %v4469 = vrot.slane %v4421, 5
        %v4470 = vrot.slane %v4422, 5
        %v4471 = vsel %vm4344, %v4469, %v4470
        %v4472 = vrot.slane %v4423, 5
        %v4473 = vsel %vm4344, %v4470, %v4472
        %v4474 = vrot.slane %v4424, 5
        %v4475 = vrot.slane %v4425, 5
        %v4476 = vsel %vm4344, %v4474, %v4475
        %v4477 = vrot.slane %v4426, 5
        %v4478 = vsel %vm4344, %v4475, %v4477
        %v4479 = vrot.slane %v4427, 5
        %v4480 = vrot.slane %v4428, 5
        %v4481 = vsel %vm4344, %v4479, %v4480
        %v4482 = vrot.slane %v4429, 5
        %v4483 = vsel %vm4344, %v4480, %v4482
        %v4484 = vrot.slane %v4430, 5
        %v4485 = vrot.slane %v4431, 5
        %v4486 = vsel %vm4344, %v4484, %v4485
        %v4487 = vrot.slane %v4432, 5
        %v4488 = vsel %vm4344, %v4485, %v4487
        %v4489 = vrot.slane %v4433, 5
        %v4490 = vrot.slane %v4434, 5
        %v4491 = vsel %vm4344, %v4489, %v4490
        %v4492 = vrot.slane %v4435, 5
        %v4493 = vsel %vm4344, %v4490, %v4492
        %v4494 = vrot.slane %v4436, 5
        %v4495 = vrot.slane %v4437, 5
        %v4496 = vsel %vm4344, %v4494, %v4495
        %v4497 = vrot.slane %v4438, 5
        %v4498 = vsel %vm4344, %v4495, %v4497
        %v4499 = vrot.slane %v4439, 5
        %v4500 = vrot.slane %v4440, 5
        %v4501 = vsel %vm4344, %v4499, %v4500
        %v4502 = vrot.slane %v4441, 5
        %v4503 = vsel %vm4344, %v4500, %v4502
        %v4504 = vrot.slane %v4442, 5
        %v4505 = vrot.slane %v4443, 5
        %v4506 = vsel %vm4344, %v4504, %v4505
        %v4507 = vrot.slane %v4444, 5
        %v4508 = vsel %vm4344, %v4505, %v4507
        %v4525 = vadd.f32 %v4401, %v4471
        %v4526 = vadd.f32 %v4402, %v4473
        %v4527 = vadd.f32 %v4403, %v4476
        %v4528 = vadd.f32 %v4404, %v4478
        %v4529 = vadd.f32 %v4405, %v4481
        %v4530 = vadd.f32 %v4406, %v4483
        %v4531 = vadd.f32 %v4407, %v4486
        %v4532 = vadd.f32 %v4408, %v4488
        %v4533 = vadd.f32 %v4409, %v4491
        %v4534 = vadd.f32 %v4410, %v4493
        %v4535 = vadd.f32 %v4411, %v4496
        %v4536 = vadd.f32 %v4412, %v4498
        %v4537 = vadd.f32 %v4413, %v4501
        %v4538 = vadd.f32 %v4414, %v4503
        %v4539 = vadd.f32 %v4415, %v4506
        %v4540 = vadd.f32 %v4416, %v4508
        %v4541 = vlaneseq
        %v4542 = vshrl.u32 %v4541, 7
        %v4543 = vsub.s32 5, %v4542
        %v4544 = vrot.slane %v559, %v4543
        %v4545 = vmul.f32 %v521, %v4544
        %v4546 = vmul.f32 %v522, %v4544
        %v4547 = vmul.f32 %v523, %v4544
        %v4548 = vmul.f32 %v524, %v4544
        %v4549 = vmul.f32 %v525, %v4544
        %v4550 = vmul.f32 %v526, %v4544
        %v4551 = vmul.f32 %v527, %v4544
        %v4552 = vmul.f32 %v528, %v4544
        %v4553 = vmul.f32 %v529, %v4544
        %v4554 = vmul.f32 %v530, %v4544
        %v4555 = vmul.f32 %v531, %v4544
        %v4556 = vmul.f32 %v532, %v4544
        %v4557 = vmul.f32 %v533, %v4544
        %v4558 = vmul.f32 %v534, %v4544
        %v4559 = vmul.f32 %v535, %v4544
        %v4560 = vmul.f32 %v536, %v4544
        %v4561 = vmul.f32 %v537, %v4544
        %v4562 = vmul.f32 %v538, %v4544
        %v4563 = vmul.f32 %v539, %v4544
        %v4564 = vmul.f32 %v540, %v4544
        %v4565 = vmul.f32 %v541, %v4544
        %v4566 = vmul.f32 %v542, %v4544
        %v4567 = vmul.f32 %v543, %v4544
        %v4568 = vmul.f32 %v544, %v4544
        %v4593 = vrot.slane %v4545, 5
        %v4594 = vrot.slane %v4546, 5
        %v4595 = vsel %vm4344, %v4593, %v4594
        %v4596 = vrot.slane %v4547, 5
        %v4597 = vsel %vm4344, %v4594, %v4596
        %v4598 = vrot.slane %v4548, 5
        %v4599 = vrot.slane %v4549, 5
        %v4600 = vsel %vm4344, %v4598, %v4599
        %v4601 = vrot.slane %v4550, 5
        %v4602 = vsel %vm4344, %v4599, %v4601
        %v4603 = vrot.slane %v4551, 5
        %v4604 = vrot.slane %v4552, 5
        %v4605 = vsel %vm4344, %v4603, %v4604
        %v4606 = vrot.slane %v4553, 5
        %v4607 = vsel %vm4344, %v4604, %v4606
        %v4608 = vrot.slane %v4554, 5
        %v4609 = vrot.slane %v4555, 5
        %v4610 = vsel %vm4344, %v4608, %v4609
        %v4611 = vrot.slane %v4556, 5
        %v4612 = vsel %vm4344, %v4609, %v4611
        %v4613 = vrot.slane %v4557, 5
        %v4614 = vrot.slane %v4558, 5
        %v4615 = vsel %vm4344, %v4613, %v4614
        %v4616 = vrot.slane %v4559, 5
        %v4617 = vsel %vm4344, %v4614, %v4616
        %v4618 = vrot.slane %v4560, 5
        %v4619 = vrot.slane %v4561, 5
        %v4620 = vsel %vm4344, %v4618, %v4619
        %v4621 = vrot.slane %v4562, 5
        %v4622 = vsel %vm4344, %v4619, %v4621
        %v4623 = vrot.slane %v4563, 5
        %v4624 = vrot.slane %v4564, 5
        %v4625 = vsel %vm4344, %v4623, %v4624
        %v4626 = vrot.slane %v4565, 5
        %v4627 = vsel %vm4344, %v4624, %v4626
        %v4628 = vrot.slane %v4566, 5
        %v4629 = vrot.slane %v4567, 5
        %v4630 = vsel %vm4344, %v4628, %v4629
        %v4631 = vrot.slane %v4568, 5
        %v4632 = vsel %vm4344, %v4629, %v4631
        %v4649 = vadd.f32 %v4525, %v4595
        %v4650 = vadd.f32 %v4526, %v4597
        %v4651 = vadd.f32 %v4527, %v4600
        %v4652 = vadd.f32 %v4528, %v4602
        %v4653 = vadd.f32 %v4529, %v4605
        %v4654 = vadd.f32 %v4530, %v4607
        %v4655 = vadd.f32 %v4531, %v4610
        %v4656 = vadd.f32 %v4532, %v4612
        %v4657 = vadd.f32 %v4533, %v4615
        %v4658 = vadd.f32 %v4534, %v4617
        %v4659 = vadd.f32 %v4535, %v4620
        %v4660 = vadd.f32 %v4536, %v4622
        %v4661 = vadd.f32 %v4537, %v4625
        %v4662 = vadd.f32 %v4538, %v4627
        %v4663 = vadd.f32 %v4539, %v4630
        %v4664 = vadd.f32 %v4540, %v4632
        %v4665 = vlaneseq
        %v4666 = vshrl.u32 %v4665, 7
        %v4667 = vsub.s32 5, %v4666
        %v4668 = vrot.slane %v560, %v4667
        %v4669 = vmul.f32 %v524, %v4668
        %v4670 = vmul.f32 %v525, %v4668
        %v4671 = vmul.f32 %v526, %v4668
        %v4672 = vmul.f32 %v527, %v4668
        %v4673 = vmul.f32 %v528, %v4668
        %v4674 = vmul.f32 %v529, %v4668
        %v4675 = vmul.f32 %v530, %v4668
        %v4676 = vmul.f32 %v531, %v4668
        %v4677 = vmul.f32 %v532, %v4668
        %v4678 = vmul.f32 %v533, %v4668
        %v4679 = vmul.f32 %v534, %v4668
        %v4680 = vmul.f32 %v535, %v4668
        %v4681 = vmul.f32 %v536, %v4668
        %v4682 = vmul.f32 %v537, %v4668
        %v4683 = vmul.f32 %v538, %v4668
        %v4684 = vmul.f32 %v539, %v4668
        %v4685 = vmul.f32 %v540, %v4668
        %v4686 = vmul.f32 %v541, %v4668
        %v4687 = vmul.f32 %v542, %v4668
        %v4688 = vmul.f32 %v543, %v4668
        %v4689 = vmul.f32 %v544, %v4668
        %v4690 = vmul.f32 %v545, %v4668
        %v4691 = vmul.f32 %v546, %v4668
        %v4692 = vmul.f32 %v547, %v4668
        %v4717 = vrot.slane %v4669, 5
        %v4718 = vrot.slane %v4670, 5
        %v4719 = vsel %vm4344, %v4717, %v4718
        %v4720 = vrot.slane %v4671, 5
        %v4721 = vsel %vm4344, %v4718, %v4720
        %v4722 = vrot.slane %v4672, 5
        %v4723 = vrot.slane %v4673, 5
        %v4724 = vsel %vm4344, %v4722, %v4723
        %v4725 = vrot.slane %v4674, 5
        %v4726 = vsel %vm4344, %v4723, %v4725
        %v4727 = vrot.slane %v4675, 5
        %v4728 = vrot.slane %v4676, 5
        %v4729 = vsel %vm4344, %v4727, %v4728
        %v4730 = vrot.slane %v4677, 5
        %v4731 = vsel %vm4344, %v4728, %v4730
        %v4732 = vrot.slane %v4678, 5
        %v4733 = vrot.slane %v4679, 5
        %v4734 = vsel %vm4344, %v4732, %v4733
        %v4735 = vrot.slane %v4680, 5
        %v4736 = vsel %vm4344, %v4733, %v4735
        %v4737 = vrot.slane %v4681, 5
        %v4738 = vrot.slane %v4682, 5
        %v4739 = vsel %vm4344, %v4737, %v4738
        %v4740 = vrot.slane %v4683, 5
        %v4741 = vsel %vm4344, %v4738, %v4740
        %v4742 = vrot.slane %v4684, 5
        %v4743 = vrot.slane %v4685, 5
        %v4744 = vsel %vm4344, %v4742, %v4743
        %v4745 = vrot.slane %v4686, 5
        %v4746 = vsel %vm4344, %v4743, %v4745
        %v4747 = vrot.slane %v4687, 5
        %v4748 = vrot.slane %v4688, 5
        %v4749 = vsel %vm4344, %v4747, %v4748
        %v4750 = vrot.slane %v4689, 5
        %v4751 = vsel %vm4344, %v4748, %v4750
        %v4752 = vrot.slane %v4690, 5
        %v4753 = vrot.slane %v4691, 5
        %v4754 = vsel %vm4344, %v4752, %v4753
        %v4755 = vrot.slane %v4692, 5
        %v4756 = vsel %vm4344, %v4753, %v4755
        %v4773 = vadd.f32 %v4649, %v4719
        %v4774 = vadd.f32 %v4650, %v4721
        %v4775 = vadd.f32 %v4651, %v4724
        %v4776 = vadd.f32 %v4652, %v4726
        %v4777 = vadd.f32 %v4653, %v4729
        %v4778 = vadd.f32 %v4654, %v4731
        %v4779 = vadd.f32 %v4655, %v4734
        %v4780 = vadd.f32 %v4656, %v4736
        %v4781 = vadd.f32 %v4657, %v4739
        %v4782 = vadd.f32 %v4658, %v4741
        %v4783 = vadd.f32 %v4659, %v4744
        %v4784 = vadd.f32 %v4660, %v4746
        %v4785 = vadd.f32 %v4661, %v4749
        %v4786 = vadd.f32 %v4662, %v4751
        %v4787 = vadd.f32 %v4663, %v4754
        %v4788 = vadd.f32 %v4664, %v4756
        %v4789 = vlaneseq
        %v4790 = vshrl.u32 %v4789, 7
        %v4791 = vsub.s32 5, %v4790
        %v4792 = vrot.slane %v561, %v4791
        %v4793 = vmul.f32 %v527, %v4792
        %v4794 = vmul.f32 %v528, %v4792
        %v4795 = vmul.f32 %v529, %v4792
        %v4796 = vmul.f32 %v530, %v4792
        %v4797 = vmul.f32 %v531, %v4792
        %v4798 = vmul.f32 %v532, %v4792
        %v4799 = vmul.f32 %v533, %v4792
        %v4800 = vmul.f32 %v534, %v4792
        %v4801 = vmul.f32 %v535, %v4792
        %v4802 = vmul.f32 %v536, %v4792
        %v4803 = vmul.f32 %v537, %v4792
        %v4804 = vmul.f32 %v538, %v4792
        %v4805 = vmul.f32 %v539, %v4792
        %v4806 = vmul.f32 %v540, %v4792
        %v4807 = vmul.f32 %v541, %v4792
        %v4808 = vmul.f32 %v542, %v4792
        %v4809 = vmul.f32 %v543, %v4792
        %v4810 = vmul.f32 %v544, %v4792
        %v4811 = vmul.f32 %v545, %v4792
        %v4812 = vmul.f32 %v546, %v4792
        %v4813 = vmul.f32 %v547, %v4792
        %v4814 = vmul.f32 %v548, %v4792
        %v4815 = vmul.f32 %v549, %v4792
        %v4816 = vmul.f32 %v550, %v4792
        %v4841 = vrot.slane %v4793, 5
        %v4842 = vrot.slane %v4794, 5
        %v4843 = vsel %vm4344, %v4841, %v4842
        %v4844 = vrot.slane %v4795, 5
        %v4845 = vsel %vm4344, %v4842, %v4844
        %v4846 = vrot.slane %v4796, 5
        %v4847 = vrot.slane %v4797, 5
        %v4848 = vsel %vm4344, %v4846, %v4847
        %v4849 = vrot.slane %v4798, 5
        %v4850 = vsel %vm4344, %v4847, %v4849
        %v4851 = vrot.slane %v4799, 5
        %v4852 = vrot.slane %v4800, 5
        %v4853 = vsel %vm4344, %v4851, %v4852
        %v4854 = vrot.slane %v4801, 5
        %v4855 = vsel %vm4344, %v4852, %v4854
        %v4856 = vrot.slane %v4802, 5
        %v4857 = vrot.slane %v4803, 5
        %v4858 = vsel %vm4344, %v4856, %v4857
        %v4859 = vrot.slane %v4804, 5
        %v4860 = vsel %vm4344, %v4857, %v4859
        %v4861 = vrot.slane %v4805, 5
        %v4862 = vrot.slane %v4806, 5
        %v4863 = vsel %vm4344, %v4861, %v4862
        %v4864 = vrot.slane %v4807, 5
        %v4865 = vsel %vm4344, %v4862, %v4864
        %v4866 = vrot.slane %v4808, 5
        %v4867 = vrot.slane %v4809, 5
        %v4868 = vsel %vm4344, %v4866, %v4867
        %v4869 = vrot.slane %v4810, 5
        %v4870 = vsel %vm4344, %v4867, %v4869
        %v4871 = vrot.slane %v4811, 5
        %v4872 = vrot.slane %v4812, 5
        %v4873 = vsel %vm4344, %v4871, %v4872
        %v4874 = vrot.slane %v4813, 5
        %v4875 = vsel %vm4344, %v4872, %v4874
        %v4876 = vrot.slane %v4814, 5
        %v4877 = vrot.slane %v4815, 5
        %v4878 = vsel %vm4344, %v4876, %v4877
        %v4879 = vrot.slane %v4816, 5
        %v4880 = vsel %vm4344, %v4877, %v4879
        %v4897 = vadd.f32 %v4773, %v4843
        %v4898 = vadd.f32 %v4774, %v4845
        %v4899 = vadd.f32 %v4775, %v4848
        %v4900 = vadd.f32 %v4776, %v4850
        %v4901 = vadd.f32 %v4777, %v4853
        %v4902 = vadd.f32 %v4778, %v4855
        %v4903 = vadd.f32 %v4779, %v4858
        %v4904 = vadd.f32 %v4780, %v4860
        %v4905 = vadd.f32 %v4781, %v4863
        %v4906 = vadd.f32 %v4782, %v4865
        %v4907 = vadd.f32 %v4783, %v4868
        %v4908 = vadd.f32 %v4784, %v4870
        %v4909 = vadd.f32 %v4785, %v4873
        %v4910 = vadd.f32 %v4786, %v4875
        %v4911 = vadd.f32 %v4787, %v4878
        %v4912 = vadd.f32 %v4788, %v4880
        %v4913 = vlaneseq
        %v4914 = vshrl.u32 %v4913, 7
        %v4915 = vsub.s32 5, %v4914
        %v4916 = vrot.slane %v562, %v4915
        %v4917 = vmul.f32 %v530, %v4916
        %v4918 = vmul.f32 %v531, %v4916
        %v4919 = vmul.f32 %v532, %v4916
        %v4920 = vmul.f32 %v533, %v4916
        %v4921 = vmul.f32 %v534, %v4916
        %v4922 = vmul.f32 %v535, %v4916
        %v4923 = vmul.f32 %v536, %v4916
        %v4924 = vmul.f32 %v537, %v4916
        %v4925 = vmul.f32 %v538, %v4916
        %v4926 = vmul.f32 %v539, %v4916
        %v4927 = vmul.f32 %v540, %v4916
        %v4928 = vmul.f32 %v541, %v4916
        %v4929 = vmul.f32 %v542, %v4916
        %v4930 = vmul.f32 %v543, %v4916
        %v4931 = vmul.f32 %v544, %v4916
        %v4932 = vmul.f32 %v545, %v4916
        %v4933 = vmul.f32 %v546, %v4916
        %v4934 = vmul.f32 %v547, %v4916
        %v4935 = vmul.f32 %v548, %v4916
        %v4936 = vmul.f32 %v549, %v4916
        %v4937 = vmul.f32 %v550, %v4916
        %v4938 = vmul.f32 %v551, %v4916
        %v4939 = vmul.f32 %v552, %v4916
        %v4940 = vmul.f32 %v553, %v4916
        %v4965 = vrot.slane %v4917, 5
        %v4966 = vrot.slane %v4918, 5
        %v4967 = vsel %vm4344, %v4965, %v4966
        %v4968 = vrot.slane %v4919, 5
        %v4969 = vsel %vm4344, %v4966, %v4968
        %v4970 = vrot.slane %v4920, 5
        %v4971 = vrot.slane %v4921, 5
        %v4972 = vsel %vm4344, %v4970, %v4971
        %v4973 = vrot.slane %v4922, 5
        %v4974 = vsel %vm4344, %v4971, %v4973
        %v4975 = vrot.slane %v4923, 5
        %v4976 = vrot.slane %v4924, 5
        %v4977 = vsel %vm4344, %v4975, %v4976
        %v4978 = vrot.slane %v4925, 5
        %v4979 = vsel %vm4344, %v4976, %v4978
        %v4980 = vrot.slane %v4926, 5
        %v4981 = vrot.slane %v4927, 5
        %v4982 = vsel %vm4344, %v4980, %v4981
        %v4983 = vrot.slane %v4928, 5
        %v4984 = vsel %vm4344, %v4981, %v4983
        %v4985 = vrot.slane %v4929, 5
        %v4986 = vrot.slane %v4930, 5
        %v4987 = vsel %vm4344, %v4985, %v4986
        %v4988 = vrot.slane %v4931, 5
        %v4989 = vsel %vm4344, %v4986, %v4988
        %v4990 = vrot.slane %v4932, 5
        %v4991 = vrot.slane %v4933, 5
        %v4992 = vsel %vm4344, %v4990, %v4991
        %v4993 = vrot.slane %v4934, 5
        %v4994 = vsel %vm4344, %v4991, %v4993
        %v4995 = vrot.slane %v4935, 5
        %v4996 = vrot.slane %v4936, 5
        %v4997 = vsel %vm4344, %v4995, %v4996
        %v4998 = vrot.slane %v4937, 5
        %v4999 = vsel %vm4344, %v4996, %v4998
        %v5000 = vrot.slane %v4938, 5
        %v5001 = vrot.slane %v4939, 5
        %v5002 = vsel %vm4344, %v5000, %v5001
        %v5003 = vrot.slane %v4940, 5
        %v5004 = vsel %vm4344, %v5001, %v5003
        %v5021 = vadd.f32 %v4897, %v4967
        %v5022 = vadd.f32 %v4898, %v4969
        %v5023 = vadd.f32 %v4899, %v4972
        %v5024 = vadd.f32 %v4900, %v4974
        %v5025 = vadd.f32 %v4901, %v4977
        %v5026 = vadd.f32 %v4902, %v4979
        %v5027 = vadd.f32 %v4903, %v4982
        %v5028 = vadd.f32 %v4904, %v4984
        %v5029 = vadd.f32 %v4905, %v4987
        %v5030 = vadd.f32 %v4906, %v4989
        %v5031 = vadd.f32 %v4907, %v4992
        %v5032 = vadd.f32 %v4908, %v4994
        %v5033 = vadd.f32 %v4909, %v4997
        %v5034 = vadd.f32 %v4910, %v4999
        %v5035 = vadd.f32 %v4911, %v5002
        %v5036 = vadd.f32 %v4912, %v5004
        %v5037 = vlaneseq
        %v5038 = vshrl.u32 %v5037, 7
        %v5039 = vsub.s32 5, %v5038
        %v5040 = vrot.slane %v563, %v5039
        %v5041 = vmul.f32 %v533, %v5040
        %v5042 = vmul.f32 %v534, %v5040
        %v5043 = vmul.f32 %v535, %v5040
        %v5044 = vmul.f32 %v536, %v5040
        %v5045 = vmul.f32 %v537, %v5040
        %v5046 = vmul.f32 %v538, %v5040
        %v5047 = vmul.f32 %v539, %v5040
        %v5048 = vmul.f32 %v540, %v5040
        %v5049 = vmul.f32 %v541, %v5040
        %v5050 = vmul.f32 %v542, %v5040
        %v5051 = vmul.f32 %v543, %v5040
        %v5052 = vmul.f32 %v544, %v5040
        %v5053 = vmul.f32 %v545, %v5040
        %v5054 = vmul.f32 %v546, %v5040
        %v5055 = vmul.f32 %v547, %v5040
        %v5056 = vmul.f32 %v548, %v5040
        %v5057 = vmul.f32 %v549, %v5040
        %v5058 = vmul.f32 %v550, %v5040
        %v5059 = vmul.f32 %v551, %v5040
        %v5060 = vmul.f32 %v552, %v5040
        %v5061 = vmul.f32 %v553, %v5040
        %v5062 = vmul.f32 %v554, %v5040
        %v5063 = vmul.f32 %v555, %v5040
        %v5064 = vmul.f32 %v556, %v5040
        %v5089 = vrot.slane %v5041, 5
        %v5090 = vrot.slane %v5042, 5
        %v5091 = vsel %vm4344, %v5089, %v5090
        %v5092 = vrot.slane %v5043, 5
        %v5093 = vsel %vm4344, %v5090, %v5092
        %v5094 = vrot.slane %v5044, 5
        %v5095 = vrot.slane %v5045, 5
        %v5096 = vsel %vm4344, %v5094, %v5095
        %v5097 = vrot.slane %v5046, 5
        %v5098 = vsel %vm4344, %v5095, %v5097
        %v5099 = vrot.slane %v5047, 5
        %v5100 = vrot.slane %v5048, 5
        %v5101 = vsel %vm4344, %v5099, %v5100
        %v5102 = vrot.slane %v5049, 5
        %v5103 = vsel %vm4344, %v5100, %v5102
        %v5104 = vrot.slane %v5050, 5
        %v5105 = vrot.slane %v5051, 5
        %v5106 = vsel %vm4344, %v5104, %v5105
        %v5107 = vrot.slane %v5052, 5
        %v5108 = vsel %vm4344, %v5105, %v5107
        %v5109 = vrot.slane %v5053, 5
        %v5110 = vrot.slane %v5054, 5
        %v5111 = vsel %vm4344, %v5109, %v5110
        %v5112 = vrot.slane %v5055, 5
        %v5113 = vsel %vm4344, %v5110, %v5112
        %v5114 = vrot.slane %v5056, 5
        %v5115 = vrot.slane %v5057, 5
        %v5116 = vsel %vm4344, %v5114, %v5115
        %v5117 = vrot.slane %v5058, 5
        %v5118 = vsel %vm4344, %v5115, %v5117
        %v5119 = vrot.slane %v5059, 5
        %v5120 = vrot.slane %v5060, 5
        %v5121 = vsel %vm4344, %v5119, %v5120
        %v5122 = vrot.slane %v5061, 5
        %v5123 = vsel %vm4344, %v5120, %v5122
        %v5124 = vrot.slane %v5062, 5
        %v5125 = vrot.slane %v5063, 5
        %v5126 = vsel %vm4344, %v5124, %v5125
        %v5127 = vrot.slane %v5064, 5
        %v5128 = vsel %vm4344, %v5125, %v5127
        %v5145 = vadd.f32 %v5021, %v5091
        %v5146 = vadd.f32 %v5022, %v5093
        %v5147 = vadd.f32 %v5023, %v5096
        %v5148 = vadd.f32 %v5024, %v5098
        %v5149 = vadd.f32 %v5025, %v5101
        %v5150 = vadd.f32 %v5026, %v5103
        %v5151 = vadd.f32 %v5027, %v5106
        %v5152 = vadd.f32 %v5028, %v5108
        %v5153 = vadd.f32 %v5029, %v5111
        %v5154 = vadd.f32 %v5030, %v5113
        %v5155 = vadd.f32 %v5031, %v5116
        %v5156 = vadd.f32 %v5032, %v5118
        %v5157 = vadd.f32 %v5033, %v5121
        %v5158 = vadd.f32 %v5034, %v5123
        %v5159 = vadd.f32 %v5035, %v5126
        %v5160 = vadd.f32 %v5036, %v5128
        %v5161 = vlaneseq
        %v5162 = vshrl.u32 %v5161, 7
        %v5163 = vsub.s32 6, %v5162
        %v5164 = vrot.slane %v557, %v5163
        %v5165 = vmul.f32 %v515, %v5164
        %v5166 = vmul.f32 %v516, %v5164
        %v5167 = vmul.f32 %v517, %v5164
        %v5168 = vmul.f32 %v518, %v5164
        %v5169 = vmul.f32 %v519, %v5164
        %v5170 = vmul.f32 %v520, %v5164
        %v5171 = vmul.f32 %v521, %v5164
        %v5172 = vmul.f32 %v522, %v5164
        %v5173 = vmul.f32 %v523, %v5164
        %v5174 = vmul.f32 %v524, %v5164
        %v5175 = vmul.f32 %v525, %v5164
        %v5176 = vmul.f32 %v526, %v5164
        %v5177 = vmul.f32 %v527, %v5164
        %v5178 = vmul.f32 %v528, %v5164
        %v5179 = vmul.f32 %v529, %v5164
        %v5180 = vmul.f32 %v530, %v5164
        %v5181 = vmul.f32 %v531, %v5164
        %v5182 = vmul.f32 %v532, %v5164
        %v5183 = vmul.f32 %v533, %v5164
        %v5184 = vmul.f32 %v534, %v5164
        %v5185 = vmul.f32 %v535, %v5164
        %v5186 = vmul.f32 %v536, %v5164
        %v5187 = vmul.f32 %v537, %v5164
        %v5188 = vmul.f32 %v538, %v5164
        %vm5213 = vcmask 1041408
        %v5214 = vrot.slane %v5165, 6
        %v5215 = vrot.slane %v5166, 6
        %v5216 = vsel %vm5213, %v5214, %v5215
        %v5217 = vrot.slane %v5167, 6
        %v5218 = vsel %vm5213, %v5215, %v5217
        %v5219 = vrot.slane %v5168, 6
        %v5220 = vrot.slane %v5169, 6
        %v5221 = vsel %vm5213, %v5219, %v5220
        %v5222 = vrot.slane %v5170, 6
        %v5223 = vsel %vm5213, %v5220, %v5222
        %v5224 = vrot.slane %v5171, 6
        %v5225 = vrot.slane %v5172, 6
        %v5226 = vsel %vm5213, %v5224, %v5225
        %v5227 = vrot.slane %v5173, 6
        %v5228 = vsel %vm5213, %v5225, %v5227
        %v5229 = vrot.slane %v5174, 6
        %v5230 = vrot.slane %v5175, 6
        %v5231 = vsel %vm5213, %v5229, %v5230
        %v5232 = vrot.slane %v5176, 6
        %v5233 = vsel %vm5213, %v5230, %v5232
        %v5234 = vrot.slane %v5177, 6
        %v5235 = vrot.slane %v5178, 6
        %v5236 = vsel %vm5213, %v5234, %v5235
        %v5237 = vrot.slane %v5179, 6
        %v5238 = vsel %vm5213, %v5235, %v5237
        %v5239 = vrot.slane %v5180, 6
        %v5240 = vrot.slane %v5181, 6
        %v5241 = vsel %vm5213, %v5239, %v5240
        %v5242 = vrot.slane %v5182, 6
        %v5243 = vsel %vm5213, %v5240, %v5242
        %v5244 = vrot.slane %v5183, 6
        %v5245 = vrot.slane %v5184, 6
        %v5246 = vsel %vm5213, %v5244, %v5245
        %v5247 = vrot.slane %v5185, 6
        %v5248 = vsel %vm5213, %v5245, %v5247
        %v5249 = vrot.slane %v5186, 6
        %v5250 = vrot.slane %v5187, 6
        %v5251 = vsel %vm5213, %v5249, %v5250
        %v5252 = vrot.slane %v5188, 6
        %v5253 = vsel %vm5213, %v5250, %v5252
        %v5270 = vadd.f32 %v5145, %v5216
        %v5271 = vadd.f32 %v5146, %v5218
        %v5272 = vadd.f32 %v5147, %v5221
        %v5273 = vadd.f32 %v5148, %v5223
        %v5274 = vadd.f32 %v5149, %v5226
        %v5275 = vadd.f32 %v5150, %v5228
        %v5276 = vadd.f32 %v5151, %v5231
        %v5277 = vadd.f32 %v5152, %v5233
        %v5278 = vadd.f32 %v5153, %v5236
        %v5279 = vadd.f32 %v5154, %v5238
        %v5280 = vadd.f32 %v5155, %v5241
        %v5281 = vadd.f32 %v5156, %v5243
        %v5282 = vadd.f32 %v5157, %v5246
        %v5283 = vadd.f32 %v5158, %v5248
        %v5284 = vadd.f32 %v5159, %v5251
        %v5285 = vadd.f32 %v5160, %v5253
        %v5286 = vlaneseq
        %v5287 = vshrl.u32 %v5286, 7
        %v5288 = vsub.s32 6, %v5287
        %v5289 = vrot.slane %v558, %v5288
        %v5290 = vmul.f32 %v518, %v5289
        %v5291 = vmul.f32 %v519, %v5289
        %v5292 = vmul.f32 %v520, %v5289
        %v5293 = vmul.f32 %v521, %v5289
        %v5294 = vmul.f32 %v522, %v5289
        %v5295 = vmul.f32 %v523, %v5289
        %v5296 = vmul.f32 %v524, %v5289
        %v5297 = vmul.f32 %v525, %v5289
        %v5298 = vmul.f32 %v526, %v5289
        %v5299 = vmul.f32 %v527, %v5289
        %v5300 = vmul.f32 %v528, %v5289
        %v5301 = vmul.f32 %v529, %v5289
        %v5302 = vmul.f32 %v530, %v5289
        %v5303 = vmul.f32 %v531, %v5289
        %v5304 = vmul.f32 %v532, %v5289
        %v5305 = vmul.f32 %v533, %v5289
        %v5306 = vmul.f32 %v534, %v5289
        %v5307 = vmul.f32 %v535, %v5289
        %v5308 = vmul.f32 %v536, %v5289
        %v5309 = vmul.f32 %v537, %v5289
        %v5310 = vmul.f32 %v538, %v5289
        %v5311 = vmul.f32 %v539, %v5289
        %v5312 = vmul.f32 %v540, %v5289
        %v5313 = vmul.f32 %v541, %v5289
        %v5338 = vrot.slane %v5290, 6
        %v5339 = vrot.slane %v5291, 6
        %v5340 = vsel %vm5213, %v5338, %v5339
        %v5341 = vrot.slane %v5292, 6
        %v5342 = vsel %vm5213, %v5339, %v5341
        %v5343 = vrot.slane %v5293, 6
        %v5344 = vrot.slane %v5294, 6
        %v5345 = vsel %vm5213, %v5343, %v5344
        %v5346 = vrot.slane %v5295, 6
        %v5347 = vsel %vm5213, %v5344, %v5346
        %v5348 = vrot.slane %v5296, 6
        %v5349 = vrot.slane %v5297, 6
        %v5350 = vsel %vm5213, %v5348, %v5349
        %v5351 = vrot.slane %v5298, 6
        %v5352 = vsel %vm5213, %v5349, %v5351
        %v5353 = vrot.slane %v5299, 6
        %v5354 = vrot.slane %v5300, 6
        %v5355 = vsel %vm5213, %v5353, %v5354
        %v5356 = vrot.slane %v5301, 6
        %v5357 = vsel %vm5213, %v5354, %v5356
        %v5358 = vrot.slane %v5302, 6
        %v5359 = vrot.slane %v5303, 6
        %v5360 = vsel %vm5213, %v5358, %v5359
        %v5361 = vrot.slane %v5304, 6
        %v5362 = vsel %vm5213, %v5359, %v5361
        %v5363 = vrot.slane %v5305, 6
        %v5364 = vrot.slane %v5306, 6
        %v5365 = vsel %vm5213, %v5363, %v5364
        %v5366 = vrot.slane %v5307, 6
        %v5367 = vsel %vm5213, %v5364, %v5366
        %v5368 = vrot.slane %v5308, 6
        %v5369 = vrot.slane %v5309, 6
        %v5370 = vsel %vm5213, %v5368, %v5369
        %v5371 = vrot.slane %v5310, 6
        %v5372 = vsel %vm5213, %v5369, %v5371
        %v5373 = vrot.slane %v5311, 6
        %v5374 = vrot.slane %v5312, 6
        %v5375 = vsel %vm5213, %v5373, %v5374
        %v5376 = vrot.slane %v5313, 6
        %v5377 = vsel %vm5213, %v5374, %v5376
        %v5394 = vadd.f32 %v5270, %v5340
        %v5395 = vadd.f32 %v5271, %v5342
        %v5396 = vadd.f32 %v5272, %v5345
        %v5397 = vadd.f32 %v5273, %v5347
        %v5398 = vadd.f32 %v5274, %v5350
        %v5399 = vadd.f32 %v5275, %v5352
        %v5400 = vadd.f32 %v5276, %v5355
        %v5401 = vadd.f32 %v5277, %v5357
        %v5402 = vadd.f32 %v5278, %v5360
        %v5403 = vadd.f32 %v5279, %v5362
        %v5404 = vadd.f32 %v5280, %v5365
        %v5405 = vadd.f32 %v5281, %v5367
        %v5406 = vadd.f32 %v5282, %v5370
        %v5407 = vadd.f32 %v5283, %v5372
        %v5408 = vadd.f32 %v5284, %v5375
        %v5409 = vadd.f32 %v5285, %v5377
        %v5410 = vlaneseq
        %v5411 = vshrl.u32 %v5410, 7
        %v5412 = vsub.s32 6, %v5411
        %v5413 = vrot.slane %v559, %v5412
        %v5414 = vmul.f32 %v521, %v5413
        %v5415 = vmul.f32 %v522, %v5413
        %v5416 = vmul.f32 %v523, %v5413
        %v5417 = vmul.f32 %v524, %v5413
        %v5418 = vmul.f32 %v525, %v5413
        %v5419 = vmul.f32 %v526, %v5413
        %v5420 = vmul.f32 %v527, %v5413
        %v5421 = vmul.f32 %v528, %v5413
        %v5422 = vmul.f32 %v529, %v5413
        %v5423 = vmul.f32 %v530, %v5413
        %v5424 = vmul.f32 %v531, %v5413
        %v5425 = vmul.f32 %v532, %v5413
        %v5426 = vmul.f32 %v533, %v5413
        %v5427 = vmul.f32 %v534, %v5413
        %v5428 = vmul.f32 %v535, %v5413
        %v5429 = vmul.f32 %v536, %v5413
        %v5430 = vmul.f32 %v537, %v5413
        %v5431 = vmul.f32 %v538, %v5413
        %v5432 = vmul.f32 %v539, %v5413
        %v5433 = vmul.f32 %v540, %v5413
        %v5434 = vmul.f32 %v541, %v5413
        %v5435 = vmul.f32 %v542, %v5413
        %v5436 = vmul.f32 %v543, %v5413
        %v5437 = vmul.f32 %v544, %v5413
        %v5462 = vrot.slane %v5414, 6
        %v5463 = vrot.slane %v5415, 6
        %v5464 = vsel %vm5213, %v5462, %v5463
        %v5465 = vrot.slane %v5416, 6
        %v5466 = vsel %vm5213, %v5463, %v5465
        %v5467 = vrot.slane %v5417, 6
        %v5468 = vrot.slane %v5418, 6
        %v5469 = vsel %vm5213, %v5467, %v5468
        %v5470 = vrot.slane %v5419, 6
        %v5471 = vsel %vm5213, %v5468, %v5470
        %v5472 = vrot.slane %v5420, 6
        %v5473 = vrot.slane %v5421, 6
        %v5474 = vsel %vm5213, %v5472, %v5473
        %v5475 = vrot.slane %v5422, 6
        %v5476 = vsel %vm5213, %v5473, %v5475
        %v5477 = vrot.slane %v5423, 6
        %v5478 = vrot.slane %v5424, 6
        %v5479 = vsel %vm5213, %v5477, %v5478
        %v5480 = vrot.slane %v5425, 6
        %v5481 = vsel %vm5213, %v5478, %v5480
        %v5482 = vrot.slane %v5426, 6
        %v5483 = vrot.slane %v5427, 6
        %v5484 = vsel %vm5213, %v5482, %v5483
        %v5485 = vrot.slane %v5428, 6
        %v5486 = vsel %vm5213, %v5483, %v5485
        %v5487 = vrot.slane %v5429, 6
        %v5488 = vrot.slane %v5430, 6
        %v5489 = vsel %vm5213, %v5487, %v5488
        %v5490 = vrot.slane %v5431, 6
        %v5491 = vsel %vm5213, %v5488, %v5490
        %v5492 = vrot.slane %v5432, 6
        %v5493 = vrot.slane %v5433, 6
        %v5494 = vsel %vm5213, %v5492, %v5493
        %v5495 = vrot.slane %v5434, 6
        %v5496 = vsel %vm5213, %v5493, %v5495
        %v5497 = vrot.slane %v5435, 6
        %v5498 = vrot.slane %v5436, 6
        %v5499 = vsel %vm5213, %v5497, %v5498
        %v5500 = vrot.slane %v5437, 6
        %v5501 = vsel %vm5213, %v5498, %v5500
        %v5518 = vadd.f32 %v5394, %v5464
        %v5519 = vadd.f32 %v5395, %v5466
        %v5520 = vadd.f32 %v5396, %v5469
        %v5521 = vadd.f32 %v5397, %v5471
        %v5522 = vadd.f32 %v5398, %v5474
        %v5523 = vadd.f32 %v5399, %v5476
        %v5524 = vadd.f32 %v5400, %v5479
        %v5525 = vadd.f32 %v5401, %v5481
        %v5526 = vadd.f32 %v5402, %v5484
        %v5527 = vadd.f32 %v5403, %v5486
        %v5528 = vadd.f32 %v5404, %v5489
        %v5529 = vadd.f32 %v5405, %v5491
        %v5530 = vadd.f32 %v5406, %v5494
        %v5531 = vadd.f32 %v5407, %v5496
        %v5532 = vadd.f32 %v5408, %v5499
        %v5533 = vadd.f32 %v5409, %v5501
        %v5534 = vlaneseq
        %v5535 = vshrl.u32 %v5534, 7
        %v5536 = vsub.s32 6, %v5535
        %v5537 = vrot.slane %v560, %v5536
        %v5538 = vmul.f32 %v524, %v5537
        %v5539 = vmul.f32 %v525, %v5537
        %v5540 = vmul.f32 %v526, %v5537
        %v5541 = vmul.f32 %v527, %v5537
        %v5542 = vmul.f32 %v528, %v5537
        %v5543 = vmul.f32 %v529, %v5537
        %v5544 = vmul.f32 %v530, %v5537
        %v5545 = vmul.f32 %v531, %v5537
        %v5546 = vmul.f32 %v532, %v5537
        %v5547 = vmul.f32 %v533, %v5537
        %v5548 = vmul.f32 %v534, %v5537
        %v5549 = vmul.f32 %v535, %v5537
        %v5550 = vmul.f32 %v536, %v5537
        %v5551 = vmul.f32 %v537, %v5537
        %v5552 = vmul.f32 %v538, %v5537
        %v5553 = vmul.f32 %v539, %v5537
        %v5554 = vmul.f32 %v540, %v5537
        %v5555 = vmul.f32 %v541, %v5537
        %v5556 = vmul.f32 %v542, %v5537
        %v5557 = vmul.f32 %v543, %v5537
        %v5558 = vmul.f32 %v544, %v5537
        %v5559 = vmul.f32 %v545, %v5537
        %v5560 = vmul.f32 %v546, %v5537
        %v5561 = vmul.f32 %v547, %v5537
        %v5586 = vrot.slane %v5538, 6
        %v5587 = vrot.slane %v5539, 6
        %v5588 = vsel %vm5213, %v5586, %v5587
        %v5589 = vrot.slane %v5540, 6
        %v5590 = vsel %vm5213, %v5587, %v5589
        %v5591 = vrot.slane %v5541, 6
        %v5592 = vrot.slane %v5542, 6
        %v5593 = vsel %vm5213, %v5591, %v5592
        %v5594 = vrot.slane %v5543, 6
        %v5595 = vsel %vm5213, %v5592, %v5594
        %v5596 = vrot.slane %v5544, 6
        %v5597 = vrot.slane %v5545, 6
        %v5598 = vsel %vm5213, %v5596, %v5597
        %v5599 = vrot.slane %v5546, 6
        %v5600 = vsel %vm5213, %v5597, %v5599
        %v5601 = vrot.slane %v5547, 6
        %v5602 = vrot.slane %v5548, 6
        %v5603 = vsel %vm5213, %v5601, %v5602
        %v5604 = vrot.slane %v5549, 6
        %v5605 = vsel %vm5213, %v5602, %v5604
        %v5606 = vrot.slane %v5550, 6
        %v5607 = vrot.slane %v5551, 6
        %v5608 = vsel %vm5213, %v5606, %v5607
        %v5609 = vrot.slane %v5552, 6
        %v5610 = vsel %vm5213, %v5607, %v5609
        %v5611 = vrot.slane %v5553, 6
        %v5612 = vrot.slane %v5554, 6
        %v5613 = vsel %vm5213, %v5611, %v5612
        %v5614 = vrot.slane %v5555, 6
        %v5615 = vsel %vm5213, %v5612, %v5614
        %v5616 = vrot.slane %v5556, 6
        %v5617 = vrot.slane %v5557, 6
        %v5618 = vsel %vm5213, %v5616, %v5617
        %v5619 = vrot.slane %v5558, 6
        %v5620 = vsel %vm5213, %v5617, %v5619
        %v5621 = vrot.slane %v5559, 6
        %v5622 = vrot.slane %v5560, 6
        %v5623 = vsel %vm5213, %v5621, %v5622
        %v5624 = vrot.slane %v5561, 6
        %v5625 = vsel %vm5213, %v5622, %v5624
        %v5642 = vadd.f32 %v5518, %v5588
        %v5643 = vadd.f32 %v5519, %v5590
        %v5644 = vadd.f32 %v5520, %v5593
        %v5645 = vadd.f32 %v5521, %v5595
        %v5646 = vadd.f32 %v5522, %v5598
        %v5647 = vadd.f32 %v5523, %v5600
        %v5648 = vadd.f32 %v5524, %v5603
        %v5649 = vadd.f32 %v5525, %v5605
        %v5650 = vadd.f32 %v5526, %v5608
        %v5651 = vadd.f32 %v5527, %v5610
        %v5652 = vadd.f32 %v5528, %v5613
        %v5653 = vadd.f32 %v5529, %v5615
        %v5654 = vadd.f32 %v5530, %v5618
        %v5655 = vadd.f32 %v5531, %v5620
        %v5656 = vadd.f32 %v5532, %v5623
        %v5657 = vadd.f32 %v5533, %v5625
        %v5658 = vlaneseq
        %v5659 = vshrl.u32 %v5658, 7
        %v5660 = vsub.s32 6, %v5659
        %v5661 = vrot.slane %v561, %v5660
        %v5662 = vmul.f32 %v527, %v5661
        %v5663 = vmul.f32 %v528, %v5661
        %v5664 = vmul.f32 %v529, %v5661
        %v5665 = vmul.f32 %v530, %v5661
        %v5666 = vmul.f32 %v531, %v5661
        %v5667 = vmul.f32 %v532, %v5661
        %v5668 = vmul.f32 %v533, %v5661
        %v5669 = vmul.f32 %v534, %v5661
        %v5670 = vmul.f32 %v535, %v5661
        %v5671 = vmul.f32 %v536, %v5661
        %v5672 = vmul.f32 %v537, %v5661
        %v5673 = vmul.f32 %v538, %v5661
        %v5674 = vmul.f32 %v539, %v5661
        %v5675 = vmul.f32 %v540, %v5661
        %v5676 = vmul.f32 %v541, %v5661
        %v5677 = vmul.f32 %v542, %v5661
        %v5678 = vmul.f32 %v543, %v5661
        %v5679 = vmul.f32 %v544, %v5661
        %v5680 = vmul.f32 %v545, %v5661
        %v5681 = vmul.f32 %v546, %v5661
        %v5682 = vmul.f32 %v547, %v5661
        %v5683 = vmul.f32 %v548, %v5661
        %v5684 = vmul.f32 %v549, %v5661
        %v5685 = vmul.f32 %v550, %v5661
        %v5710 = vrot.slane %v5662, 6
        %v5711 = vrot.slane %v5663, 6
        %v5712 = vsel %vm5213, %v5710, %v5711
        %v5713 = vrot.slane %v5664, 6
        %v5714 = vsel %vm5213, %v5711, %v5713
        %v5715 = vrot.slane %v5665, 6
        %v5716 = vrot.slane %v5666, 6
        %v5717 = vsel %vm5213, %v5715, %v5716
        %v5718 = vrot.slane %v5667, 6
        %v5719 = vsel %vm5213, %v5716, %v5718
        %v5720 = vrot.slane %v5668, 6
        %v5721 = vrot.slane %v5669, 6
        %v5722 = vsel %vm5213, %v5720, %v5721
        %v5723 = vrot.slane %v5670, 6
        %v5724 = vsel %vm5213, %v5721, %v5723
        %v5725 = vrot.slane %v5671, 6
        %v5726 = vrot.slane %v5672, 6
        %v5727 = vsel %vm5213, %v5725, %v5726
        %v5728 = vrot.slane %v5673, 6
        %v5729 = vsel %vm5213, %v5726, %v5728
        %v5730 = vrot.slane %v5674, 6
        %v5731 = vrot.slane %v5675, 6
        %v5732 = vsel %vm5213, %v5730, %v5731
        %v5733 = vrot.slane %v5676, 6
        %v5734 = vsel %vm5213, %v5731, %v5733
        %v5735 = vrot.slane %v5677, 6
        %v5736 = vrot.slane %v5678, 6
        %v5737 = vsel %vm5213, %v5735, %v5736
        %v5738 = vrot.slane %v5679, 6
        %v5739 = vsel %vm5213, %v5736, %v5738
        %v5740 = vrot.slane %v5680, 6
        %v5741 = vrot.slane %v5681, 6
        %v5742 = vsel %vm5213, %v5740, %v5741
        %v5743 = vrot.slane %v5682, 6
        %v5744 = vsel %vm5213, %v5741, %v5743
        %v5745 = vrot.slane %v5683, 6
        %v5746 = vrot.slane %v5684, 6
        %v5747 = vsel %vm5213, %v5745, %v5746
        %v5748 = vrot.slane %v5685, 6
        %v5749 = vsel %vm5213, %v5746, %v5748
        %v5766 = vadd.f32 %v5642, %v5712
        %v5767 = vadd.f32 %v5643, %v5714
        %v5768 = vadd.f32 %v5644, %v5717
        %v5769 = vadd.f32 %v5645, %v5719
        %v5770 = vadd.f32 %v5646, %v5722
        %v5771 = vadd.f32 %v5647, %v5724
        %v5772 = vadd.f32 %v5648, %v5727
        %v5773 = vadd.f32 %v5649, %v5729
        %v5774 = vadd.f32 %v5650, %v5732
        %v5775 = vadd.f32 %v5651, %v5734
        %v5776 = vadd.f32 %v5652, %v5737
        %v5777 = vadd.f32 %v5653, %v5739
        %v5778 = vadd.f32 %v5654, %v5742
        %v5779 = vadd.f32 %v5655, %v5744
        %v5780 = vadd.f32 %v5656, %v5747
        %v5781 = vadd.f32 %v5657, %v5749
        %v5782 = vlaneseq
        %v5783 = vshrl.u32 %v5782, 7
        %v5784 = vsub.s32 6, %v5783
        %v5785 = vrot.slane %v562, %v5784
        %v5786 = vmul.f32 %v530, %v5785
        %v5787 = vmul.f32 %v531, %v5785
        %v5788 = vmul.f32 %v532, %v5785
        %v5789 = vmul.f32 %v533, %v5785
        %v5790 = vmul.f32 %v534, %v5785
        %v5791 = vmul.f32 %v535, %v5785
        %v5792 = vmul.f32 %v536, %v5785
        %v5793 = vmul.f32 %v537, %v5785
        %v5794 = vmul.f32 %v538, %v5785
        %v5795 = vmul.f32 %v539, %v5785
        %v5796 = vmul.f32 %v540, %v5785
        %v5797 = vmul.f32 %v541, %v5785
        %v5798 = vmul.f32 %v542, %v5785
        %v5799 = vmul.f32 %v543, %v5785
        %v5800 = vmul.f32 %v544, %v5785
        %v5801 = vmul.f32 %v545, %v5785
        %v5802 = vmul.f32 %v546, %v5785
        %v5803 = vmul.f32 %v547, %v5785
        %v5804 = vmul.f32 %v548, %v5785
        %v5805 = vmul.f32 %v549, %v5785
        %v5806 = vmul.f32 %v550, %v5785
        %v5807 = vmul.f32 %v551, %v5785
        %v5808 = vmul.f32 %v552, %v5785
        %v5809 = vmul.f32 %v553, %v5785
        %v5834 = vrot.slane %v5786, 6
        %v5835 = vrot.slane %v5787, 6
        %v5836 = vsel %vm5213, %v5834, %v5835
        %v5837 = vrot.slane %v5788, 6
        %v5838 = vsel %vm5213, %v5835, %v5837
        %v5839 = vrot.slane %v5789, 6
        %v5840 = vrot.slane %v5790, 6
        %v5841 = vsel %vm5213, %v5839, %v5840
        %v5842 = vrot.slane %v5791, 6
        %v5843 = vsel %vm5213, %v5840, %v5842
        %v5844 = vrot.slane %v5792, 6
        %v5845 = vrot.slane %v5793, 6
        %v5846 = vsel %vm5213, %v5844, %v5845
        %v5847 = vrot.slane %v5794, 6
        %v5848 = vsel %vm5213, %v5845, %v5847
        %v5849 = vrot.slane %v5795, 6
        %v5850 = vrot.slane %v5796, 6
        %v5851 = vsel %vm5213, %v5849, %v5850
        %v5852 = vrot.slane %v5797, 6
        %v5853 = vsel %vm5213, %v5850, %v5852
        %v5854 = vrot.slane %v5798, 6
        %v5855 = vrot.slane %v5799, 6
        %v5856 = vsel %vm5213, %v5854, %v5855
        %v5857 = vrot.slane %v5800, 6
        %v5858 = vsel %vm5213, %v5855, %v5857
        %v5859 = vrot.slane %v5801, 6
        %v5860 = vrot.slane %v5802, 6
        %v5861 = vsel %vm5213, %v5859, %v5860
        %v5862 = vrot.slane %v5803, 6
        %v5863 = vsel %vm5213, %v5860, %v5862
        %v5864 = vrot.slane %v5804, 6
        %v5865 = vrot.slane %v5805, 6
        %v5866 = vsel %vm5213, %v5864, %v5865
        %v5867 = vrot.slane %v5806, 6
        %v5868 = vsel %vm5213, %v5865, %v5867
        %v5869 = vrot.slane %v5807, 6
        %v5870 = vrot.slane %v5808, 6
        %v5871 = vsel %vm5213, %v5869, %v5870
        %v5872 = vrot.slane %v5809, 6
        %v5873 = vsel %vm5213, %v5870, %v5872
        %v5890 = vadd.f32 %v5766, %v5836
        %v5891 = vadd.f32 %v5767, %v5838
        %v5892 = vadd.f32 %v5768, %v5841
        %v5893 = vadd.f32 %v5769, %v5843
        %v5894 = vadd.f32 %v5770, %v5846
        %v5895 = vadd.f32 %v5771, %v5848
        %v5896 = vadd.f32 %v5772, %v5851
        %v5897 = vadd.f32 %v5773, %v5853
        %v5898 = vadd.f32 %v5774, %v5856
        %v5899 = vadd.f32 %v5775, %v5858
        %v5900 = vadd.f32 %v5776, %v5861
        %v5901 = vadd.f32 %v5777, %v5863
        %v5902 = vadd.f32 %v5778, %v5866
        %v5903 = vadd.f32 %v5779, %v5868
        %v5904 = vadd.f32 %v5780, %v5871
        %v5905 = vadd.f32 %v5781, %v5873
        %v5906 = vlaneseq
        %v5907 = vshrl.u32 %v5906, 7
        %v5908 = vsub.s32 6, %v5907
        %v5909 = vrot.slane %v563, %v5908
        %v5910 = vmul.f32 %v533, %v5909
        %v5911 = vmul.f32 %v534, %v5909
        %v5912 = vmul.f32 %v535, %v5909
        %v5913 = vmul.f32 %v536, %v5909
        %v5914 = vmul.f32 %v537, %v5909
        %v5915 = vmul.f32 %v538, %v5909
        %v5916 = vmul.f32 %v539, %v5909
        %v5917 = vmul.f32 %v540, %v5909
        %v5918 = vmul.f32 %v541, %v5909
        %v5919 = vmul.f32 %v542, %v5909
        %v5920 = vmul.f32 %v543, %v5909
        %v5921 = vmul.f32 %v544, %v5909
        %v5922 = vmul.f32 %v545, %v5909
        %v5923 = vmul.f32 %v546, %v5909
        %v5924 = vmul.f32 %v547, %v5909
        %v5925 = vmul.f32 %v548, %v5909
        %v5926 = vmul.f32 %v549, %v5909
        %v5927 = vmul.f32 %v550, %v5909
        %v5928 = vmul.f32 %v551, %v5909
        %v5929 = vmul.f32 %v552, %v5909
        %v5930 = vmul.f32 %v553, %v5909
        %v5931 = vmul.f32 %v554, %v5909
        %v5932 = vmul.f32 %v555, %v5909
        %v5933 = vmul.f32 %v556, %v5909
        %v5958 = vrot.slane %v5910, 6
        %v5959 = vrot.slane %v5911, 6
        %v5960 = vsel %vm5213, %v5958, %v5959
        %v5961 = vrot.slane %v5912, 6
        %v5962 = vsel %vm5213, %v5959, %v5961
        %v5963 = vrot.slane %v5913, 6
        %v5964 = vrot.slane %v5914, 6
        %v5965 = vsel %vm5213, %v5963, %v5964
        %v5966 = vrot.slane %v5915, 6
        %v5967 = vsel %vm5213, %v5964, %v5966
        %v5968 = vrot.slane %v5916, 6
        %v5969 = vrot.slane %v5917, 6
        %v5970 = vsel %vm5213, %v5968, %v5969
        %v5971 = vrot.slane %v5918, 6
        %v5972 = vsel %vm5213, %v5969, %v5971
        %v5973 = vrot.slane %v5919, 6
        %v5974 = vrot.slane %v5920, 6
        %v5975 = vsel %vm5213, %v5973, %v5974
        %v5976 = vrot.slane %v5921, 6
        %v5977 = vsel %vm5213, %v5974, %v5976
        %v5978 = vrot.slane %v5922, 6
        %v5979 = vrot.slane %v5923, 6
        %v5980 = vsel %vm5213, %v5978, %v5979
        %v5981 = vrot.slane %v5924, 6
        %v5982 = vsel %vm5213, %v5979, %v5981
        %v5983 = vrot.slane %v5925, 6
        %v5984 = vrot.slane %v5926, 6
        %v5985 = vsel %vm5213, %v5983, %v5984
        %v5986 = vrot.slane %v5927, 6
        %v5987 = vsel %vm5213, %v5984, %v5986
        %v5988 = vrot.slane %v5928, 6
        %v5989 = vrot.slane %v5929, 6
        %v5990 = vsel %vm5213, %v5988, %v5989
        %v5991 = vrot.slane %v5930, 6
        %v5992 = vsel %vm5213, %v5989, %v5991
        %v5993 = vrot.slane %v5931, 6
        %v5994 = vrot.slane %v5932, 6
        %v5995 = vsel %vm5213, %v5993, %v5994
        %v5996 = vrot.slane %v5933, 6
        %v5997 = vsel %vm5213, %v5994, %v5996
        %v6014 = vadd.f32 %v5890, %v5960
        %v6015 = vadd.f32 %v5891, %v5962
        %v6016 = vadd.f32 %v5892, %v5965
        %v6017 = vadd.f32 %v5893, %v5967
        %v6018 = vadd.f32 %v5894, %v5970
        %v6019 = vadd.f32 %v5895, %v5972
        %v6020 = vadd.f32 %v5896, %v5975
        %v6021 = vadd.f32 %v5897, %v5977
        %v6022 = vadd.f32 %v5898, %v5980
        %v6023 = vadd.f32 %v5899, %v5982
        %v6024 = vadd.f32 %v5900, %v5985
        %v6025 = vadd.f32 %v5901, %v5987
        %v6026 = vadd.f32 %v5902, %v5990
        %v6027 = vadd.f32 %v5903, %v5992
        %v6028 = vadd.f32 %v5904, %v5995
        %v6029 = vadd.f32 %v5905, %v5997
        %v6030 = vld [vmem:[#allocation7] sm:$0x1]
        %v6032 = vlaneseq
        %v6033 = vshrl.u32 %v6032, 7
        %v6034 = vsub.s32 0, %v6033
        %v6035 = vrot.slane %v6030, %v6034
        %v6037 = vadd.f32 %v6014, %v6035
        %v6038 = vadd.f32 %v6015, %v6035
        %v6039 = vadd.f32 %v6016, %v6035
        %v6040 = vadd.f32 %v6017, %v6035
        %v6041 = vadd.f32 %v6018, %v6035
        %v6042 = vadd.f32 %v6019, %v6035
        %v6043 = vadd.f32 %v6020, %v6035
        %v6044 = vadd.f32 %v6021, %v6035
        %v6045 = vadd.f32 %v6022, %v6035
        %v6046 = vadd.f32 %v6023, %v6035
        %v6047 = vadd.f32 %v6024, %v6035
        %v6048 = vadd.f32 %v6025, %v6035
        %v6049 = vadd.f32 %v6026, %v6035
        %v6050 = vadd.f32 %v6027, %v6035
        %v6051 = vadd.f32 %v6028, %v6035
        %v6052 = vadd.f32 %v6029, %v6035
        %vm6053 = vcmask 261120
        %v6054 = vsel %vm6053, %v6037, 0.0
        %6055 = vadd.xlane.f32.xlu0 %v6054
        %v6056 = vpop.xlane.xlu0 %6055
        %v6057 = vsel %vm6053, %v6038, 0.0
        %6058 = vadd.xlane.f32.xlu0 %v6057
        %v6059 = vpop.xlane.xlu0 %6058
        %v6060 = vsel %vm6053, %v6039, 0.0
        %6061 = vadd.xlane.f32.xlu0 %v6060
        %v6062 = vpop.xlane.xlu0 %6061
        %v6063 = vsel %vm6053, %v6040, 0.0
        %6064 = vadd.xlane.f32.xlu0 %v6063
        %v6065 = vpop.xlane.xlu0 %6064
        %v6066 = vsel %vm6053, %v6041, 0.0
        %6067 = vadd.xlane.f32.xlu0 %v6066
        %v6068 = vpop.xlane.xlu0 %6067
        %v6069 = vsel %vm6053, %v6042, 0.0
        %6070 = vadd.xlane.f32.xlu0 %v6069
        %v6071 = vpop.xlane.xlu0 %6070
        %v6072 = vsel %vm6053, %v6043, 0.0
        %6073 = vadd.xlane.f32.xlu0 %v6072
        %v6074 = vpop.xlane.xlu0 %6073
        %v6075 = vsel %vm6053, %v6044, 0.0
        %6076 = vadd.xlane.f32.xlu0 %v6075
        %v6077 = vpop.xlane.xlu0 %6076
        %v6078 = vsel %vm6053, %v6045, 0.0
        %6079 = vadd.xlane.f32.xlu0 %v6078
        %v6080 = vpop.xlane.xlu0 %6079
        %v6081 = vsel %vm6053, %v6046, 0.0
        %6082 = vadd.xlane.f32.xlu0 %v6081
        %v6083 = vpop.xlane.xlu0 %6082
        %v6084 = vsel %vm6053, %v6047, 0.0
        %6085 = vadd.xlane.f32.xlu0 %v6084
        %v6086 = vpop.xlane.xlu0 %6085
        %v6087 = vsel %vm6053, %v6048, 0.0
        %6088 = vadd.xlane.f32.xlu0 %v6087
        %v6089 = vpop.xlane.xlu0 %6088
        %v6090 = vsel %vm6053, %v6049, 0.0
        %6091 = vadd.xlane.f32.xlu0 %v6090
        %v6092 = vpop.xlane.xlu0 %6091
        %v6093 = vsel %vm6053, %v6050, 0.0
        %6094 = vadd.xlane.f32.xlu0 %v6093
        %v6095 = vpop.xlane.xlu0 %6094
        %v6096 = vsel %vm6053, %v6051, 0.0
        %6097 = vadd.xlane.f32.xlu0 %v6096
        %v6098 = vpop.xlane.xlu0 %6097
        %v6099 = vsel %vm6053, %v6052, 0.0
        %6100 = vadd.xlane.f32.xlu0 %v6099
        %v6101 = vpop.xlane.xlu0 %6100
        %v6102 = vrcp.pop 32.0
        %v6103 = vmul.f32 %v6056, %v6102
        %v6104 = vmul.f32 %v6059, %v6102
        %v6105 = vmul.f32 %v6062, %v6102
        %v6106 = vmul.f32 %v6065, %v6102
        %v6107 = vmul.f32 %v6068, %v6102
        %v6108 = vmul.f32 %v6071, %v6102
        %v6109 = vmul.f32 %v6074, %v6102
        %v6110 = vmul.f32 %v6077, %v6102
        %v6111 = vmul.f32 %v6080, %v6102
        %v6112 = vmul.f32 %v6083, %v6102
        %v6113 = vmul.f32 %v6086, %v6102
        %v6114 = vmul.f32 %v6089, %v6102
        %v6115 = vmul.f32 %v6092, %v6102
        %v6116 = vmul.f32 %v6095, %v6102
        %v6117 = vmul.f32 %v6098, %v6102
        %v6118 = vmul.f32 %v6101, %v6102
        %v6119 = vsub.f32 %v6037, %v6103
        %v6120 = vsub.f32 %v6038, %v6104
        %v6121 = vsub.f32 %v6039, %v6105
        %v6122 = vsub.f32 %v6040, %v6106
        %v6123 = vsub.f32 %v6041, %v6107
        %v6124 = vsub.f32 %v6042, %v6108
        %v6125 = vsub.f32 %v6043, %v6109
        %v6126 = vsub.f32 %v6044, %v6110
        %v6127 = vsub.f32 %v6045, %v6111
        %v6128 = vsub.f32 %v6046, %v6112
        %v6129 = vsub.f32 %v6047, %v6113
        %v6130 = vsub.f32 %v6048, %v6114
        %v6131 = vsub.f32 %v6049, %v6115
        %v6132 = vsub.f32 %v6050, %v6116
        %v6133 = vsub.f32 %v6051, %v6117
        %v6134 = vsub.f32 %v6052, %v6118
        %v6135 = vmul.f32 %v6119, %v6119
        %v6136 = vmul.f32 %v6120, %v6120
        %v6137 = vmul.f32 %v6121, %v6121
        %v6138 = vmul.f32 %v6122, %v6122
        %v6139 = vmul.f32 %v6123, %v6123
        %v6140 = vmul.f32 %v6124, %v6124
        %v6141 = vmul.f32 %v6125, %v6125
        %v6142 = vmul.f32 %v6126, %v6126
        %v6143 = vmul.f32 %v6127, %v6127
        %v6144 = vmul.f32 %v6128, %v6128
        %v6145 = vmul.f32 %v6129, %v6129
        %v6146 = vmul.f32 %v6130, %v6130
        %v6147 = vmul.f32 %v6131, %v6131
        %v6148 = vmul.f32 %v6132, %v6132
        %v6149 = vmul.f32 %v6133, %v6133
        %v6150 = vmul.f32 %v6134, %v6134
        %v6151 = vsel %vm6053, %v6135, 0.0
        %6152 = vadd.xlane.f32.xlu0 %v6151
        %v6153 = vpop.xlane.xlu0 %6152
        %v6154 = vsel %vm6053, %v6136, 0.0
        %6155 = vadd.xlane.f32.xlu0 %v6154
        %v6156 = vpop.xlane.xlu0 %6155
        %v6157 = vsel %vm6053, %v6137, 0.0
        %6158 = vadd.xlane.f32.xlu0 %v6157
        %v6159 = vpop.xlane.xlu0 %6158
        %v6160 = vsel %vm6053, %v6138, 0.0
        %6161 = vadd.xlane.f32.xlu0 %v6160
        %v6162 = vpop.xlane.xlu0 %6161
        %v6163 = vsel %vm6053, %v6139, 0.0
        %6164 = vadd.xlane.f32.xlu0 %v6163
        %v6165 = vpop.xlane.xlu0 %6164
        %v6166 = vsel %vm6053, %v6140, 0.0
        %6167 = vadd.xlane.f32.xlu0 %v6166
        %v6168 = vpop.xlane.xlu0 %6167
        %v6169 = vsel %vm6053, %v6141, 0.0
        %6170 = vadd.xlane.f32.xlu0 %v6169
        %v6171 = vpop.xlane.xlu0 %6170
        %v6172 = vsel %vm6053, %v6142, 0.0
        %6173 = vadd.xlane.f32.xlu0 %v6172
        %v6174 = vpop.xlane.xlu0 %6173
        %v6175 = vsel %vm6053, %v6143, 0.0
        %6176 = vadd.xlane.f32.xlu0 %v6175
        %v6177 = vpop.xlane.xlu0 %6176
        %v6178 = vsel %vm6053, %v6144, 0.0
        %6179 = vadd.xlane.f32.xlu0 %v6178
        %v6180 = vpop.xlane.xlu0 %6179
        %v6181 = vsel %vm6053, %v6145, 0.0
        %6182 = vadd.xlane.f32.xlu0 %v6181
        %v6183 = vpop.xlane.xlu0 %6182
        %v6184 = vsel %vm6053, %v6146, 0.0
        %6185 = vadd.xlane.f32.xlu0 %v6184
        %v6186 = vpop.xlane.xlu0 %6185
        %v6187 = vsel %vm6053, %v6147, 0.0
        %6188 = vadd.xlane.f32.xlu0 %v6187
        %v6189 = vpop.xlane.xlu0 %6188
        %v6190 = vsel %vm6053, %v6148, 0.0
        %6191 = vadd.xlane.f32.xlu0 %v6190
        %v6192 = vpop.xlane.xlu0 %6191
        %v6193 = vsel %vm6053, %v6149, 0.0
        %6194 = vadd.xlane.f32.xlu0 %v6193
        %v6195 = vpop.xlane.xlu0 %6194
        %v6196 = vsel %vm6053, %v6150, 0.0
        %6197 = vadd.xlane.f32.xlu0 %v6196
        %v6198 = vpop.xlane.xlu0 %6197
        %v6199 = vmul.f32 %v6153, %v6102
        %v6200 = vmul.f32 %v6156, %v6102
        %v6201 = vmul.f32 %v6159, %v6102
        %v6202 = vmul.f32 %v6162, %v6102
        %v6203 = vmul.f32 %v6165, %v6102
        %v6204 = vmul.f32 %v6168, %v6102
        %v6205 = vmul.f32 %v6171, %v6102
        %v6206 = vmul.f32 %v6174, %v6102
        %v6207 = vmul.f32 %v6177, %v6102
        %v6208 = vmul.f32 %v6180, %v6102
        %v6209 = vmul.f32 %v6183, %v6102
        %v6210 = vmul.f32 %v6186, %v6102
        %v6211 = vmul.f32 %v6189, %v6102
        %v6212 = vmul.f32 %v6192, %v6102
        %v6213 = vmul.f32 %v6195, %v6102
        %v6214 = vmul.f32 %v6198, %v6102
        %v6215 = vadd.f32 %v6199, 1e-06
        %v6216 = vadd.f32 %v6200, 1e-06
        %v6217 = vadd.f32 %v6201, 1e-06
        %v6218 = vadd.f32 %v6202, 1e-06
        %v6219 = vadd.f32 %v6203, 1e-06
        %v6220 = vadd.f32 %v6204, 1e-06
        %v6221 = vadd.f32 %v6205, 1e-06
        %v6222 = vadd.f32 %v6206, 1e-06
        %v6223 = vadd.f32 %v6207, 1e-06
        %v6224 = vadd.f32 %v6208, 1e-06
        %v6225 = vadd.f32 %v6209, 1e-06
        %v6226 = vadd.f32 %v6210, 1e-06
        %v6227 = vadd.f32 %v6211, 1e-06
        %v6228 = vadd.f32 %v6212, 1e-06
        %v6229 = vadd.f32 %v6213, 1e-06
        %v6230 = vadd.f32 %v6214, 1e-06
        %v6231 = vrsqrt.pop %v6215
        %v6232 = vrsqrt.pop %v6216
        %v6233 = vrsqrt.pop %v6217
        %v6234 = vrsqrt.pop %v6218
        %v6235 = vrsqrt.pop %v6219
        %v6236 = vrsqrt.pop %v6220
        %v6237 = vrsqrt.pop %v6221
        %v6238 = vrsqrt.pop %v6222
        %v6239 = vrsqrt.pop %v6223
        %v6240 = vrsqrt.pop %v6224
        %v6241 = vrsqrt.pop %v6225
        %v6242 = vrsqrt.pop %v6226
        %v6243 = vrsqrt.pop %v6227
        %v6244 = vrsqrt.pop %v6228
        %v6245 = vrsqrt.pop %v6229
        %v6246 = vrsqrt.pop %v6230
        %v6247 = vmul.f32 %v6119, %v6231
        %v6248 = vmul.f32 %v6120, %v6232
        %v6249 = vmul.f32 %v6121, %v6233
        %v6250 = vmul.f32 %v6122, %v6234
        %v6251 = vmul.f32 %v6123, %v6235
        %v6252 = vmul.f32 %v6124, %v6236
        %v6253 = vmul.f32 %v6125, %v6237
        %v6254 = vmul.f32 %v6126, %v6238
        %v6255 = vmul.f32 %v6127, %v6239
        %v6256 = vmul.f32 %v6128, %v6240
        %v6257 = vmul.f32 %v6129, %v6241
        %v6258 = vmul.f32 %v6130, %v6242
        %v6259 = vmul.f32 %v6131, %v6243
        %v6260 = vmul.f32 %v6132, %v6244
        %v6261 = vmul.f32 %v6133, %v6245
        %v6262 = vmul.f32 %v6134, %v6246
        %v6263 = vld [vmem:[#allocation8] sm:$0x1]
        %v6265 = vlaneseq
        %v6266 = vshrl.u32 %v6265, 7
        %v6267 = vsub.s32 0, %v6266
        %v6268 = vrot.slane %v6263, %v6267
        %v6270 = vmul.f32 %v6247, %v6268
        %v6271 = vmul.f32 %v6248, %v6268
        %v6272 = vmul.f32 %v6249, %v6268
        %v6273 = vmul.f32 %v6250, %v6268
        %v6274 = vmul.f32 %v6251, %v6268
        %v6275 = vmul.f32 %v6252, %v6268
        %v6276 = vmul.f32 %v6253, %v6268
        %v6277 = vmul.f32 %v6254, %v6268
        %v6278 = vmul.f32 %v6255, %v6268
        %v6279 = vmul.f32 %v6256, %v6268
        %v6280 = vmul.f32 %v6257, %v6268
        %v6281 = vmul.f32 %v6258, %v6268
        %v6282 = vmul.f32 %v6259, %v6268
        %v6283 = vmul.f32 %v6260, %v6268
        %v6284 = vmul.f32 %v6261, %v6268
        %v6285 = vmul.f32 %v6262, %v6268
        %v6286 = vld [vmem:[#allocation10] sm:$0x1]
        %v6288 = vlaneseq
        %v6289 = vshrl.u32 %v6288, 7
        %v6290 = vsub.s32 0, %v6289
        %v6291 = vrot.slane %v6286, %v6290
        %v6293 = vadd.f32 %v6270, %v6291
        %v6294 = vadd.f32 %v6271, %v6291
        %v6295 = vadd.f32 %v6272, %v6291
        %v6296 = vadd.f32 %v6273, %v6291
        %v6297 = vadd.f32 %v6274, %v6291
        %v6298 = vadd.f32 %v6275, %v6291
        %v6299 = vadd.f32 %v6276, %v6291
        %v6300 = vadd.f32 %v6277, %v6291
        %v6301 = vadd.f32 %v6278, %v6291
        %v6302 = vadd.f32 %v6279, %v6291
        %v6303 = vadd.f32 %v6280, %v6291
        %v6304 = vadd.f32 %v6281, %v6291
        %v6305 = vadd.f32 %v6282, %v6291
        %v6306 = vadd.f32 %v6283, %v6291
        %v6307 = vadd.f32 %v6284, %v6291
        %v6308 = vadd.f32 %v6285, %v6291
        %v6309 = vld [vmem:[#allocation11] sm:$0xff]
        %v6310 = vld [vmem:[#allocation11 + $0x8] sm:$0xff]
        %v6311 = vld [vmem:[#allocation11 + $0x10] sm:$0xff]
        %v6312 = vld [vmem:[#allocation11 + $0x18] sm:$0xff]
        %v6313 = vld [vmem:[#allocation13] sm:$0x1]
        %v6315 = vlaneseq
        %v6316 = vshrl.u32 %v6315, 7
        %v6317 = vsub.s32 0, %v6316
        %v6318 = vrot.slane %v6313, %v6317
        %v6321 = vsel %vm6053, %v6293, 0
        %v6324 = vsel %vm6053, %v6294, 0
        %v6327 = vsel %vm6053, %v6295, 0
        %v6330 = vsel %vm6053, %v6296, 0
        %v6333 = vsel %vm6053, %v6297, 0
        %v6336 = vsel %vm6053, %v6298, 0
        %v6339 = vsel %vm6053, %v6299, 0
        %v6342 = vsel %vm6053, %v6300, 0
        %v6345 = vsel %vm6053, %v6301, 0
        %v6348 = vsel %vm6053, %v6302, 0
        %v6351 = vsel %vm6053, %v6303, 0
        %v6354 = vsel %vm6053, %v6304, 0
        %v6357 = vsel %vm6053, %v6305, 0
        %v6360 = vsel %vm6053, %v6306, 0
        %v6363 = vsel %vm6053, %v6307, 0
        %v6366 = vsel %vm6053, %v6308, 0
        %6368 = vmatprep.subr.mxu0 0.0
        %6369 = vmatpush1.msra.mxu0 %v6309
        %6370 = vmatprep.subr.mxu0 0.0
        %6371 = vmatpush1.msra.mxu0 %v6310
        %6372 = vmatprep.subr.mxu0 0.0
        %6373 = vmatpush1.msra.mxu0 %v6311
        %6374 = vmatprep.subr.mxu0 0.0
        %6375 = vmatpush1.msra.mxu0 %v6312
        %6376 = vmatprep.subr.mxu0 0.0
        %6377 = vmatpush1.msra.mxu0 0.0
        %6378 = vmatprep.subr.mxu0 0.0
        %6379 = vmatpush1.msra.mxu0 0.0
        %6380 = vmatprep.subr.mxu0 0.0
        %6381 = vmatpush1.msra.mxu0 0.0
        %6382 = vmatprep.subr.mxu0 0.0
        %6383 = vmatpush1.msra.mxu0 0.0
        %6384 = vmatprep.subr.mxu0 0.0
        %6385 = vmatpush1.msra.mxu0 0.0
        %6386 = vmatprep.subr.mxu0 0.0
        %6387 = vmatpush1.msra.mxu0 0.0
        %6388 = vmatprep.subr.mxu0 0.0
        %6389 = vmatpush1.msra.mxu0 0.0
        %6390 = vmatprep.subr.mxu0 0.0
        %6391 = vmatpush1.msra.mxu0 0.0
        %6392 = vmatprep.subr.mxu0 0.0
        %6393 = vmatpush1.msra.mxu0 0.0
        %6394 = vmatprep.subr.mxu0 0.0
        %6395 = vmatpush1.msra.mxu0 0.0
        %6396 = vmatprep.subr.mxu0 0.0
        %6397 = vmatpush1.msra.mxu0 0.0
        %6398 = vmatprep.subr.mxu0 0.0
        %6399 = vmatpush1.msra.mxu0 0.0
        %6400 = vmatprep.subr.mxu0 0.0
        %6401 = vmatpush1.msra.mxu0 0.0
        %6402 = vmatprep.subr.mxu0 0.0
        %6403 = vmatpush1.msra.mxu0 0.0
        %6404 = vmatprep.subr.mxu0 0.0
        %6405 = vmatpush1.msra.mxu0 0.0
        %6406 = vmatprep.subr.mxu0 0.0
        %6407 = vmatpush1.msra.mxu0 0.0
        %6408 = vmatprep.subr.mxu0 0.0
        %6409 = vmatpush1.msra.mxu0 0.0
        %6410 = vmatprep.subr.mxu0 0.0
        %6411 = vmatpush1.msra.mxu0 0.0
        %6412 = vmatprep.subr.mxu0 0.0
        %6413 = vmatpush1.msra.mxu0 0.0
        %6414 = vmatprep.subr.mxu0 0.0
        %6415 = vmatpush1.msra.mxu0 0.0
        %6416 = vmatprep.subr.mxu0 0.0
        %6417 = vmatpush1.msra.mxu0 0.0
        %6418 = vmatprep.subr.mxu0 0.0
        %6419 = vmatpush1.msra.mxu0 0.0
        %6420 = vmatprep.subr.mxu0 0.0
        %6421 = vmatpush1.msra.mxu0 0.0
        %6422 = vmatprep.subr.mxu0 0.0
        %6423 = vmatpush1.msra.mxu0 0.0
        %6424 = vmatprep.subr.mxu0 0.0
        %6425 = vmatpush1.msra.mxu0 0.0
        %6426 = vmatprep.subr.mxu0 0.0
        %6427 = vmatpush1.msra.mxu0 0.0
        %6428 = vmatprep.subr.mxu0 0.0
        %6429 = vmatpush1.msra.mxu0 0.0
        %6430 = vmatprep.subr.mxu0 0.0
        %6431 = vmatpush1.msra.mxu0 0.0
        %6432 = vmatprep.mubr.f32.mxu0 0.0
        %6433 = vmatmul.mubr.f32.gmra.mrb[0].mxu0 %v6321
        %v6434 = vpop.f32.mrb[0].mxu0
        %v6435 = vadd.f32 %v6318, %v6434
        %v6436 = vpop.f32.mrb[0].mxu0
        %6437 = vmatprep.mubr.f32.mxu0 0.0
        %6438 = vmatmul.mubr.f32.gmra.mrb[0].mxu0 %v6324
        %v6439 = vpop.f32.mrb[0].mxu0
        %v6440 = vadd.f32 %v6318, %v6439
        %v6441 = vpop.f32.mrb[0].mxu0
        %6442 = vmatprep.mubr.f32.mxu0 0.0
        %6443 = vmatmul.mubr.f32.gmra.mrb[0].mxu0 %v6327
        %v6444 = vpop.f32.mrb[0].mxu0
        %v6445 = vadd.f32 %v6318, %v6444
        %v6446 = vpop.f32.mrb[0].mxu0
        %6447 = vmatprep.mubr.f32.mxu0 0.0
        %6448 = vmatmul.mubr.f32.gmra.mrb[0].mxu0 %v6330
        %v6449 = vpop.f32.mrb[0].mxu0
        %v6450 = vadd.f32 %v6318, %v6449
        %v6451 = vpop.f32.mrb[0].mxu0
        %6452 = vmatprep.mubr.f32.mxu0 0.0
        %6453 = vmatmul.mubr.f32.gmra.mrb[0].mxu0 %v6333
        %v6454 = vpop.f32.mrb[0].mxu0
        %v6455 = vadd.f32 %v6318, %v6454
        %v6456 = vpop.f32.mrb[0].mxu0
        %6457 = vmatprep.mubr.f32.mxu0 0.0
        %6458 = vmatmul.mubr.f32.gmra.mrb[0].mxu0 %v6336
        %v6459 = vpop.f32.mrb[0].mxu0
        %v6460 = vadd.f32 %v6318, %v6459
        %v6461 = vpop.f32.mrb[0].mxu0
        %6462 = vmatprep.mubr.f32.mxu0 0.0
        %6463 = vmatmul.mubr.f32.gmra.mrb[0].mxu0 %v6339
        %v6464 = vpop.f32.mrb[0].mxu0
        %v6465 = vadd.f32 %v6318, %v6464
        %v6466 = vpop.f32.mrb[0].mxu0
        %6467 = vmatprep.mubr.f32.mxu0 0.0
        %6468 = vmatmul.mubr.f32.gmra.mrb[0].mxu0 %v6342
        %v6469 = vpop.f32.mrb[0].mxu0
        %v6470 = vadd.f32 %v6318, %v6469
        %v6471 = vpop.f32.mrb[0].mxu0
        %6472 = vmatprep.mubr.f32.mxu0 0.0
        %6473 = vmatmul.mubr.f32.gmra.mrb[0].mxu0 %v6345
        %v6474 = vpop.f32.mrb[0].mxu0
        %v6475 = vadd.f32 %v6318, %v6474
        %v6476 = vpop.f32.mrb[0].mxu0
        %6477 = vmatprep.mubr.f32.mxu0 0.0
        %6478 = vmatmul.mubr.f32.gmra.mrb[0].mxu0 %v6348
        %v6479 = vpop.f32.mrb[0].mxu0
        %v6480 = vadd.f32 %v6318, %v6479
        %v6481 = vpop.f32.mrb[0].mxu0
        %6482 = vmatprep.mubr.f32.mxu0 0.0
        %6483 = vmatmul.mubr.f32.gmra.mrb[0].mxu0 %v6351
        %v6484 = vpop.f32.mrb[0].mxu0
        %v6485 = vadd.f32 %v6318, %v6484
        %v6486 = vpop.f32.mrb[0].mxu0
        %6487 = vmatprep.mubr.f32.mxu0 0.0
        %6488 = vmatmul.mubr.f32.gmra.mrb[0].mxu0 %v6354
        %v6489 = vpop.f32.mrb[0].mxu0
        %v6490 = vadd.f32 %v6318, %v6489
        %v6491 = vpop.f32.mrb[0].mxu0
        %6492 = vmatprep.mubr.f32.mxu0 0.0
        %6493 = vmatmul.mubr.f32.gmra.mrb[0].mxu0 %v6357
        %v6494 = vpop.f32.mrb[0].mxu0
        %v6495 = vadd.f32 %v6318, %v6494
        %v6496 = vpop.f32.mrb[0].mxu0
        %6497 = vmatprep.mubr.f32.mxu0 0.0
        %6498 = vmatmul.mubr.f32.gmra.mrb[0].mxu0 %v6360
        %v6499 = vpop.f32.mrb[0].mxu0
        %v6500 = vadd.f32 %v6318, %v6499
        %v6501 = vpop.f32.mrb[0].mxu0
        %6502 = vmatprep.mubr.f32.mxu0 0.0
        %6503 = vmatmul.mubr.f32.gmra.mrb[0].mxu0 %v6363
        %v6504 = vpop.f32.mrb[0].mxu0
        %v6505 = vadd.f32 %v6318, %v6504
        %v6506 = vpop.f32.mrb[0].mxu0
        %6507 = vmatprep.mubr.f32.mxu0 0.0
        %6508 = vmatmul.mubr.f32.gmra.mrb[0].mxu0 %v6366
        %v6509 = vpop.f32.mrb[0].mxu0
        %v6510 = vadd.f32 %v6318, %v6509
        %v6511 = vpop.f32.mrb[0].mxu0
        %6512 = vdwg.mxu0
        %v6513 = vmul.f32 %v6435, 0.5
        %v6514 = vmul.f32 %v6440, 0.5
        %v6515 = vmul.f32 %v6445, 0.5
        %v6516 = vmul.f32 %v6450, 0.5
        %v6517 = vmul.f32 %v6455, 0.5
        %v6518 = vmul.f32 %v6460, 0.5
        %v6519 = vmul.f32 %v6465, 0.5
        %v6520 = vmul.f32 %v6470, 0.5
        %v6521 = vmul.f32 %v6475, 0.5
        %v6522 = vmul.f32 %v6480, 0.5
        %v6523 = vmul.f32 %v6485, 0.5
        %v6524 = vmul.f32 %v6490, 0.5
        %v6525 = vmul.f32 %v6495, 0.5
        %v6526 = vmul.f32 %v6500, 0.5
        %v6527 = vmul.f32 %v6505, 0.5
        %v6528 = vmul.f32 %v6510, 0.5
        %v6529 = vmul.f32 %v6435, 0.70710677
        %v6530 = vmul.f32 %v6440, 0.70710677
        %v6531 = vmul.f32 %v6445, 0.70710677
        %v6532 = vmul.f32 %v6450, 0.70710677
        %v6533 = vmul.f32 %v6455, 0.70710677
        %v6534 = vmul.f32 %v6460, 0.70710677
        %v6535 = vmul.f32 %v6465, 0.70710677
        %v6536 = vmul.f32 %v6470, 0.70710677
        %v6537 = vmul.f32 %v6475, 0.70710677
        %v6538 = vmul.f32 %v6480, 0.70710677
        %v6539 = vmul.f32 %v6485, 0.70710677
        %v6540 = vmul.f32 %v6490, 0.70710677
        %v6541 = vmul.f32 %v6495, 0.70710677
        %v6542 = vmul.f32 %v6500, 0.70710677
        %v6543 = vmul.f32 %v6505, 0.70710677
        %v6544 = vmul.f32 %v6510, 0.70710677
        %v6545 = verf.f32.pop %v6529
        %v6546 = verf.f32.pop %v6530
        %v6547 = verf.f32.pop %v6531
        %v6548 = verf.f32.pop %v6532
        %v6549 = verf.f32.pop %v6533
        %v6550 = verf.f32.pop %v6534
        %v6551 = verf.f32.pop %v6535
        %v6552 = verf.f32.pop %v6536
        %v6553 = verf.f32.pop %v6537
        %v6554 = verf.f32.pop %v6538
        %v6555 = verf.f32.pop %v6539
        %v6556 = verf.f32.pop %v6540
        %v6557 = verf.f32.pop %v6541
        %v6558 = verf.f32.pop %v6542
        %v6559 = verf.f32.pop %v6543
        %v6560 = verf.f32.pop %v6544
        %v6561 = vadd.f32 %v6545, 1.0
        %v6562 = vadd.f32 %v6546, 1.0
        %v6563 = vadd.f32 %v6547, 1.0
        %v6564 = vadd.f32 %v6548, 1.0
        %v6565 = vadd.f32 %v6549, 1.0
        %v6566 = vadd.f32 %v6550, 1.0
        %v6567 = vadd.f32 %v6551, 1.0
        %v6568 = vadd.f32 %v6552, 1.0
        %v6569 = vadd.f32 %v6553, 1.0
        %v6570 = vadd.f32 %v6554, 1.0
        %v6571 = vadd.f32 %v6555, 1.0
        %v6572 = vadd.f32 %v6556, 1.0
        %v6573 = vadd.f32 %v6557, 1.0
        %v6574 = vadd.f32 %v6558, 1.0
        %v6575 = vadd.f32 %v6559, 1.0
        %v6576 = vadd.f32 %v6560, 1.0
        %v6577 = vmul.f32 %v6513, %v6561
        %v6578 = vmul.f32 %v6514, %v6562
        %v6579 = vmul.f32 %v6515, %v6563
        %v6580 = vmul.f32 %v6516, %v6564
        %v6581 = vmul.f32 %v6517, %v6565
        %v6582 = vmul.f32 %v6518, %v6566
        %v6583 = vmul.f32 %v6519, %v6567
        %v6584 = vmul.f32 %v6520, %v6568
        %v6585 = vmul.f32 %v6521, %v6569
        %v6586 = vmul.f32 %v6522, %v6570
        %v6587 = vmul.f32 %v6523, %v6571
        %v6588 = vmul.f32 %v6524, %v6572
        %v6589 = vmul.f32 %v6525, %v6573
        %v6590 = vmul.f32 %v6526, %v6574
        %v6591 = vmul.f32 %v6527, %v6575
        %v6592 = vmul.f32 %v6528, %v6576
        %v6593 = vld [vmem:[#allocation14] sm:$0xff]
        %v6594 = vld [vmem:[#allocation14 + $0x8] sm:$0xff]
        %v6595 = vld [vmem:[#allocation14 + $0x10] sm:$0xff]
        %v6596 = vld [vmem:[#allocation14 + $0x18] sm:$0xff]
        %v6597 = vld [vmem:[#allocation14 + $0x20] sm:$0xff]
        %v6598 = vld [vmem:[#allocation14 + $0x28] sm:$0xff]
        %v6599 = vld [vmem:[#allocation14 + $0x30] sm:$0xff]
        %v6600 = vld [vmem:[#allocation14 + $0x38] sm:$0xff]
        %v6601 = vld [vmem:[#allocation14 + $0x40] sm:$0xff]
        %v6602 = vld [vmem:[#allocation14 + $0x48] sm:$0xff]
        %v6603 = vld [vmem:[#allocation14 + $0x50] sm:$0xff]
        %v6604 = vld [vmem:[#allocation14 + $0x58] sm:$0xff]
        %v6605 = vld [vmem:[#allocation14 + $0x60] sm:$0xff]
        %v6606 = vld [vmem:[#allocation14 + $0x68] sm:$0xff]
        %v6607 = vld [vmem:[#allocation14 + $0x70] sm:$0xff]
        %v6608 = vld [vmem:[#allocation14 + $0x78] sm:$0xff]
        %v6609 = vld [vmem:[#allocation16] sm:$0x1]
        %v6611 = vlaneseq
        %v6612 = vshrl.u32 %v6611, 7
        %v6613 = vsub.s32 0, %v6612
        %v6614 = vrot.slane %v6609, %v6613
        %6616 = vmatprep.subr.mxu0 0.0
        %6617 = vmatpush1.msra.mxu0 %v6593
        %6618 = vmatprep.subr.mxu0 0.0
        %6619 = vmatpush1.msra.mxu0 %v6594
        %6620 = vmatprep.subr.mxu0 0.0
        %6621 = vmatpush1.msra.mxu0 %v6595
        %6622 = vmatprep.subr.mxu0 0.0
        %6623 = vmatpush1.msra.mxu0 %v6596
        %6624 = vmatprep.subr.mxu0 0.0
        %6625 = vmatpush1.msra.mxu0 %v6597
        %6626 = vmatprep.subr.mxu0 0.0
        %6627 = vmatpush1.msra.mxu0 %v6598
        %6628 = vmatprep.subr.mxu0 0.0
        %6629 = vmatpush1.msra.mxu0 %v6599
        %6630 = vmatprep.subr.mxu0 0.0
        %6631 = vmatpush1.msra.mxu0 %v6600
        %6632 = vmatprep.subr.mxu0 0.0
        %6633 = vmatpush1.msra.mxu0 %v6601
        %6634 = vmatprep.subr.mxu0 0.0
        %6635 = vmatpush1.msra.mxu0 %v6602
        %6636 = vmatprep.subr.mxu0 0.0
        %6637 = vmatpush1.msra.mxu0 %v6603
        %6638 = vmatprep.subr.mxu0 0.0
        %6639 = vmatpush1.msra.mxu0 %v6604
        %6640 = vmatprep.subr.mxu0 0.0
        %6641 = vmatpush1.msra.mxu0 %v6605
        %6642 = vmatprep.subr.mxu0 0.0
        %6643 = vmatpush1.msra.mxu0 %v6606
        %6644 = vmatprep.subr.mxu0 0.0
        %6645 = vmatpush1.msra.mxu0 %v6607
        %6646 = vmatprep.subr.mxu0 0.0
        %6647 = vmatpush1.msra.mxu0 %v6608
        %6648 = vmatprep.subr.mxu0 0.0
        %6649 = vmatpush1.msra.mxu0 0.0
        %6650 = vmatprep.subr.mxu0 0.0
        %6651 = vmatpush1.msra.mxu0 0.0
        %6652 = vmatprep.subr.mxu0 0.0
        %6653 = vmatpush1.msra.mxu0 0.0
        %6654 = vmatprep.subr.mxu0 0.0
        %6655 = vmatpush1.msra.mxu0 0.0
        %6656 = vmatprep.subr.mxu0 0.0
        %6657 = vmatpush1.msra.mxu0 0.0
        %6658 = vmatprep.subr.mxu0 0.0
        %6659 = vmatpush1.msra.mxu0 0.0
        %6660 = vmatprep.subr.mxu0 0.0
        %6661 = vmatpush1.msra.mxu0 0.0
        %6662 = vmatprep.subr.mxu0 0.0
        %6663 = vmatpush1.msra.mxu0 0.0
        %6664 = vmatprep.subr.mxu0 0.0
        %6665 = vmatpush1.msra.mxu0 0.0
        %6666 = vmatprep.subr.mxu0 0.0
        %6667 = vmatpush1.msra.mxu0 0.0
        %6668 = vmatprep.subr.mxu0 0.0
        %6669 = vmatpush1.msra.mxu0 0.0
        %6670 = vmatprep.subr.mxu0 0.0
        %6671 = vmatpush1.msra.mxu0 0.0
        %6672 = vmatprep.subr.mxu0 0.0
        %6673 = vmatpush1.msra.mxu0 0.0
        %6674 = vmatprep.subr.mxu0 0.0
        %6675 = vmatpush1.msra.mxu0 0.0
        %6676 = vmatprep.subr.mxu0 0.0
        %6677 = vmatpush1.msra.mxu0 0.0
        %6678 = vmatprep.subr.mxu0 0.0
        %6679 = vmatpush1.msra.mxu0 0.0
        %6680 = vmatprep.mubr.f32.mxu0 0.0
        %6681 = vmatmul.mubr.f32.gmra.mrb[0].mxu0 %v6577
        %v6682 = vpop.f32.mrb[0].mxu0
        %v6683 = vadd.f32 %v6614, %v6682
        %v6684 = vpop.f32.mrb[0].mxu0
        %6685 = vmatprep.mubr.f32.mxu0 0.0
        %6686 = vmatmul.mubr.f32.gmra.mrb[0].mxu0 %v6578
        %v6687 = vpop.f32.mrb[0].mxu0
        %v6688 = vadd.f32 %v6614, %v6687
        %v6689 = vpop.f32.mrb[0].mxu0
        %6690 = vmatprep.mubr.f32.mxu0 0.0
        %6691 = vmatmul.mubr.f32.gmra.mrb[0].mxu0 %v6579
        %v6692 = vpop.f32.mrb[0].mxu0
        %v6693 = vadd.f32 %v6614, %v6692
        %v6694 = vpop.f32.mrb[0].mxu0
        %6695 = vmatprep.mubr.f32.mxu0 0.0
        %6696 = vmatmul.mubr.f32.gmra.mrb[0].mxu0 %v6580
        %v6697 = vpop.f32.mrb[0].mxu0
        %v6698 = vadd.f32 %v6614, %v6697
        %v6699 = vpop.f32.mrb[0].mxu0
        %6700 = vmatprep.mubr.f32.mxu0 0.0
        %6701 = vmatmul.mubr.f32.gmra.mrb[0].mxu0 %v6581
        %v6702 = vpop.f32.mrb[0].mxu0
        %v6703 = vadd.f32 %v6614, %v6702
        %v6704 = vpop.f32.mrb[0].mxu0
        %6705 = vmatprep.mubr.f32.mxu0 0.0
        %6706 = vmatmul.mubr.f32.gmra.mrb[0].mxu0 %v6582
        %v6707 = vpop.f32.mrb[0].mxu0
        %v6708 = vadd.f32 %v6614, %v6707
        %v6709 = vpop.f32.mrb[0].mxu0
        %6710 = vmatprep.mubr.f32.mxu0 0.0
        %6711 = vmatmul.mubr.f32.gmra.mrb[0].mxu0 %v6583
        %v6712 = vpop.f32.mrb[0].mxu0
        %v6713 = vadd.f32 %v6614, %v6712
        %v6714 = vpop.f32.mrb[0].mxu0
        %6715 = vmatprep.mubr.f32.mxu0 0.0
        %6716 = vmatmul.mubr.f32.gmra.mrb[0].mxu0 %v6584
        %v6717 = vpop.f32.mrb[0].mxu0
        %v6718 = vadd.f32 %v6614, %v6717
        %v6719 = vpop.f32.mrb[0].mxu0
        %6720 = vmatprep.mubr.f32.mxu0 0.0
        %6721 = vmatmul.mubr.f32.gmra.mrb[0].mxu0 %v6585
        %v6722 = vpop.f32.mrb[0].mxu0
        %v6723 = vadd.f32 %v6614, %v6722
        %v6724 = vpop.f32.mrb[0].mxu0
        %6725 = vmatprep.mubr.f32.mxu0 0.0
        %6726 = vmatmul.mubr.f32.gmra.mrb[0].mxu0 %v6586
        %v6727 = vpop.f32.mrb[0].mxu0
        %v6728 = vadd.f32 %v6614, %v6727
        %v6729 = vpop.f32.mrb[0].mxu0
        %6730 = vmatprep.mubr.f32.mxu0 0.0
        %6731 = vmatmul.mubr.f32.gmra.mrb[0].mxu0 %v6587
        %v6732 = vpop.f32.mrb[0].mxu0
        %v6733 = vadd.f32 %v6614, %v6732
        %v6734 = vpop.f32.mrb[0].mxu0
        %6735 = vmatprep.mubr.f32.mxu0 0.0
        %6736 = vmatmul.mubr.f32.gmra.mrb[0].mxu0 %v6588
        %v6737 = vpop.f32.mrb[0].mxu0
        %v6738 = vadd.f32 %v6614, %v6737
        %v6739 = vpop.f32.mrb[0].mxu0
        %6740 = vmatprep.mubr.f32.mxu0 0.0
        %6741 = vmatmul.mubr.f32.gmra.mrb[0].mxu0 %v6589
        %v6742 = vpop.f32.mrb[0].mxu0
        %v6743 = vadd.f32 %v6614, %v6742
        %v6744 = vpop.f32.mrb[0].mxu0
        %6745 = vmatprep.mubr.f32.mxu0 0.0
        %6746 = vmatmul.mubr.f32.gmra.mrb[0].mxu0 %v6590
        %v6747 = vpop.f32.mrb[0].mxu0
        %v6748 = vadd.f32 %v6614, %v6747
        %v6749 = vpop.f32.mrb[0].mxu0
        %6750 = vmatprep.mubr.f32.mxu0 0.0
        %6751 = vmatmul.mubr.f32.gmra.mrb[0].mxu0 %v6591
        %v6752 = vpop.f32.mrb[0].mxu0
        %v6753 = vadd.f32 %v6614, %v6752
        %v6754 = vpop.f32.mrb[0].mxu0
        %6755 = vmatprep.mubr.f32.mxu0 0.0
        %6756 = vmatmul.mubr.f32.gmra.mrb[0].mxu0 %v6592
        %v6757 = vpop.f32.mrb[0].mxu0
        %v6758 = vadd.f32 %v6614, %v6757
        %v6759 = vpop.f32.mrb[0].mxu0
        %6760 = vdwg.mxu0
        %v6761 = vld [vmem:[#allocation17] sm:$0x1]
        %v6763 = vlaneseq
        %v6764 = vshrl.u32 %v6763, 7
        %v6765 = vsub.s32 0, %v6764
        %v6766 = vrot.slane %v6761, %v6765
        %v6768 = vmul.f32 %v6683, %v6766
        %v6769 = vmul.f32 %v6688, %v6766
        %v6770 = vmul.f32 %v6693, %v6766
        %v6771 = vmul.f32 %v6698, %v6766
        %v6772 = vmul.f32 %v6703, %v6766
        %v6773 = vmul.f32 %v6708, %v6766
        %v6774 = vmul.f32 %v6713, %v6766
        %v6775 = vmul.f32 %v6718, %v6766
        %v6776 = vmul.f32 %v6723, %v6766
        %v6777 = vmul.f32 %v6728, %v6766
        %v6778 = vmul.f32 %v6733, %v6766
        %v6779 = vmul.f32 %v6738, %v6766
        %v6780 = vmul.f32 %v6743, %v6766
        %v6781 = vmul.f32 %v6748, %v6766
        %v6782 = vmul.f32 %v6753, %v6766
        %v6783 = vmul.f32 %v6758, %v6766
        %v6800 = vrot.slane %v6768, 5
        %v6801 = vrot.slane %v6769, 5
        %v6802 = vsel %vm4344, %v6800, %v6801
        %v6803 = vrot.slane %v6770, 5
        %v6804 = vrot.slane %v6771, 5
        %v6805 = vsel %vm4344, %v6803, %v6804
        %v6806 = vrot.slane %v6772, 5
        %v6807 = vrot.slane %v6773, 5
        %v6808 = vsel %vm4344, %v6806, %v6807
        %v6809 = vrot.slane %v6774, 5
        %v6810 = vrot.slane %v6775, 5
        %v6811 = vsel %vm4344, %v6809, %v6810
        %v6812 = vrot.slane %v6776, 5
        %v6813 = vrot.slane %v6777, 5
        %v6814 = vsel %vm4344, %v6812, %v6813
        %v6815 = vrot.slane %v6778, 5
        %v6816 = vrot.slane %v6779, 5
        %v6817 = vsel %vm4344, %v6815, %v6816
        %v6818 = vrot.slane %v6780, 5
        %v6819 = vrot.slane %v6781, 5
        %v6820 = vsel %vm4344, %v6818, %v6819
        %v6821 = vrot.slane %v6782, 5
        %v6822 = vrot.slane %v6783, 5
        %v6823 = vsel %vm4344, %v6821, %v6822
        %v6848 = vadd.f32 %v524, %v6800
        %v6849 = vadd.f32 %v525, %v6802
        %v6850 = vadd.f32 %v526, %v6801
        %v6851 = vadd.f32 %v527, %v6803
        %v6852 = vadd.f32 %v528, %v6805
        %v6853 = vadd.f32 %v529, %v6804
        %v6854 = vadd.f32 %v530, %v6806
        %v6855 = vadd.f32 %v531, %v6808
        %v6856 = vadd.f32 %v532, %v6807
        %v6857 = vadd.f32 %v533, %v6809
        %v6858 = vadd.f32 %v534, %v6811
        %v6859 = vadd.f32 %v535, %v6810
        %v6860 = vadd.f32 %v536, %v6812
        %v6861 = vadd.f32 %v537, %v6814
        %v6862 = vadd.f32 %v538, %v6813
        %v6863 = vadd.f32 %v539, %v6815
        %v6864 = vadd.f32 %v540, %v6817
        %v6865 = vadd.f32 %v541, %v6816
        %v6866 = vadd.f32 %v542, %v6818
        %v6867 = vadd.f32 %v543, %v6820
        %v6868 = vadd.f32 %v544, %v6819
        %v6869 = vadd.f32 %v545, %v6821
        %v6870 = vadd.f32 %v546, %v6823
        %v6871 = vadd.f32 %v547, %v6822
        %vm6872 = vcmask 261123
        %6873 = vst.msk [vmem:[%s510 - $0x3] sm:$0xf8] %vm6872, %v6848
        %6874 = vst.msk [vmem:[%s510 + $0x5] sm:$0xff] %vm6053, %v6849
        %vm6875 = vcmask 256000
        %6876 = vst.msk [vmem:[%s510 + $0xd] sm:$0x7] %vm6875, %v6850
        %6877 = vst.msk [vmem:[%s510 + $0xd] sm:$0xf8] %vm6872, %v6851
        %6878 = vst.msk [vmem:[%s510 + $0x15] sm:$0xff] %vm6053, %v6852
        %6879 = vst.msk [vmem:[%s510 + $0x1d] sm:$0x7] %vm6875, %v6853
        %6880 = vst.msk [vmem:[%s510 + $0x1d] sm:$0xf8] %vm6872, %v6854
        %6881 = vst.msk [vmem:[%s510 + $0x25] sm:$0xff] %vm6053, %v6855
        %6882 = vst.msk [vmem:[%s510 + $0x2d] sm:$0x7] %vm6875, %v6856
        %6883 = vst.msk [vmem:[%s510 + $0x2d] sm:$0xf8] %vm6872, %v6857
        %6884 = vst.msk [vmem:[%s510 + $0x35] sm:$0xff] %vm6053, %v6858
        %6885 = vst.msk [vmem:[%s510 + $0x3d] sm:$0x7] %vm6875, %v6859
        %6886 = vst.msk [vmem:[%s510 + $0x3d] sm:$0xf8] %vm6872, %v6860
        %6887 = vst.msk [vmem:[%s510 + $0x45] sm:$0xff] %vm6053, %v6861
        %6888 = vst.msk [vmem:[%s510 + $0x4d] sm:$0x7] %vm6875, %v6862
        %6889 = vst.msk [vmem:[%s510 + $0x4d] sm:$0xf8] %vm6872, %v6863
        %6890 = vst.msk [vmem:[%s510 + $0x55] sm:$0xff] %vm6053, %v6864
        %6891 = vst.msk [vmem:[%s510 + $0x5d] sm:$0x7] %vm6875, %v6865
        %6892 = vst.msk [vmem:[%s510 + $0x5d] sm:$0xf8] %vm6872, %v6866
        %6893 = vst.msk [vmem:[%s510 + $0x65] sm:$0xff] %vm6053, %v6867
        %6894 = vst.msk [vmem:[%s510 + $0x6d] sm:$0x7] %vm6875, %v6868
        %6895 = vst.msk [vmem:[%s510 + $0x6d] sm:$0xf8] %vm6872, %v6869
        %6896 = vst.msk [vmem:[%s510 + $0x75] sm:$0xff] %vm6053, %v6870
        %6897 = vst.msk [vmem:[%s510 + $0x7d] sm:$0x7] %vm6875, %v6871
        %s6898 = sand.u32 %s269, 1
        %s6899 = scalar_lea.sflag [#allocation4], %s6898
        %s6900 = sand.u32 %s269, 1
        %s6901 = smul.addr %s6900, 128
        %s6902 = scalar_lea.vmem [#allocation19], %s6901
        // Predicated region
        $region101: #{tpu_custom_call.1} parent=59 // pred_check
          %p6903 = pneg %p279
        $region102: #{tpu_custom_call.1} parent=59 // pred_check_branch
          %6905 = sbr.rel (%p6903) target = $region104
        $region103: #{tpu_custom_call.1} parent=59 // pred_region
          %s6906 = smul.u32 8, %s37
          %s6908 = ssub.s32 2048, 2048
          %6909 = vsyncadd %s6899, %s6908
          %s6910 = smul.addr %s6906, 2
          %s6911 = smul.addr %s36, 32
          %s6912 = sadd.s32 %s6910, %s6911
          %s6913 = smul.addr %s6912, 128
          %s6914 = scalar_lea.hbm %s10, %s6913
          %s6915 = sshll.u32 %s6902, 4
          %s6916 = int_to_ptr.vmem [resolvable:$true] %s6915
          %6921 = dma.vmem_to_hbm [thread:$0]  %s6916, 2048, %s6914, %s6899, 128, 128, 8
        $region104: #{tpu_custom_call.1} parent=59 // pred_fallthru
          _
      $region60: #{tpu_custom_call.1} parent=5 // pred_fallthru
        _
      %p6922 = scmp.le.s32.totalorder 2, %s27
      // Predicated region
      $region105: #{tpu_custom_call.1} parent=5 // pred_check
        %p6923 = pneg %p6922
      $region106: #{tpu_custom_call.1} parent=5 // pred_check_branch
        %6925 = sbr.rel (%p6923) target = $region108
      $region107: #{tpu_custom_call.1} parent=5 // pred_region
        %s6926 = ssub.s32 %s27, 2
        // Predicated region
        $region109: #{tpu_custom_call.1} parent=107 // pred_check
          %p6927 = pneg %p285
        $region110: #{tpu_custom_call.1} parent=107 // pred_check_branch
          %6929 = sbr.rel (%p6927) target = $region112
        $region111: #{tpu_custom_call.1} parent=107 // pred_region
          %s6930 = sand.u32 %s270, 1
          %s6931 = scalar_lea.sflag [#allocation4], %s6930
          %s6932 = sand.u32 %s270, 1
          %s6933 = smul.addr %s6932, 128
          %s6934 = scalar_lea.vmem [#allocation19], %s6933
          %6935 = dma.done %s6931, 2048
        $region112: #{tpu_custom_call.1} parent=107 // pred_fallthru
          _
      $region108: #{tpu_custom_call.1} parent=5 // pred_fallthru
        _
    $region6: #{tpu_custom_call.1} parent=1 // loop_footer
      %s31 = sadd.s32 1, %s27
    $region7: #{tpu_custom_call.1} parent=1 // loop_footer_branch
      %26 = sbr.rel target = $region3
    $region8: #{tpu_custom_call.1} parent=1 // loop_exit
      _
    %6936 = vsyncpa [#allocation3], 1
    %s6937 = scalar_lea.sflag [#allocation3], 1
    %6938 = vsyncpa %s6937, 1
    %6939 = vsyncpa [#allocation6], 1
    %6940 = vsyncpa [#allocation9], 1
    %6941 = vsyncpa [#allocation12], 1
    %6942 = vsyncpa [#allocation15], 1
    %6943 = vsyncpa [#allocation18], 1
    %6944 = vsyncpa [#allocation4], 1
    %s6945 = scalar_lea.sflag [#allocation4], 1
    %6946 = vsyncpa %s6945, 1

</llo_original>
